<compile_context>
chip_gen: v7x
topology: tpu7x:2x2x1
jax: 0.10.0
libtpu: 0.0.40
codegen_flags: <defaults>
</compile_context>

<pallas_src>
from functools import partial

import jax
import jax.numpy as jnp
from jax.experimental import pallas as pl
from jax.experimental.pallas import tpu as pltpu

LRELU_SLOPE = 0.2
RGB_PAD = 128  # lane-dense toRGB output width (first 3 columns are real RGB)


# ----------------------------------------------------------------------------
# The single fused generator kernel (one grid step == one sample)
# ----------------------------------------------------------------------------
def _generator_kernel(z_ref, mw1_ref, mb1_ref, mw2_ref, mb2_ref, wavg_ref,
                      affw_ref, affb_ref, const_ref, convw_ref, convb_ref,
                      rgbw_ref, rgbb_ref, out_ref, xp_ref,
                      *, C, resolutions, psi, pixel_min, pixel_max):
    # ---------------- mapping network (per sample) ----------------
    z = z_ref[0]                                               # (1, L) f32
    # pixel norm
    z = z * jax.lax.rsqrt(jnp.mean(z * z, axis=1, keepdims=True) + 1e-8)
    h = jnp.dot(z.astype(jnp.bfloat16), mw1_ref[...],
                preferred_element_type=jnp.float32) + mb1_ref[...]
    h = jnp.maximum(h, LRELU_SLOPE * h)
    wlat = jnp.dot(h.astype(jnp.bfloat16), mw2_ref[...],
                   preferred_element_type=jnp.float32) + mb2_ref[...]
    wlat = jnp.maximum(wlat, LRELU_SLOPE * wlat)
    # truncation trick: w_avg + psi * (w - w_avg)
    wlat = wavg_ref[...] + psi * (wlat - wavg_ref[...])
    # all per-layer style vectors with ONE matmul: (1, n_layers*C)
    styles = jnp.dot(wlat.astype(jnp.bfloat16), affw_ref[...],
                     preferred_element_type=jnp.float32) + affb_ref[...]

    # ---------------- synthesis network (VMEM resident) ----------------
    # Zero the padded scratch once per sample: layer interiors are nested
    # (4->8->16) and always overwrite the previously written region, so the
    # zero border stays valid for every layer of this sample.  (Scratch
    # persists across grid steps, so this zeroing is required per sample.)
    xp_ref[...] = jnp.zeros_like(xp_ref)

    x = const_ref[...]                                         # (4, 4, C) f32
    for i, res in enumerate(resolutions):
        if res != 4:
            # nearest-neighbour 2x upsample, entirely in VMEM/vregs
            h0, w0, _ = x.shape
            x = jnp.broadcast_to(x[:, None, :, :],
                                 (h0, 2, w0, C)).reshape(2 * h0, w0, C)
            x = jnp.broadcast_to(x[:, :, None, :],
                                 (2 * h0, w0, 2, C)).reshape(2 * h0, 2 * w0, C)
        H = W = res
        # style modulation on the activation (equivalent to weight modulation
        # here since there is no demodulation; also cheaper at these shapes)
        s = styles[:, i * C:(i + 1) * C].reshape(1, 1, C)
        xm = x * s
        # SAME zero padding: write the interior of the zeroed scratch
        xp_ref[1:H + 1, 1:W + 1, :] = xm
        # im2col: 9 shifted taps concatenated along channels -> one MXU dot
        patches = [
            xp_ref[ky:ky + H, kx:kx + W, :].reshape(H * W, C)
            for ky in range(3) for kx in range(3)
        ]
        im2col = jnp.concatenate(patches, axis=1).astype(jnp.bfloat16)  # (H*W, 9C)
        y = jnp.dot(im2col, convw_ref[i],
                    preferred_element_type=jnp.float32)        # (H*W, C) f32
        y = y + convb_ref[i]
        y = jnp.maximum(y, LRELU_SLOPE * y)                    # lrelu (f32)
        x = y.reshape(H, W, C)

    # ---------------- toRGB + tanh + output range mapping ----------------
    hw = resolutions[-1] * resolutions[-1]
    rgb = jnp.dot(x.reshape(hw, C).astype(jnp.bfloat16), rgbw_ref[...],
                  preferred_element_type=jnp.float32) + rgbb_ref[...]
    # pixel_min + (tanh(rgb)*0.5+0.5)*(pmax-pmin)  ==  a*tanh(rgb) + b
    a = 0.5 * (pixel_max - pixel_min)
    b = 0.5 * (pixel_max + pixel_min)
    out_ref[0] = a * jnp.tanh(rgb) + b


# ----------------------------------------------------------------------------
# Generator wrapper (parameter packing + single pallas_call)
# ----------------------------------------------------------------------------
class PretrainedGenerator:
    """Synthetic stand-in for the PyTorch PretrainedGenerator wrapper."""

    def __init__(self, latent_size=32, channels=32, img_res=16,
                 pixel_min=-1.0, pixel_max=1.0, truncation_psi=0.5,
                 param_seed=42):
        assert img_res >= 4 and (img_res & (img_res - 1)) == 0
        self.L = latent_size
        self.C = channels
        self.img_res = img_res
        self.pixel_min = float(pixel_min)
        self.pixel_max = float(pixel_max)
        self.psi = float(truncation_psi)

        self.resolutions = []
        res = 4
        while res <= img_res:
            self.resolutions.append(res)
            res *= 2
        nl = len(self.resolutions)

        # deterministic synthetic weights (no checkpoint load)
        key = jax.random.PRNGKey(param_seed)
        ks = list(jax.random.split(key, 32))
        nrm = lambda k, shp, fan: (jax.random.normal(k, shp, jnp.float32)
                                   / jnp.sqrt(jnp.float32(fan)))
        L, C = self.L, self.C
        p = {}
        # bf16 weights (MXU operands / halved DMA), f32 biases (f32 epilogue)
        p["map_w1"] = nrm(ks[0], (L, L), L).astype(jnp.bfloat16)
        p["map_b1"] = jnp.zeros((1, L), jnp.float32)
        p["map_w2"] = nrm(ks[1], (L, L), L).astype(jnp.bfloat16)
        p["map_b2"] = jnp.zeros((1, L), jnp.float32)
        p["w_avg"] = 0.1 * jax.random.normal(ks[2], (1, L), jnp.float32)
        p["const"] = jax.random.normal(ks[3], (4, 4, C), jnp.float32)

        aff_w, aff_b, conv_w, conv_b = [], [], [], []
        k = 4
        for _ in range(nl):
            aff_w.append(nrm(ks[k], (L, C), L)); k += 1
            aff_b.append(jnp.ones((C,), jnp.float32))        # style bias init 1
            w33 = nrm(ks[k], (3, 3, C, C), 9 * C); k += 1
            conv_w.append(w33.reshape(9 * C, C))             # im2col layout
            conv_b.append(jnp.zeros((1, C), jnp.float32))
        p["aff_w"] = jnp.concatenate(aff_w, axis=1).astype(jnp.bfloat16)  # (L, nl*C)
        p["aff_b"] = jnp.concatenate(aff_b)[None, :]                      # (1, nl*C)
        p["conv_w"] = jnp.stack(conv_w).astype(jnp.bfloat16)              # (nl, 9C, C)
        p["conv_b"] = jnp.stack(conv_b)                                   # (nl, 1, C)

        rgb_w = nrm(ks[k], (C, 3), C)
        p["rgb_w"] = jnp.pad(rgb_w, ((0, 0), (0, RGB_PAD - 3))).astype(jnp.bfloat16)
        p["rgb_b"] = jnp.zeros((1, RGB_PAD), jnp.float32)
        self.params = p

    def __call__(self, z):
        p = self.params
        B, L = z.shape
        assert L == self.L
        C = self.C
        nl = len(self.resolutions)
        H = W = self.img_res
        HW = H * W

        kernel = partial(_generator_kernel,
                         C=C, resolutions=tuple(self.resolutions),
                         psi=self.psi, pixel_min=self.pixel_min,
                         pixel_max=self.pixel_max)

        out = pl.pallas_call(
            kernel,
            out_shape=jax.ShapeDtypeStruct((B, HW, RGB_PAD), jnp.float32),
            grid=(B,),
            in_specs=[
                pl.BlockSpec((1, 1, L), lambda b: (b, 0, 0)),        # z
                pl.BlockSpec((L, L), lambda b: (0, 0)),              # map_w1
                pl.BlockSpec((1, L), lambda b: (0, 0)),              # map_b1
                pl.BlockSpec((L, L), lambda b: (0, 0)),              # map_w2
                pl.BlockSpec((1, L), lambda b: (0, 0)),              # map_b2
                pl.BlockSpec((1, L), lambda b: (0, 0)),              # w_avg
                pl.BlockSpec((L, nl * C), lambda b: (0, 0)),         # aff_w
                pl.BlockSpec((1, nl * C), lambda b: (0, 0)),         # aff_b
                pl.BlockSpec((4, 4, C), lambda b: (0, 0, 0)),        # const
                pl.BlockSpec((nl, 9 * C, C), lambda b: (0, 0, 0)),   # conv_w
                pl.BlockSpec((nl, 1, C), lambda b: (0, 0, 0)),       # conv_b
                pl.BlockSpec((C, RGB_PAD), lambda b: (0, 0)),        # rgb_w
                pl.BlockSpec((1, RGB_PAD), lambda b: (0, 0)),        # rgb_b
            ],
            out_specs=pl.BlockSpec((1, HW, RGB_PAD), lambda b: (b, 0, 0)),
            scratch_shapes=[pltpu.VMEM((H + 2, W + 2, C), jnp.float32)],
            compiler_params=pltpu.CompilerParams(
                dimension_semantics=("parallel",)),   # 2-way on v7x megacore
        )(z.reshape(B, 1, L).astype(jnp.float32),
          p["map_w1"], p["map_b1"], p["map_w2"], p["map_b2"], p["w_avg"],
          p["aff_w"], p["aff_b"], p["const"], p["conv_w"], p["conv_b"],
          p["rgb_w"], p["rgb_b"])

        # lane-dense kernel output -> slice real RGB, return NCHW like PyTorch
        img = out[:, :, :3].reshape(B, H, W, 3)
        return jnp.transpose(img, (0, 3, 1, 2))


# ----------------------------------------------------------------------------
if __name__ == "__main__":
    B, L = 2, 32
    key = jax.random.PRNGKey(0)
    z = jax.random.normal(key, (B, L), jnp.float32)   # latent input "x"

    gen = PretrainedGenerator(latent_size=L, channels=32, img_res=16,
                              pixel_min=-1.0, pixel_max=1.0,
                              truncation_psi=0.5)
    img = gen(z)
    img = jax.block_until_ready(img)

    assert img.shape == (B, 3, 16, 16), img.shape
    assert bool(jnp.all(jnp.isfinite(img)))
    assert float(jnp.min(img)) >= -1.0 - 1e-5 and float(jnp.max(img)) <= 1.0 + 1e-5
    print("KERNEL_OK")
</pallas_src>

<mosaic_0001>
module attributes {stable_mosaic.version = 11 : i64} {
  func.func @_generator_kernel(%arg0: i32, %arg1: memref<1x1x32xf32, #tpu.memory_space<vmem>>, %arg2: memref<32x32xbf16, #tpu.memory_space<vmem>>, %arg3: memref<1x32xf32, #tpu.memory_space<vmem>>, %arg4: memref<32x32xbf16, #tpu.memory_space<vmem>>, %arg5: memref<1x32xf32, #tpu.memory_space<vmem>>, %arg6: memref<1x32xf32, #tpu.memory_space<vmem>>, %arg7: memref<32x96xbf16, #tpu.memory_space<vmem>>, %arg8: memref<1x96xf32, #tpu.memory_space<vmem>>, %arg9: memref<4x4x32xf32, #tpu.memory_space<vmem>>, %arg10: memref<3x288x32xbf16, #tpu.memory_space<vmem>>, %arg11: memref<3x1x32xf32, #tpu.memory_space<vmem>>, %arg12: memref<32x128xbf16, #tpu.memory_space<vmem>>, %arg13: memref<1x128xf32, #tpu.memory_space<vmem>>, %arg14: memref<1x256x128xf32, #tpu.memory_space<vmem>>, %arg15: memref<18x18x32xf32, #tpu.memory_space<vmem>>) attributes {dimension_semantics = [#tpu.dimension_semantics<parallel>], iteration_bounds = array<i64: 2>, scalar_prefetch = 0 : i64, scratch_operands = 1 : i64, tpu.core_type = #tpu.core_type<tc>, window_params = [{transform_indices = @transform_0, window_bounds = array<i64: 1, 1, 32>}, {pipeline_mode = #tpu.pipeline_mode<synchronous>, transform_indices = @transform_1, window_bounds = array<i64: 32, 32>}, {pipeline_mode = #tpu.pipeline_mode<synchronous>, transform_indices = @transform_2, window_bounds = array<i64: 1, 32>}, {pipeline_mode = #tpu.pipeline_mode<synchronous>, transform_indices = @transform_3, window_bounds = array<i64: 32, 32>}, {pipeline_mode = #tpu.pipeline_mode<synchronous>, transform_indices = @transform_4, window_bounds = array<i64: 1, 32>}, {pipeline_mode = #tpu.pipeline_mode<synchronous>, transform_indices = @transform_5, window_bounds = array<i64: 1, 32>}, {pipeline_mode = #tpu.pipeline_mode<synchronous>, transform_indices = @transform_6, window_bounds = array<i64: 32, 96>}, {pipeline_mode = #tpu.pipeline_mode<synchronous>, transform_indices = @transform_7, window_bounds = array<i64: 1, 96>}, {pipeline_mode = #tpu.pipeline_mode<synchronous>, transform_indices = @transform_8, window_bounds = array<i64: 4, 4, 32>}, {pipeline_mode = #tpu.pipeline_mode<synchronous>, transform_indices = @transform_9, window_bounds = array<i64: 3, 288, 32>}, {pipeline_mode = #tpu.pipeline_mode<synchronous>, transform_indices = @transform_10, window_bounds = array<i64: 3, 1, 32>}, {pipeline_mode = #tpu.pipeline_mode<synchronous>, transform_indices = @transform_11, window_bounds = array<i64: 32, 128>}, {pipeline_mode = #tpu.pipeline_mode<synchronous>, transform_indices = @transform_12, window_bounds = array<i64: 1, 128>}, {transform_indices = @transform_13, window_bounds = array<i64: 1, 256, 128>}]} {
    %c0 = arith.constant 0 : index
    %c0_0 = arith.constant 0 : index
    %c0_1 = arith.constant 0 : index
    %0 = vector.load %arg1[%c0, %c0_0, %c0_1] : memref<1x1x32xf32, #tpu.memory_space<vmem>>, vector<1x1x32xf32>
    %1 = vector.shape_cast %0 : vector<1x1x32xf32> to vector<1x32xf32>
    %2 = arith.mulf %1, %1 : vector<1x32xf32>
    %cst = arith.constant dense<0.000000e+00> : vector<1xf32>
    %3 = vector.multi_reduction <add>, %2, %cst [1] : vector<1x32xf32> to vector<1xf32>
    %4 = vector.shape_cast %3 : vector<1xf32> to vector<1x1xf32>
    %cst_2 = arith.constant 3.200000e+01 : f32
    %5 = vector.broadcast %cst_2 : f32 to vector<1x1xf32>
    %6 = arith.divf %4, %5 : vector<1x1xf32>
    %cst_3 = arith.constant 9.99999993E-9 : f32
    %7 = vector.broadcast %cst_3 : f32 to vector<1x1xf32>
    %8 = arith.addf %6, %7 : vector<1x1xf32>
    %9 = math.rsqrt %8 : vector<1x1xf32>
    %10 = vector.broadcast %9 : vector<1x1xf32> to vector<1x32xf32>
    %11 = arith.mulf %1, %10 : vector<1x32xf32>
    %12 = arith.truncf %11 : vector<1x32xf32> to vector<1x32xbf16>
    %c0_4 = arith.constant 0 : index
    %c0_5 = arith.constant 0 : index
    %13 = vector.load %arg2[%c0_4, %c0_5] : memref<32x32xbf16, #tpu.memory_space<vmem>>, vector<32x32xbf16>
    %cst_6 = arith.constant dense<0.000000e+00> : vector<1x32xf32>
    %14 = tpu.matmul %12, %13, %cst_6 {dimension_numbers = #tpu.dot_dimension_numbers<[1], [0], [0], [1], [0, 0, 1, 1], [], []>} : vector<1x32xbf16>, vector<32x32xbf16>, vector<1x32xf32> -> vector<1x32xf32>
    %c0_7 = arith.constant 0 : index
    %c0_8 = arith.constant 0 : index
    %15 = vector.load %arg3[%c0_7, %c0_8] : memref<1x32xf32, #tpu.memory_space<vmem>>, vector<1x32xf32>
    %16 = arith.addf %14, %15 : vector<1x32xf32>
    %cst_9 = arith.constant 2.000000e-01 : f32
    %17 = vector.broadcast %cst_9 : f32 to vector<1x32xf32>
    %18 = arith.mulf %17, %16 : vector<1x32xf32>
    %19 = arith.maximumf %16, %18 : vector<1x32xf32>
    %20 = arith.truncf %19 : vector<1x32xf32> to vector<1x32xbf16>
    %c0_10 = arith.constant 0 : index
    %c0_11 = arith.constant 0 : index
    %21 = vector.load %arg4[%c0_10, %c0_11] : memref<32x32xbf16, #tpu.memory_space<vmem>>, vector<32x32xbf16>
    %cst_12 = arith.constant dense<0.000000e+00> : vector<1x32xf32>
    %22 = tpu.matmul %20, %21, %cst_12 {dimension_numbers = #tpu.dot_dimension_numbers<[1], [0], [0], [1], [0, 0, 1, 1], [], []>} : vector<1x32xbf16>, vector<32x32xbf16>, vector<1x32xf32> -> vector<1x32xf32>
    %c0_13 = arith.constant 0 : index
    %c0_14 = arith.constant 0 : index
    %23 = vector.load %arg5[%c0_13, %c0_14] : memref<1x32xf32, #tpu.memory_space<vmem>>, vector<1x32xf32>
    %24 = arith.addf %22, %23 : vector<1x32xf32>
    %cst_15 = arith.constant 2.000000e-01 : f32
    %25 = vector.broadcast %cst_15 : f32 to vector<1x32xf32>
    %26 = arith.mulf %25, %24 : vector<1x32xf32>
    %27 = arith.maximumf %24, %26 : vector<1x32xf32>
    %c0_16 = arith.constant 0 : index
    %c0_17 = arith.constant 0 : index
    %28 = vector.load %arg6[%c0_16, %c0_17] : memref<1x32xf32, #tpu.memory_space<vmem>>, vector<1x32xf32>
    %c0_18 = arith.constant 0 : index
    %c0_19 = arith.constant 0 : index
    %29 = vector.load %arg6[%c0_18, %c0_19] : memref<1x32xf32, #tpu.memory_space<vmem>>, vector<1x32xf32>
    %30 = arith.subf %27, %29 : vector<1x32xf32>
    %cst_20 = arith.constant 5.000000e-01 : f32
    %31 = vector.broadcast %cst_20 : f32 to vector<1x32xf32>
    %32 = arith.mulf %31, %30 : vector<1x32xf32>
    %33 = arith.addf %28, %32 : vector<1x32xf32>
    %34 = arith.truncf %33 : vector<1x32xf32> to vector<1x32xbf16>
    %c0_21 = arith.constant 0 : index
    %c0_22 = arith.constant 0 : index
    %35 = vector.load %arg7[%c0_21, %c0_22] : memref<32x96xbf16, #tpu.memory_space<vmem>>, vector<32x96xbf16>
    %cst_23 = arith.constant dense<0.000000e+00> : vector<1x96xf32>
    %36 = tpu.matmul %34, %35, %cst_23 {dimension_numbers = #tpu.dot_dimension_numbers<[1], [0], [0], [1], [0, 0, 1, 1], [], []>} : vector<1x32xbf16>, vector<32x96xbf16>, vector<1x96xf32> -> vector<1x96xf32>
    %c0_24 = arith.constant 0 : index
    %c0_25 = arith.constant 0 : index
    %37 = vector.load %arg8[%c0_24, %c0_25] : memref<1x96xf32, #tpu.memory_space<vmem>>, vector<1x96xf32>
    %38 = arith.addf %36, %37 : vector<1x96xf32>
    %cst_26 = arith.constant 0.000000e+00 : f32
    %39 = vector.broadcast %cst_26 : f32 to vector<18x18x32xf32>
    %c0_27 = arith.constant 0 : index
    %c0_28 = arith.constant 0 : index
    %c0_29 = arith.constant 0 : index
    %40 = vector.load %arg15[%c0_27, %c0_28, %c0_29] : memref<18x18x32xf32, #tpu.memory_space<vmem>>, vector<18x18x32xf32>
    tpu.vector_store %arg15[%c0_27, %c0_28, %c0_29], %39 {strides = array<i32>} : memref<18x18x32xf32, #tpu.memory_space<vmem>>, vector<18x18x32xf32>,
    %c0_30 = arith.constant 0 : index
    %c0_31 = arith.constant 0 : index
    %c0_32 = arith.constant 0 : index
    %41 = vector.load %arg9[%c0_30, %c0_31, %c0_32] : memref<4x4x32xf32, #tpu.memory_space<vmem>>, vector<4x4x32xf32>
    %42 = vector.extract_strided_slice %38 {offsets = [0, 0], sizes = [1, 32], strides = [1, 1]} : vector<1x96xf32> to vector<1x32xf32>
    %43 = vector.shape_cast %42 : vector<1x32xf32> to vector<1x1x32xf32>
    %44 = vector.broadcast %43 : vector<1x1x32xf32> to vector<4x4x32xf32>
    %45 = arith.mulf %41, %44 : vector<4x4x32xf32>
    %c1 = arith.constant 1 : index
    %c1_33 = arith.constant 1 : index
    %c0_34 = arith.constant 0 : index
    %46 = vector.load %arg15[%c1, %c1_33, %c0_34] : memref<18x18x32xf32, #tpu.memory_space<vmem>>, vector<4x4x32xf32>
    tpu.vector_store %arg15[%c1, %c1_33, %c0_34], %45 {strides = array<i32>} : memref<18x18x32xf32, #tpu.memory_space<vmem>>, vector<4x4x32xf32>,
    %c0_35 = arith.constant 0 : index
    %c0_36 = arith.constant 0 : index
    %c0_37 = arith.constant 0 : index
    %47 = vector.load %arg15[%c0_35, %c0_36, %c0_37] : memref<18x18x32xf32, #tpu.memory_space<vmem>>, vector<4x4x32xf32>
    %48 = vector.shape_cast %47 : vector<4x4x32xf32> to vector<16x32xf32>
    %c0_38 = arith.constant 0 : index
    %c1_39 = arith.constant 1 : index
    %c0_40 = arith.constant 0 : index
    %49 = vector.load %arg15[%c0_38, %c1_39, %c0_40] : memref<18x18x32xf32, #tpu.memory_space<vmem>>, vector<4x4x32xf32>
    %50 = vector.shape_cast %49 : vector<4x4x32xf32> to vector<16x32xf32>
    %c0_41 = arith.constant 0 : index
    %c2 = arith.constant 2 : index
    %c0_42 = arith.constant 0 : index
    %51 = vector.load %arg15[%c0_41, %c2, %c0_42] : memref<18x18x32xf32, #tpu.memory_space<vmem>>, vector<4x4x32xf32>
    %52 = vector.shape_cast %51 : vector<4x4x32xf32> to vector<16x32xf32>
    %c1_43 = arith.constant 1 : index
    %c0_44 = arith.constant 0 : index
    %c0_45 = arith.constant 0 : index
    %53 = vector.load %arg15[%c1_43, %c0_44, %c0_45] : memref<18x18x32xf32, #tpu.memory_space<vmem>>, vector<4x4x32xf32>
    %54 = vector.shape_cast %53 : vector<4x4x32xf32> to vector<16x32xf32>
    %c1_46 = arith.constant 1 : index
    %c1_47 = arith.constant 1 : index
    %c0_48 = arith.constant 0 : index
    %55 = vector.load %arg15[%c1_46, %c1_47, %c0_48] : memref<18x18x32xf32, #tpu.memory_space<vmem>>, vector<4x4x32xf32>
    %56 = vector.shape_cast %55 : vector<4x4x32xf32> to vector<16x32xf32>
    %c1_49 = arith.constant 1 : index
    %c2_50 = arith.constant 2 : index
    %c0_51 = arith.constant 0 : index
    %57 = vector.load %arg15[%c1_49, %c2_50, %c0_51] : memref<18x18x32xf32, #tpu.memory_space<vmem>>, vector<4x4x32xf32>
    %58 = vector.shape_cast %57 : vector<4x4x32xf32> to vector<16x32xf32>
    %c2_52 = arith.constant 2 : index
    %c0_53 = arith.constant 0 : index
    %c0_54 = arith.constant 0 : index
    %59 = vector.load %arg15[%c2_52, %c0_53, %c0_54] : memref<18x18x32xf32, #tpu.memory_space<vmem>>, vector<4x4x32xf32>
    %60 = vector.shape_cast %59 : vector<4x4x32xf32> to vector<16x32xf32>
    %c2_55 = arith.constant 2 : index
    %c1_56 = arith.constant 1 : index
    %c0_57 = arith.constant 0 : index
    %61 = vector.load %arg15[%c2_55, %c1_56, %c0_57] : memref<18x18x32xf32, #tpu.memory_space<vmem>>, vector<4x4x32xf32>
    %62 = vector.shape_cast %61 : vector<4x4x32xf32> to vector<16x32xf32>
    %c2_58 = arith.constant 2 : index
    %c2_59 = arith.constant 2 : index
    %c0_60 = arith.constant 0 : index
    %63 = vector.load %arg15[%c2_58, %c2_59, %c0_60] : memref<18x18x32xf32, #tpu.memory_space<vmem>>, vector<4x4x32xf32>
    %64 = vector.shape_cast %63 : vector<4x4x32xf32> to vector<16x32xf32>
    %65 = tpu.concatenate %48, %50, %52, %54, %56, %58, %60, %62, %64 in 1 : vector<16x32xf32>, vector<16x32xf32>, vector<16x32xf32>, vector<16x32xf32>, vector<16x32xf32>, vector<16x32xf32>, vector<16x32xf32>, vector<16x32xf32>, vector<16x32xf32> -> vector<16x288xf32>
    %66 = arith.truncf %65 : vector<16x288xf32> to vector<16x288xbf16>
    %c0_61 = arith.constant 0 : index
    %c0_62 = arith.constant 0 : index
    %c0_63 = arith.constant 0 : index
    %67 = vector.load %arg10[%c0_61, %c0_62, %c0_63] : memref<3x288x32xbf16, #tpu.memory_space<vmem>>, vector<1x288x32xbf16>
    %68 = vector.shape_cast %67 : vector<1x288x32xbf16> to vector<288x32xbf16>
    %cst_64 = arith.constant dense<0.000000e+00> : vector<16x32xf32>
    %69 = tpu.matmul %66, %68, %cst_64 {dimension_numbers = #tpu.dot_dimension_numbers<[1], [0], [0], [1], [0, 0, 1, 1], [], []>} : vector<16x288xbf16>, vector<288x32xbf16>, vector<16x32xf32> -> vector<16x32xf32>
    %c0_65 = arith.constant 0 : index
    %c0_66 = arith.constant 0 : index
    %c0_67 = arith.constant 0 : index
    %70 = vector.load %arg11[%c0_65, %c0_66, %c0_67] : memref<3x1x32xf32, #tpu.memory_space<vmem>>, vector<1x1x32xf32>
    %71 = vector.shape_cast %70 : vector<1x1x32xf32> to vector<1x32xf32>
    %72 = vector.broadcast %71 : vector<1x32xf32> to vector<16x32xf32>
    %73 = arith.addf %69, %72 : vector<16x32xf32>
    %cst_68 = arith.constant 2.000000e-01 : f32
    %74 = vector.broadcast %cst_68 : f32 to vector<16x32xf32>
    %75 = arith.mulf %74, %73 : vector<16x32xf32>
    %76 = arith.maximumf %73, %75 : vector<16x32xf32>
    %77 = vector.shape_cast %76 : vector<16x32xf32> to vector<4x4x32xf32>
    %78 = vector.shape_cast %77 : vector<4x4x32xf32> to vector<4x1x4x32xf32>
    %79 = vector.shape_cast %78 : vector<4x1x4x32xf32> to vector<4x1x4x32xf32>
    %80 = vector.broadcast %79 : vector<4x1x4x32xf32> to vector<4x2x4x32xf32>
    %81 = vector.shape_cast %80 : vector<4x2x4x32xf32> to vector<8x4x32xf32>
    %82 = vector.shape_cast %81 : vector<8x4x32xf32> to vector<8x4x1x32xf32>
    %83 = vector.shape_cast %82 : vector<8x4x1x32xf32> to vector<8x4x1x32xf32>
    %84 = vector.broadcast %83 : vector<8x4x1x32xf32> to vector<8x4x2x32xf32>
    %85 = vector.shape_cast %84 : vector<8x4x2x32xf32> to vector<8x8x32xf32>
    %86 = vector.extract_strided_slice %38 {offsets = [0, 32], sizes = [1, 32], strides = [1, 1]} : vector<1x96xf32> to vector<1x32xf32>
    %87 = vector.shape_cast %86 : vector<1x32xf32> to vector<1x1x32xf32>
    %88 = vector.broadcast %87 : vector<1x1x32xf32> to vector<8x8x32xf32>
    %89 = arith.mulf %85, %88 : vector<8x8x32xf32>
    %c1_69 = arith.constant 1 : index
    %c1_70 = arith.constant 1 : index
    %c0_71 = arith.constant 0 : index
    %90 = vector.load %arg15[%c1_69, %c1_70, %c0_71] : memref<18x18x32xf32, #tpu.memory_space<vmem>>, vector<8x8x32xf32>
    tpu.vector_store %arg15[%c1_69, %c1_70, %c0_71], %89 {strides = array<i32>} : memref<18x18x32xf32, #tpu.memory_space<vmem>>, vector<8x8x32xf32>,
    %c0_72 = arith.constant 0 : index
    %c0_73 = arith.constant 0 : index
    %c0_74 = arith.constant 0 : index
    %91 = vector.load %arg15[%c0_72, %c0_73, %c0_74] : memref<18x18x32xf32, #tpu.memory_space<vmem>>, vector<8x8x32xf32>
    %92 = vector.shape_cast %91 : vector<8x8x32xf32> to vector<64x32xf32>
    %c0_75 = arith.constant 0 : index
    %c1_76 = arith.constant 1 : index
    %c0_77 = arith.constant 0 : index
    %93 = vector.load %arg15[%c0_75, %c1_76, %c0_77] : memref<18x18x32xf32, #tpu.memory_space<vmem>>, vector<8x8x32xf32>
    %94 = vector.shape_cast %93 : vector<8x8x32xf32> to vector<64x32xf32>
    %c0_78 = arith.constant 0 : index
    %c2_79 = arith.constant 2 : index
    %c0_80 = arith.constant 0 : index
    %95 = vector.load %arg15[%c0_78, %c2_79, %c0_80] : memref<18x18x32xf32, #tpu.memory_space<vmem>>, vector<8x8x32xf32>
    %96 = vector.shape_cast %95 : vector<8x8x32xf32> to vector<64x32xf32>
    %c1_81 = arith.constant 1 : index
    %c0_82 = arith.constant 0 : index
    %c0_83 = arith.constant 0 : index
    %97 = vector.load %arg15[%c1_81, %c0_82, %c0_83] : memref<18x18x32xf32, #tpu.memory_space<vmem>>, vector<8x8x32xf32>
    %98 = vector.shape_cast %97 : vector<8x8x32xf32> to vector<64x32xf32>
    %c1_84 = arith.constant 1 : index
    %c1_85 = arith.constant 1 : index
    %c0_86 = arith.constant 0 : index
    %99 = vector.load %arg15[%c1_84, %c1_85, %c0_86] : memref<18x18x32xf32, #tpu.memory_space<vmem>>, vector<8x8x32xf32>
    %100 = vector.shape_cast %99 : vector<8x8x32xf32> to vector<64x32xf32>
    %c1_87 = arith.constant 1 : index
    %c2_88 = arith.constant 2 : index
    %c0_89 = arith.constant 0 : index
    %101 = vector.load %arg15[%c1_87, %c2_88, %c0_89] : memref<18x18x32xf32, #tpu.memory_space<vmem>>, vector<8x8x32xf32>
    %102 = vector.shape_cast %101 : vector<8x8x32xf32> to vector<64x32xf32>
    %c2_90 = arith.constant 2 : index
    %c0_91 = arith.constant 0 : index
    %c0_92 = arith.constant 0 : index
    %103 = vector.load %arg15[%c2_90, %c0_91, %c0_92] : memref<18x18x32xf32, #tpu.memory_space<vmem>>, vector<8x8x32xf32>
    %104 = vector.shape_cast %103 : vector<8x8x32xf32> to vector<64x32xf32>
    %c2_93 = arith.constant 2 : index
    %c1_94 = arith.constant 1 : index
    %c0_95 = arith.constant 0 : index
    %105 = vector.load %arg15[%c2_93, %c1_94, %c0_95] : memref<18x18x32xf32, #tpu.memory_space<vmem>>, vector<8x8x32xf32>
    %106 = vector.shape_cast %105 : vector<8x8x32xf32> to vector<64x32xf32>
    %c2_96 = arith.constant 2 : index
    %c2_97 = arith.constant 2 : index
    %c0_98 = arith.constant 0 : index
    %107 = vector.load %arg15[%c2_96, %c2_97, %c0_98] : memref<18x18x32xf32, #tpu.memory_space<vmem>>, vector<8x8x32xf32>
    %108 = vector.shape_cast %107 : vector<8x8x32xf32> to vector<64x32xf32>
    %109 = tpu.concatenate %92, %94, %96, %98, %100, %102, %104, %106, %108 in 1 : vector<64x32xf32>, vector<64x32xf32>, vector<64x32xf32>, vector<64x32xf32>, vector<64x32xf32>, vector<64x32xf32>, vector<64x32xf32>, vector<64x32xf32>, vector<64x32xf32> -> vector<64x288xf32>
    %110 = arith.truncf %109 : vector<64x288xf32> to vector<64x288xbf16>
    %c1_99 = arith.constant 1 : index
    %c0_100 = arith.constant 0 : index
    %c0_101 = arith.constant 0 : index
    %111 = vector.load %arg10[%c1_99, %c0_100, %c0_101] : memref<3x288x32xbf16, #tpu.memory_space<vmem>>, vector<1x288x32xbf16>
    %112 = vector.shape_cast %111 : vector<1x288x32xbf16> to vector<288x32xbf16>
    %cst_102 = arith.constant dense<0.000000e+00> : vector<64x32xf32>
    %113 = tpu.matmul %110, %112, %cst_102 {dimension_numbers = #tpu.dot_dimension_numbers<[1], [0], [0], [1], [0, 0, 1, 1], [], []>} : vector<64x288xbf16>, vector<288x32xbf16>, vector<64x32xf32> -> vector<64x32xf32>
    %c1_103 = arith.constant 1 : index
    %c0_104 = arith.constant 0 : index
    %c0_105 = arith.constant 0 : index
    %114 = vector.load %arg11[%c1_103, %c0_104, %c0_105] : memref<3x1x32xf32, #tpu.memory_space<vmem>>, vector<1x1x32xf32>
    %115 = vector.shape_cast %114 : vector<1x1x32xf32> to vector<1x32xf32>
    %116 = vector.broadcast %115 : vector<1x32xf32> to vector<64x32xf32>
    %117 = arith.addf %113, %116 : vector<64x32xf32>
    %cst_106 = arith.constant 2.000000e-01 : f32
    %118 = vector.broadcast %cst_106 : f32 to vector<64x32xf32>
    %119 = arith.mulf %118, %117 : vector<64x32xf32>
    %120 = arith.maximumf %117, %119 : vector<64x32xf32>
    %121 = vector.shape_cast %120 : vector<64x32xf32> to vector<8x8x32xf32>
    %122 = vector.shape_cast %121 : vector<8x8x32xf32> to vector<8x1x8x32xf32>
    %123 = vector.shape_cast %122 : vector<8x1x8x32xf32> to vector<8x1x8x32xf32>
    %124 = vector.broadcast %123 : vector<8x1x8x32xf32> to vector<8x2x8x32xf32>
    %125 = vector.shape_cast %124 : vector<8x2x8x32xf32> to vector<16x8x32xf32>
    %126 = vector.shape_cast %125 : vector<16x8x32xf32> to vector<16x8x1x32xf32>
    %127 = vector.shape_cast %126 : vector<16x8x1x32xf32> to vector<16x8x1x32xf32>
    %128 = vector.broadcast %127 : vector<16x8x1x32xf32> to vector<16x8x2x32xf32>
    %129 = vector.shape_cast %128 : vector<16x8x2x32xf32> to vector<16x16x32xf32>
    %130 = vector.extract_strided_slice %38 {offsets = [0, 64], sizes = [1, 32], strides = [1, 1]} : vector<1x96xf32> to vector<1x32xf32>
    %131 = vector.shape_cast %130 : vector<1x32xf32> to vector<1x1x32xf32>
    %132 = vector.broadcast %131 : vector<1x1x32xf32> to vector<16x16x32xf32>
    %133 = arith.mulf %129, %132 : vector<16x16x32xf32>
    %c1_107 = arith.constant 1 : index
    %c1_108 = arith.constant 1 : index
    %c0_109 = arith.constant 0 : index
    %134 = vector.load %arg15[%c1_107, %c1_108, %c0_109] : memref<18x18x32xf32, #tpu.memory_space<vmem>>, vector<16x16x32xf32>
    tpu.vector_store %arg15[%c1_107, %c1_108, %c0_109], %133 {strides = array<i32>} : memref<18x18x32xf32, #tpu.memory_space<vmem>>, vector<16x16x32xf32>,
    %c0_110 = arith.constant 0 : index
    %c0_111 = arith.constant 0 : index
    %c0_112 = arith.constant 0 : index
    %135 = vector.load %arg15[%c0_110, %c0_111, %c0_112] : memref<18x18x32xf32, #tpu.memory_space<vmem>>, vector<16x16x32xf32>
    %136 = vector.shape_cast %135 : vector<16x16x32xf32> to vector<256x32xf32>
    %c0_113 = arith.constant 0 : index
    %c1_114 = arith.constant 1 : index
    %c0_115 = arith.constant 0 : index
    %137 = vector.load %arg15[%c0_113, %c1_114, %c0_115] : memref<18x18x32xf32, #tpu.memory_space<vmem>>, vector<16x16x32xf32>
    %138 = vector.shape_cast %137 : vector<16x16x32xf32> to vector<256x32xf32>
    %c0_116 = arith.constant 0 : index
    %c2_117 = arith.constant 2 : index
    %c0_118 = arith.constant 0 : index
    %139 = vector.load %arg15[%c0_116, %c2_117, %c0_118] : memref<18x18x32xf32, #tpu.memory_space<vmem>>, vector<16x16x32xf32>
    %140 = vector.shape_cast %139 : vector<16x16x32xf32> to vector<256x32xf32>
    %c1_119 = arith.constant 1 : index
    %c0_120 = arith.constant 0 : index
    %c0_121 = arith.constant 0 : index
    %141 = vector.load %arg15[%c1_119, %c0_120, %c0_121] : memref<18x18x32xf32, #tpu.memory_space<vmem>>, vector<16x16x32xf32>
    %142 = vector.shape_cast %141 : vector<16x16x32xf32> to vector<256x32xf32>
    %c1_122 = arith.constant 1 : index
    %c1_123 = arith.constant 1 : index
    %c0_124 = arith.constant 0 : index
    %143 = vector.load %arg15[%c1_122, %c1_123, %c0_124] : memref<18x18x32xf32, #tpu.memory_space<vmem>>, vector<16x16x32xf32>
    %144 = vector.shape_cast %143 : vector<16x16x32xf32> to vector<256x32xf32>
    %c1_125 = arith.constant 1 : index
    %c2_126 = arith.constant 2 : index
    %c0_127 = arith.constant 0 : index
    %145 = vector.load %arg15[%c1_125, %c2_126, %c0_127] : memref<18x18x32xf32, #tpu.memory_space<vmem>>, vector<16x16x32xf32>
    %146 = vector.shape_cast %145 : vector<16x16x32xf32> to vector<256x32xf32>
    %c2_128 = arith.constant 2 : index
    %c0_129 = arith.constant 0 : index
    %c0_130 = arith.constant 0 : index
    %147 = vector.load %arg15[%c2_128, %c0_129, %c0_130] : memref<18x18x32xf32, #tpu.memory_space<vmem>>, vector<16x16x32xf32>
    %148 = vector.shape_cast %147 : vector<16x16x32xf32> to vector<256x32xf32>
    %c2_131 = arith.constant 2 : index
    %c1_132 = arith.constant 1 : index
    %c0_133 = arith.constant 0 : index
    %149 = vector.load %arg15[%c2_131, %c1_132, %c0_133] : memref<18x18x32xf32, #tpu.memory_space<vmem>>, vector<16x16x32xf32>
    %150 = vector.shape_cast %149 : vector<16x16x32xf32> to vector<256x32xf32>
    %c2_134 = arith.constant 2 : index
    %c2_135 = arith.constant 2 : index
    %c0_136 = arith.constant 0 : index
    %151 = vector.load %arg15[%c2_134, %c2_135, %c0_136] : memref<18x18x32xf32, #tpu.memory_space<vmem>>, vector<16x16x32xf32>
    %152 = vector.shape_cast %151 : vector<16x16x32xf32> to vector<256x32xf32>
    %153 = tpu.concatenate %136, %138, %140, %142, %144, %146, %148, %150, %152 in 1 : vector<256x32xf32>, vector<256x32xf32>, vector<256x32xf32>, vector<256x32xf32>, vector<256x32xf32>, vector<256x32xf32>, vector<256x32xf32>, vector<256x32xf32>, vector<256x32xf32> -> vector<256x288xf32>
    %154 = arith.truncf %153 : vector<256x288xf32> to vector<256x288xbf16>
    %c2_137 = arith.constant 2 : index
    %c0_138 = arith.constant 0 : index
    %c0_139 = arith.constant 0 : index
    %155 = vector.load %arg10[%c2_137, %c0_138, %c0_139] : memref<3x288x32xbf16, #tpu.memory_space<vmem>>, vector<1x288x32xbf16>
    %156 = vector.shape_cast %155 : vector<1x288x32xbf16> to vector<288x32xbf16>
    %cst_140 = arith.constant dense<0.000000e+00> : vector<256x32xf32>
    %157 = tpu.matmul %154, %156, %cst_140 {dimension_numbers = #tpu.dot_dimension_numbers<[1], [0], [0], [1], [0, 0, 1, 1], [], []>} : vector<256x288xbf16>, vector<288x32xbf16>, vector<256x32xf32> -> vector<256x32xf32>
    %c2_141 = arith.constant 2 : index
    %c0_142 = arith.constant 0 : index
    %c0_143 = arith.constant 0 : index
    %158 = vector.load %arg11[%c2_141, %c0_142, %c0_143] : memref<3x1x32xf32, #tpu.memory_space<vmem>>, vector<1x1x32xf32>
    %159 = vector.shape_cast %158 : vector<1x1x32xf32> to vector<1x32xf32>
    %160 = vector.broadcast %159 : vector<1x32xf32> to vector<256x32xf32>
    %161 = arith.addf %157, %160 : vector<256x32xf32>
    %cst_144 = arith.constant 2.000000e-01 : f32
    %162 = vector.broadcast %cst_144 : f32 to vector<256x32xf32>
    %163 = arith.mulf %162, %161 : vector<256x32xf32>
    %164 = arith.maximumf %161, %163 : vector<256x32xf32>
    %165 = vector.shape_cast %164 : vector<256x32xf32> to vector<16x16x32xf32>
    %166 = vector.shape_cast %165 : vector<16x16x32xf32> to vector<256x32xf32>
    %167 = arith.truncf %166 : vector<256x32xf32> to vector<256x32xbf16>
    %c0_145 = arith.constant 0 : index
    %c0_146 = arith.constant 0 : index
    %168 = vector.load %arg12[%c0_145, %c0_146] : memref<32x128xbf16, #tpu.memory_space<vmem>>, vector<32x128xbf16>
    %cst_147 = arith.constant dense<0.000000e+00> : vector<256x128xf32>
    %169 = tpu.matmul %167, %168, %cst_147 {dimension_numbers = #tpu.dot_dimension_numbers<[1], [0], [0], [1], [0, 0, 1, 1], [], []>} : vector<256x32xbf16>, vector<32x128xbf16>, vector<256x128xf32> -> vector<256x128xf32>
    %c0_148 = arith.constant 0 : index
    %c0_149 = arith.constant 0 : index
    %170 = vector.load %arg13[%c0_148, %c0_149] : memref<1x128xf32, #tpu.memory_space<vmem>>, vector<1x128xf32>
    %171 = vector.broadcast %170 : vector<1x128xf32> to vector<256x128xf32>
    %172 = arith.addf %169, %171 : vector<256x128xf32>
    %173 = math.tanh %172 : vector<256x128xf32>
    %cst_150 = arith.constant 1.000000e+00 : f32
    %174 = vector.broadcast %cst_150 : f32 to vector<256x128xf32>
    %175 = arith.mulf %174, %173 : vector<256x128xf32>
    %cst_151 = arith.constant 0.000000e+00 : f32
    %176 = vector.broadcast %cst_151 : f32 to vector<256x128xf32>
    %177 = arith.addf %175, %176 : vector<256x128xf32>
    %c0_152 = arith.constant 0 : index
    %c0_153 = arith.constant 0 : index
    %c0_154 = arith.constant 0 : index
    %178 = vector.load %arg14[%c0_152, %c0_153, %c0_154] : memref<1x256x128xf32, #tpu.memory_space<vmem>>, vector<1x256x128xf32>
    %179 = vector.shape_cast %178 : vector<1x256x128xf32> to vector<256x128xf32>
    %180 = vector.shape_cast %177 : vector<256x128xf32> to vector<1x256x128xf32>
    tpu.vector_store %arg14[%c0_152, %c0_153, %c0_154], %180 {strides = array<i32>} : memref<1x256x128xf32, #tpu.memory_space<vmem>>, vector<1x256x128xf32>,
    return
  }
  func.func @transform_0(%arg0: i32) -> (i32, i32, i32) {
    %c0_i32 = arith.constant 0 : i32
    %c0_i32_0 = arith.constant 0 : i32
    %c0_i32_1 = arith.constant 0 : i32
    return %arg0, %c0_i32, %c0_i32_0 : i32, i32, i32
  }
  func.func @transform_1(%arg0: i32) -> (i32, i32) {
    %c0_i32 = arith.constant 0 : i32
    %c0_i32_0 = arith.constant 0 : i32
    %c0_i32_1 = arith.constant 0 : i32
    return %c0_i32, %c0_i32_0 : i32, i32
  }
  func.func @transform_2(%arg0: i32) -> (i32, i32) {
    %c0_i32 = arith.constant 0 : i32
    %c0_i32_0 = arith.constant 0 : i32
    %c0_i32_1 = arith.constant 0 : i32
    return %c0_i32, %c0_i32_0 : i32, i32
  }
  func.func @transform_3(%arg0: i32) -> (i32, i32) {
    %c0_i32 = arith.constant 0 : i32
    %c0_i32_0 = arith.constant 0 : i32
    %c0_i32_1 = arith.constant 0 : i32
    return %c0_i32, %c0_i32_0 : i32, i32
  }
  func.func @transform_4(%arg0: i32) -> (i32, i32) {
    %c0_i32 = arith.constant 0 : i32
    %c0_i32_0 = arith.constant 0 : i32
    %c0_i32_1 = arith.constant 0 : i32
    return %c0_i32, %c0_i32_0 : i32, i32
  }
  func.func @transform_5(%arg0: i32) -> (i32, i32) {
    %c0_i32 = arith.constant 0 : i32
    %c0_i32_0 = arith.constant 0 : i32
    %c0_i32_1 = arith.constant 0 : i32
    return %c0_i32, %c0_i32_0 : i32, i32
  }
  func.func @transform_6(%arg0: i32) -> (i32, i32) {
    %c0_i32 = arith.constant 0 : i32
    %c0_i32_0 = arith.constant 0 : i32
    %c0_i32_1 = arith.constant 0 : i32
    return %c0_i32, %c0_i32_0 : i32, i32
  }
  func.func @transform_7(%arg0: i32) -> (i32, i32) {
    %c0_i32 = arith.constant 0 : i32
    %c0_i32_0 = arith.constant 0 : i32
    %c0_i32_1 = arith.constant 0 : i32
    return %c0_i32, %c0_i32_0 : i32, i32
  }
  func.func @transform_8(%arg0: i32) -> (i32, i32, i32) {
    %c0_i32 = arith.constant 0 : i32
    %c0_i32_0 = arith.constant 0 : i32
    %c0_i32_1 = arith.constant 0 : i32
    %c0_i32_2 = arith.constant 0 : i32
    return %c0_i32, %c0_i32_0, %c0_i32_1 : i32, i32, i32
  }
  func.func @transform_9(%arg0: i32) -> (i32, i32, i32) {
    %c0_i32 = arith.constant 0 : i32
    %c0_i32_0 = arith.constant 0 : i32
    %c0_i32_1 = arith.constant 0 : i32
    %c0_i32_2 = arith.constant 0 : i32
    return %c0_i32, %c0_i32_0, %c0_i32_1 : i32, i32, i32
  }
  func.func @transform_10(%arg0: i32) -> (i32, i32, i32) {
    %c0_i32 = arith.constant 0 : i32
    %c0_i32_0 = arith.constant 0 : i32
    %c0_i32_1 = arith.constant 0 : i32
    %c0_i32_2 = arith.constant 0 : i32
    return %c0_i32, %c0_i32_0, %c0_i32_1 : i32, i32, i32
  }
  func.func @transform_11(%arg0: i32) -> (i32, i32) {
    %c0_i32 = arith.constant 0 : i32
    %c0_i32_0 = arith.constant 0 : i32
    %c0_i32_1 = arith.constant 0 : i32
    return %c0_i32, %c0_i32_0 : i32, i32
  }
  func.func @transform_12(%arg0: i32) -> (i32, i32) {
    %c0_i32 = arith.constant 0 : i32
    %c0_i32_0 = arith.constant 0 : i32
    %c0_i32_1 = arith.constant 0 : i32
    return %c0_i32, %c0_i32_0 : i32, i32
  }
  func.func @transform_13(%arg0: i32) -> (i32, i32, i32) {
    %c0_i32 = arith.constant 0 : i32
    %c0_i32_0 = arith.constant 0 : i32
    %c0_i32_1 = arith.constant 0 : i32
    return %arg0, %c0_i32, %c0_i32_0 : i32, i32, i32
  }
}

</mosaic_0001>

<llo_original>
// kernel: tpu_custom_call.1
$region0: #{tpu_custom_call.1}
  #allocation0 [shape = 'u32[]', space=smem, size = 0x4, offset = 0x4, fixed_abs, tag = 'smem constant byte address 0x4 - core index']
  #allocation1 [shape = 'u32[144,128]{1,0:T(1,128)}', space=vmem, size = 0x12000, scoped, tag = 'internal scratch']
  #allocation2 [shape = 'f32[18,18,32]{2,1,0:T(8,128)}', space=vmem, size = 0x36000, scoped, tag = 'scratch operand']
  %s0 = inlined_call_operand.vmem [shape: f32[2,1,32], index: 0, kind: input, shape index: {}]
  %s1 = inlined_call_operand.vmem [shape: bf16[32,32], index: 1, kind: input, shape index: {}]
  %s2 = inlined_call_operand.vmem [shape: f32[1,32], index: 2, kind: input, shape index: {}]
  %s3 = inlined_call_operand.vmem [shape: bf16[32,32], index: 3, kind: input, shape index: {}]
  %s4 = inlined_call_operand.vmem [shape: f32[1,32], index: 4, kind: input, shape index: {}]
  %s5 = inlined_call_operand.vmem [shape: f32[1,32], index: 5, kind: input, shape index: {}]
  %s6 = inlined_call_operand.vmem [shape: bf16[32,96], index: 6, kind: input, shape index: {}]
  %s7 = inlined_call_operand.vmem [shape: f32[1,96], index: 7, kind: input, shape index: {}]
  %s8 = inlined_call_operand.vmem [shape: f32[4,4,32], index: 8, kind: input, shape index: {}]
  %s9 = inlined_call_operand.vmem [shape: bf16[3,288,32], index: 9, kind: input, shape index: {}]
  %s10 = inlined_call_operand.vmem [shape: f32[3,1,32], index: 10, kind: input, shape index: {}]
  %s11 = inlined_call_operand.vmem [shape: bf16[32,128], index: 11, kind: input, shape index: {}]
  %s12 = inlined_call_operand.vmem [shape: f32[1,128], index: 12, kind: input, shape index: {}]
  %s13 = inlined_call_operand.hbm [shape: f32[2,256,128], index: 13, kind: output, shape index: {}]
  %s14 = sld [smem:[#allocation0]]
  $region85: #{tpu_custom_call.1} parent=0
    _
  %s16 = ssub.s32 1, %s14
  %s17 = scalar_select 0, %s16, %s14
  $region1: #{tpu_custom_call.1} parent=0
    #allocation3 [shape = 'u8[262144]{0}', space=vmem, size = 0x40000, scoped, tag = 'output window, operand 0']
    #allocation4 [shape = 's32[2]{0}', space=sflag, size = 0x8, scoped, tag = 'scoped memory for tpu_custom_call.1']
    %18 = vsyncpa [#allocation4], 0
    %s19 = scalar_lea.sflag [#allocation4], 1
    %20 = vsyncpa %s19, 0
    loop: start=0, step=1, limit=4
    $region2: #{tpu_custom_call.1} parent=1 // loop_pre_header
      _
    $region3: #{tpu_custom_call.1} parent=1 // loop_header
      %s22 = sphi 0, %s26
      %p23 = scmp.ge.s32.totalorder %s22, 4
      %s32 = sphi 0, %s34
      %s35 = sphi 0, %s32
      %s36 = sphi 0, %s35
      %s52 = sphi 0, %s36
      %s56 = sphi 0, %s56
      %s58 = sphi 0, %s56
      %s59 = sphi 0, %s58
      %s73 = sphi 0, %s59
      %s77 = sphi 0, %s77
      %s79 = sphi 0, %s77
      %s80 = sphi 0, %s79
      %s94 = sphi 0, %s80
      %s98 = sphi 0, %s98
      %s100 = sphi 0, %s98
      %s101 = sphi 0, %s100
      %s115 = sphi 0, %s101
      %s119 = sphi 0, %s119
      %s121 = sphi 0, %s119
      %s122 = sphi 0, %s121
      %s136 = sphi 0, %s122
      %s140 = sphi 0, %s140
      %s142 = sphi 0, %s140
      %s143 = sphi 0, %s142
      %s157 = sphi 0, %s143
      %s161 = sphi 0, %s161
      %s163 = sphi 0, %s161
      %s164 = sphi 0, %s163
      %s178 = sphi 0, %s164
      %s182 = sphi 0, %s182
      %s184 = sphi 0, %s182
      %s185 = sphi 0, %s184
      %s199 = sphi 0, %s185
      %s203 = sphi 0, %s203
      %s205 = sphi 0, %s203
      %s206 = sphi 0, %s205
      %s220 = sphi 0, %s206
      %s224 = sphi 0, %s224
      %s226 = sphi 0, %s224
      %s227 = sphi 0, %s226
      %s241 = sphi 0, %s227
      %s245 = sphi 0, %s245
      %s247 = sphi 0, %s245
      %s248 = sphi 0, %s247
      %s262 = sphi 0, %s248
      %s266 = sphi 0, %s266
      %s268 = sphi 0, %s266
      %s269 = sphi 0, %s268
      %s283 = sphi 0, %s269
      %s287 = sphi 0, %s287
      %s289 = sphi 0, %s287
      %s290 = sphi 0, %s289
      %s304 = sphi 0, %s290
      %s310 = sphi 0, %s312
      %s313 = sphi 0, %s310
      %s314 = sphi 0, %s313
      %s330 = sphi 0, %s314
    $region4: #{tpu_custom_call.1} parent=1 // loop_header_branch
      %25 = sbr.rel (%p23) target = $region8
    $region5: #{tpu_custom_call.1} parent=1 // loop_body
      %s27 = ssub.s32 %s22, 1
      %s28 = ssub.s32 %s22, 2
      %s29 = sadd.s32 %s22, 1
      %s30 = ssub.s32 %s22, %s29
      %p31 = scmp.eq.s32.totalorder %s30, 0
      %s33 = sadd.s32 %s32, 1
      %s34 = scalar_select %p31, %s32, %s33
      %p37 = pneg %p31
      %p38 = scmp.eq.s32.totalorder %s22, 1
      %p39 = por %p37, %p38
      %p40 = scmp.ne.s32.totalorder %s32, %s35
      %p41 = scmp.eq.s32.totalorder %s22, 0
      %p42 = por %p40, %p41
      %p43 = scmp.ne.s32.totalorder %s32, %s35
      %p44 = scmp.eq.s32.totalorder %s27, 1
      %p45 = por %p43, %p44
      %p46 = scmp.ne.s32.totalorder %s35, %s36
      %p47 = scmp.eq.s32.totalorder %s27, 0
      %p48 = por %p46, %p47
      %p49 = scmp.ne.s32.totalorder %s35, %s36
      %p50 = scmp.eq.s32.totalorder %s28, 1
      %p51 = por %p49, %p50
      %p53 = scmp.ne.s32.totalorder %s36, %s52
      %p54 = scmp.eq.s32.totalorder %s28, 0
      %p55 = por %p53, %p54
      %s57 = sadd.s32 %s56, 1
      %p60 = scmp.eq.s32.totalorder %s22, 1
      %p61 = scmp.ne.s32.totalorder %s56, %s58
      %p62 = scmp.eq.s32.totalorder %s22, 0
      %p63 = por %p61, %p62
      %p64 = scmp.ne.s32.totalorder %s56, %s58
      %p65 = scmp.eq.s32.totalorder %s27, 1
      %p66 = por %p64, %p65
      %p67 = scmp.ne.s32.totalorder %s58, %s59
      %p68 = scmp.eq.s32.totalorder %s27, 0
      %p69 = por %p67, %p68
      %p70 = scmp.ne.s32.totalorder %s58, %s59
      %p71 = scmp.eq.s32.totalorder %s28, 1
      %p72 = por %p70, %p71
      %p74 = scmp.ne.s32.totalorder %s59, %s73
      %p75 = scmp.eq.s32.totalorder %s28, 0
      %p76 = por %p74, %p75
      %s78 = sadd.s32 %s77, 1
      %p81 = scmp.eq.s32.totalorder %s22, 1
      %p82 = scmp.ne.s32.totalorder %s77, %s79
      %p83 = scmp.eq.s32.totalorder %s22, 0
      %p84 = por %p82, %p83
      %p85 = scmp.ne.s32.totalorder %s77, %s79
      %p86 = scmp.eq.s32.totalorder %s27, 1
      %p87 = por %p85, %p86
      %p88 = scmp.ne.s32.totalorder %s79, %s80
      %p89 = scmp.eq.s32.totalorder %s27, 0
      %p90 = por %p88, %p89
      %p91 = scmp.ne.s32.totalorder %s79, %s80
      %p92 = scmp.eq.s32.totalorder %s28, 1
      %p93 = por %p91, %p92
      %p95 = scmp.ne.s32.totalorder %s80, %s94
      %p96 = scmp.eq.s32.totalorder %s28, 0
      %p97 = por %p95, %p96
      %s99 = sadd.s32 %s98, 1
      %p102 = scmp.eq.s32.totalorder %s22, 1
      %p103 = scmp.ne.s32.totalorder %s98, %s100
      %p104 = scmp.eq.s32.totalorder %s22, 0
      %p105 = por %p103, %p104
      %p106 = scmp.ne.s32.totalorder %s98, %s100
      %p107 = scmp.eq.s32.totalorder %s27, 1
      %p108 = por %p106, %p107
      %p109 = scmp.ne.s32.totalorder %s100, %s101
      %p110 = scmp.eq.s32.totalorder %s27, 0
      %p111 = por %p109, %p110
      %p112 = scmp.ne.s32.totalorder %s100, %s101
      %p113 = scmp.eq.s32.totalorder %s28, 1
      %p114 = por %p112, %p113
      %p116 = scmp.ne.s32.totalorder %s101, %s115
      %p117 = scmp.eq.s32.totalorder %s28, 0
      %p118 = por %p116, %p117
      %s120 = sadd.s32 %s119, 1
      %p123 = scmp.eq.s32.totalorder %s22, 1
      %p124 = scmp.ne.s32.totalorder %s119, %s121
      %p125 = scmp.eq.s32.totalorder %s22, 0
      %p126 = por %p124, %p125
      %p127 = scmp.ne.s32.totalorder %s119, %s121
      %p128 = scmp.eq.s32.totalorder %s27, 1
      %p129 = por %p127, %p128
      %p130 = scmp.ne.s32.totalorder %s121, %s122
      %p131 = scmp.eq.s32.totalorder %s27, 0
      %p132 = por %p130, %p131
      %p133 = scmp.ne.s32.totalorder %s121, %s122
      %p134 = scmp.eq.s32.totalorder %s28, 1
      %p135 = por %p133, %p134
      %p137 = scmp.ne.s32.totalorder %s122, %s136
      %p138 = scmp.eq.s32.totalorder %s28, 0
      %p139 = por %p137, %p138
      %s141 = sadd.s32 %s140, 1
      %p144 = scmp.eq.s32.totalorder %s22, 1
      %p145 = scmp.ne.s32.totalorder %s140, %s142
      %p146 = scmp.eq.s32.totalorder %s22, 0
      %p147 = por %p145, %p146
      %p148 = scmp.ne.s32.totalorder %s140, %s142
      %p149 = scmp.eq.s32.totalorder %s27, 1
      %p150 = por %p148, %p149
      %p151 = scmp.ne.s32.totalorder %s142, %s143
      %p152 = scmp.eq.s32.totalorder %s27, 0
      %p153 = por %p151, %p152
      %p154 = scmp.ne.s32.totalorder %s142, %s143
      %p155 = scmp.eq.s32.totalorder %s28, 1
      %p156 = por %p154, %p155
      %p158 = scmp.ne.s32.totalorder %s143, %s157
      %p159 = scmp.eq.s32.totalorder %s28, 0
      %p160 = por %p158, %p159
      %s162 = sadd.s32 %s161, 1
      %p165 = scmp.eq.s32.totalorder %s22, 1
      %p166 = scmp.ne.s32.totalorder %s161, %s163
      %p167 = scmp.eq.s32.totalorder %s22, 0
      %p168 = por %p166, %p167
      %p169 = scmp.ne.s32.totalorder %s161, %s163
      %p170 = scmp.eq.s32.totalorder %s27, 1
      %p171 = por %p169, %p170
      %p172 = scmp.ne.s32.totalorder %s163, %s164
      %p173 = scmp.eq.s32.totalorder %s27, 0
      %p174 = por %p172, %p173
      %p175 = scmp.ne.s32.totalorder %s163, %s164
      %p176 = scmp.eq.s32.totalorder %s28, 1
      %p177 = por %p175, %p176
      %p179 = scmp.ne.s32.totalorder %s164, %s178
      %p180 = scmp.eq.s32.totalorder %s28, 0
      %p181 = por %p179, %p180
      %s183 = sadd.s32 %s182, 1
      %p186 = scmp.eq.s32.totalorder %s22, 1
      %p187 = scmp.ne.s32.totalorder %s182, %s184
      %p188 = scmp.eq.s32.totalorder %s22, 0
      %p189 = por %p187, %p188
      %p190 = scmp.ne.s32.totalorder %s182, %s184
      %p191 = scmp.eq.s32.totalorder %s27, 1
      %p192 = por %p190, %p191
      %p193 = scmp.ne.s32.totalorder %s184, %s185
      %p194 = scmp.eq.s32.totalorder %s27, 0
      %p195 = por %p193, %p194
      %p196 = scmp.ne.s32.totalorder %s184, %s185
      %p197 = scmp.eq.s32.totalorder %s28, 1
      %p198 = por %p196, %p197
      %p200 = scmp.ne.s32.totalorder %s185, %s199
      %p201 = scmp.eq.s32.totalorder %s28, 0
      %p202 = por %p200, %p201
      %s204 = sadd.s32 %s203, 1
      %p207 = scmp.eq.s32.totalorder %s22, 1
      %p208 = scmp.ne.s32.totalorder %s203, %s205
      %p209 = scmp.eq.s32.totalorder %s22, 0
      %p210 = por %p208, %p209
      %p211 = scmp.ne.s32.totalorder %s203, %s205
      %p212 = scmp.eq.s32.totalorder %s27, 1
      %p213 = por %p211, %p212
      %p214 = scmp.ne.s32.totalorder %s205, %s206
      %p215 = scmp.eq.s32.totalorder %s27, 0
      %p216 = por %p214, %p215
      %p217 = scmp.ne.s32.totalorder %s205, %s206
      %p218 = scmp.eq.s32.totalorder %s28, 1
      %p219 = por %p217, %p218
      %p221 = scmp.ne.s32.totalorder %s206, %s220
      %p222 = scmp.eq.s32.totalorder %s28, 0
      %p223 = por %p221, %p222
      %s225 = sadd.s32 %s224, 1
      %p228 = scmp.eq.s32.totalorder %s22, 1
      %p229 = scmp.ne.s32.totalorder %s224, %s226
      %p230 = scmp.eq.s32.totalorder %s22, 0
      %p231 = por %p229, %p230
      %p232 = scmp.ne.s32.totalorder %s224, %s226
      %p233 = scmp.eq.s32.totalorder %s27, 1
      %p234 = por %p232, %p233
      %p235 = scmp.ne.s32.totalorder %s226, %s227
      %p236 = scmp.eq.s32.totalorder %s27, 0
      %p237 = por %p235, %p236
      %p238 = scmp.ne.s32.totalorder %s226, %s227
      %p239 = scmp.eq.s32.totalorder %s28, 1
      %p240 = por %p238, %p239
      %p242 = scmp.ne.s32.totalorder %s227, %s241
      %p243 = scmp.eq.s32.totalorder %s28, 0
      %p244 = por %p242, %p243
      %s246 = sadd.s32 %s245, 1
      %p249 = scmp.eq.s32.totalorder %s22, 1
      %p250 = scmp.ne.s32.totalorder %s245, %s247
      %p251 = scmp.eq.s32.totalorder %s22, 0
      %p252 = por %p250, %p251
      %p253 = scmp.ne.s32.totalorder %s245, %s247
      %p254 = scmp.eq.s32.totalorder %s27, 1
      %p255 = por %p253, %p254
      %p256 = scmp.ne.s32.totalorder %s247, %s248
      %p257 = scmp.eq.s32.totalorder %s27, 0
      %p258 = por %p256, %p257
      %p259 = scmp.ne.s32.totalorder %s247, %s248
      %p260 = scmp.eq.s32.totalorder %s28, 1
      %p261 = por %p259, %p260
      %p263 = scmp.ne.s32.totalorder %s248, %s262
      %p264 = scmp.eq.s32.totalorder %s28, 0
      %p265 = por %p263, %p264
      %s267 = sadd.s32 %s266, 1
      %p270 = scmp.eq.s32.totalorder %s22, 1
      %p271 = scmp.ne.s32.totalorder %s266, %s268
      %p272 = scmp.eq.s32.totalorder %s22, 0
      %p273 = por %p271, %p272
      %p274 = scmp.ne.s32.totalorder %s266, %s268
      %p275 = scmp.eq.s32.totalorder %s27, 1
      %p276 = por %p274, %p275
      %p277 = scmp.ne.s32.totalorder %s268, %s269
      %p278 = scmp.eq.s32.totalorder %s27, 0
      %p279 = por %p277, %p278
      %p280 = scmp.ne.s32.totalorder %s268, %s269
      %p281 = scmp.eq.s32.totalorder %s28, 1
      %p282 = por %p280, %p281
      %p284 = scmp.ne.s32.totalorder %s269, %s283
      %p285 = scmp.eq.s32.totalorder %s28, 0
      %p286 = por %p284, %p285
      %s288 = sadd.s32 %s287, 1
      %p291 = scmp.eq.s32.totalorder %s22, 1
      %p292 = scmp.ne.s32.totalorder %s287, %s289
      %p293 = scmp.eq.s32.totalorder %s22, 0
      %p294 = por %p292, %p293
      %p295 = scmp.ne.s32.totalorder %s287, %s289
      %p296 = scmp.eq.s32.totalorder %s27, 1
      %p297 = por %p295, %p296
      %p298 = scmp.ne.s32.totalorder %s289, %s290
      %p299 = scmp.eq.s32.totalorder %s27, 0
      %p300 = por %p298, %p299
      %p301 = scmp.ne.s32.totalorder %s289, %s290
      %p302 = scmp.eq.s32.totalorder %s28, 1
      %p303 = por %p301, %p302
      %p305 = scmp.ne.s32.totalorder %s290, %s304
      %p306 = scmp.eq.s32.totalorder %s28, 0
      %p307 = por %p305, %p306
      %s308 = ssub.s32 %s22, %s29
      %p309 = scmp.eq.s32.totalorder %s308, 0
      %s311 = sadd.s32 %s310, 1
      %s312 = scalar_select %p309, %s310, %s311
      %p315 = pneg %p309
      %p316 = scmp.eq.s32.totalorder %s22, 1
      %p317 = por %p315, %p316
      %p318 = scmp.ne.s32.totalorder %s310, %s313
      %p319 = scmp.eq.s32.totalorder %s22, 0
      %p320 = por %p318, %p319
      %p321 = scmp.ne.s32.totalorder %s310, %s313
      %p322 = scmp.eq.s32.totalorder %s27, 1
      %p323 = por %p321, %p322
      %p324 = scmp.ne.s32.totalorder %s313, %s314
      %p325 = scmp.eq.s32.totalorder %s27, 0
      %p326 = por %p324, %p325
      %p327 = scmp.ne.s32.totalorder %s313, %s314
      %p328 = scmp.eq.s32.totalorder %s28, 1
      %p329 = por %p327, %p328
      %p331 = scmp.ne.s32.totalorder %s314, %s330
      %p332 = scmp.eq.s32.totalorder %s28, 0
      %p333 = por %p331, %p332
      %p334 = scmp.le.s32.totalorder 1, %s22
      %p335 = scmp.lt.s32.totalorder %s22, 3
      %p336 = pnand %p334, %p335
      %p337 = pneg %p336
      // Predicated region
      $region9: #{tpu_custom_call.1} parent=5 // pred_check
        _
      $region10: #{tpu_custom_call.1} parent=5 // pred_check_branch
        %339 = sbr.rel (%p336) target = $region12
      $region11: #{tpu_custom_call.1} parent=5 // pred_region
        %s340 = ssub.s32 %s22, 1
        // Predicated region
        $region13: #{tpu_custom_call.1} parent=11 // pred_check
          %p341 = pneg %p69
        $region14: #{tpu_custom_call.1} parent=11 // pred_check_branch
          %343 = sbr.rel (%p341) target = $region16
        $region15: #{tpu_custom_call.1} parent=11 // pred_region
          _
        $region16: #{tpu_custom_call.1} parent=11 // pred_fallthru
          _
        // Predicated region
        $region17: #{tpu_custom_call.1} parent=11 // pred_check
          %p344 = pneg %p90
        $region18: #{tpu_custom_call.1} parent=11 // pred_check_branch
          %346 = sbr.rel (%p344) target = $region20
        $region19: #{tpu_custom_call.1} parent=11 // pred_region
          _
        $region20: #{tpu_custom_call.1} parent=11 // pred_fallthru
          _
        // Predicated region
        $region21: #{tpu_custom_call.1} parent=11 // pred_check
          %p347 = pneg %p111
        $region22: #{tpu_custom_call.1} parent=11 // pred_check_branch
          %349 = sbr.rel (%p347) target = $region24
        $region23: #{tpu_custom_call.1} parent=11 // pred_region
          _
        $region24: #{tpu_custom_call.1} parent=11 // pred_fallthru
          _
        // Predicated region
        $region25: #{tpu_custom_call.1} parent=11 // pred_check
          %p350 = pneg %p132
        $region26: #{tpu_custom_call.1} parent=11 // pred_check_branch
          %352 = sbr.rel (%p350) target = $region28
        $region27: #{tpu_custom_call.1} parent=11 // pred_region
          _
        $region28: #{tpu_custom_call.1} parent=11 // pred_fallthru
          _
        // Predicated region
        $region29: #{tpu_custom_call.1} parent=11 // pred_check
          %p353 = pneg %p153
        $region30: #{tpu_custom_call.1} parent=11 // pred_check_branch
          %355 = sbr.rel (%p353) target = $region32
        $region31: #{tpu_custom_call.1} parent=11 // pred_region
          _
        $region32: #{tpu_custom_call.1} parent=11 // pred_fallthru
          _
        // Predicated region
        $region33: #{tpu_custom_call.1} parent=11 // pred_check
          %p356 = pneg %p174
        $region34: #{tpu_custom_call.1} parent=11 // pred_check_branch
          %358 = sbr.rel (%p356) target = $region36
        $region35: #{tpu_custom_call.1} parent=11 // pred_region
          _
        $region36: #{tpu_custom_call.1} parent=11 // pred_fallthru
          _
        // Predicated region
        $region37: #{tpu_custom_call.1} parent=11 // pred_check
          %p359 = pneg %p195
        $region38: #{tpu_custom_call.1} parent=11 // pred_check_branch
          %361 = sbr.rel (%p359) target = $region40
        $region39: #{tpu_custom_call.1} parent=11 // pred_region
          _
        $region40: #{tpu_custom_call.1} parent=11 // pred_fallthru
          _
        // Predicated region
        $region41: #{tpu_custom_call.1} parent=11 // pred_check
          %p362 = pneg %p216
        $region42: #{tpu_custom_call.1} parent=11 // pred_check_branch
          %364 = sbr.rel (%p362) target = $region44
        $region43: #{tpu_custom_call.1} parent=11 // pred_region
          _
        $region44: #{tpu_custom_call.1} parent=11 // pred_fallthru
          _
        // Predicated region
        $region45: #{tpu_custom_call.1} parent=11 // pred_check
          %p365 = pneg %p237
        $region46: #{tpu_custom_call.1} parent=11 // pred_check_branch
          %367 = sbr.rel (%p365) target = $region48
        $region47: #{tpu_custom_call.1} parent=11 // pred_region
          _
        $region48: #{tpu_custom_call.1} parent=11 // pred_fallthru
          _
        // Predicated region
        $region49: #{tpu_custom_call.1} parent=11 // pred_check
          %p368 = pneg %p258
        $region50: #{tpu_custom_call.1} parent=11 // pred_check_branch
          %370 = sbr.rel (%p368) target = $region52
        $region51: #{tpu_custom_call.1} parent=11 // pred_region
          _
        $region52: #{tpu_custom_call.1} parent=11 // pred_fallthru
          _
        // Predicated region
        $region53: #{tpu_custom_call.1} parent=11 // pred_check
          %p371 = pneg %p279
        $region54: #{tpu_custom_call.1} parent=11 // pred_check_branch
          %373 = sbr.rel (%p371) target = $region56
        $region55: #{tpu_custom_call.1} parent=11 // pred_region
          _
        $region56: #{tpu_custom_call.1} parent=11 // pred_fallthru
          _
        // Predicated region
        $region57: #{tpu_custom_call.1} parent=11 // pred_check
          %p374 = pneg %p300
        $region58: #{tpu_custom_call.1} parent=11 // pred_check_branch
          %376 = sbr.rel (%p374) target = $region60
        $region59: #{tpu_custom_call.1} parent=11 // pred_region
          _
        $region60: #{tpu_custom_call.1} parent=11 // pred_fallthru
          _
      $region12: #{tpu_custom_call.1} parent=5 // pred_fallthru
        _
      %p377 = scmp.lt.s32.totalorder %s22, 2
      // Predicated region
      $region61: #{tpu_custom_call.1} parent=5 // pred_check
        %p378 = pneg %p377
      $region62: #{tpu_custom_call.1} parent=5 // pred_check_branch
        %380 = sbr.rel (%p378) target = $region64
      $region63: #{tpu_custom_call.1} parent=5 // pred_region
        // Predicated region
        $region65: #{tpu_custom_call.1} parent=63 // pred_check
          %p381 = pneg %p42
        $region66: #{tpu_custom_call.1} parent=63 // pred_check_branch
          %383 = sbr.rel (%p381) target = $region68
        $region67: #{tpu_custom_call.1} parent=63 // pred_region
          %p384 = scmp.lt.s32.totalorder %s22, 1
          %s385 = scalar_select %p384, %s22, 1
          %s386 = scalar_lea.vmem %s0, %s385
        $region68: #{tpu_custom_call.1} parent=63 // pred_fallthru
          _
      $region64: #{tpu_custom_call.1} parent=5 // pred_fallthru
        _
      %p387 = scmp.le.s32.totalorder 1, %s22
      %p388 = scmp.lt.s32.totalorder %s22, 3
      %p389 = pnand %p387, %p388
      %p390 = pneg %p389
      // Predicated region
      $region69: #{tpu_custom_call.1} parent=5 // pred_check
        _
      $region70: #{tpu_custom_call.1} parent=5 // pred_check_branch
        %392 = sbr.rel (%p389) target = $region72
      $region71: #{tpu_custom_call.1} parent=5 // pred_region
        %s393 = ssub.s32 %s22, 1
        %p394 = scmp.lt.s32.totalorder %s27, 1
        %s395 = scalar_select %p394, %s27, 1
        %s396 = scalar_lea.vmem %s0, %s395
        %p397 = pneg %p48
        %p398 = pneg %p45
        %p399 = pneg %p69
        %p400 = pneg %p66
        %p401 = pneg %p90
        %p402 = pneg %p87
        %p403 = pneg %p111
        %p404 = pneg %p108
        %p405 = pneg %p132
        %p406 = pneg %p129
        %p407 = pneg %p153
        %p408 = pneg %p150
        %p409 = pneg %p174
        %p410 = pneg %p171
        %p411 = pneg %p195
        %p412 = pneg %p192
        %p413 = pneg %p216
        %p414 = pneg %p213
        %p415 = pneg %p237
        %p416 = pneg %p234
        %p417 = pneg %p258
        %p418 = pneg %p255
        %p419 = pneg %p279
        %p420 = pneg %p276
        %p421 = pneg %p300
        %p422 = pneg %p297
        %p423 = pneg %p326
        %p424 = pneg %p323
        %s425 = sand.u32 %s313, 1
        %s426 = scalar_lea.sflag [#allocation4], %s425
        %s427 = sand.u32 %s313, 1
        %s428 = smul.addr %s427, 256
        %s429 = scalar_lea.vmem [#allocation3], %s428
        %p430 = scmp.lt.s32.totalorder %s27, 1
        %s431 = scalar_select %p430, %s27, 1
        %s432 = scalar_lea.vmem %s0, %s431
        %v434 = vld [vmem:[%s432] sm:$0x1]
        %v435 = vmul.f32 %v434, %v434
        %vm436 = vcmask 253952
        %v437 = vsel %vm436, %v435, 0.0
        %438 = vadd.xlane.f32.xlu0 %v437
        %v439 = vpop.xlane.xlu0 %438
        %v440 = vrcp.pop 32.0
        %v441 = vmul.f32 %v439, %v440
        %v442 = vadd.f32 %v441, 1e-08
        %v443 = vrsqrt.pop %v442
        %v444 = vmul.f32 %v434, %v443
        %v445 = vpack.c.bf16 %v444, %v444
        %v446 = vld [vmem:[%s1] sm:$0xf]
        %v447 = vld [vmem:[%s1 + $0x4] sm:$0xf]
        %v448 = vld [vmem:[%s1 + $0x8] sm:$0xf]
        %v449 = vld [vmem:[%s1 + $0xc] sm:$0xf]
        %v450 = vld [vmem:[%s2] sm:$0x1]
        %v455 = vunpack.c.l.b16 %v446
        %v456 = vunpack.c.l.b16 %v447
        %v457 = vunpack.c.l.b16 %v448
        %v458 = vunpack.c.l.b16 %v449
        %v459 = vpack.c.b16 %v456, %v455
        %v460 = vpack.c.b16 %v458, %v457
        %vm463 = vcmask 261120
        %v465 = vsel %vm463, %v445, 0
        %467 = vmatprep.subr.bf16.mxu0 0
        %468 = vmatpush1.bf16.msra.mxu0 %v459
        %469 = vmatprep.subr.bf16.mxu0 0
        %470 = vmatpush1.bf16.msra.mxu0 %v460
        %471 = vmatprep.subr.bf16.mxu0 0
        %472 = vmatpush1.bf16.msra.mxu0 0
        %473 = vmatprep.subr.bf16.mxu0 0
        %474 = vmatpush1.bf16.msra.mxu0 0
        %475 = vmatprep.subr.bf16.mxu0 0
        %476 = vmatpush1.bf16.msra.mxu0 0
        %477 = vmatprep.subr.bf16.mxu0 0
        %478 = vmatpush1.bf16.msra.mxu0 0
        %479 = vmatprep.subr.bf16.mxu0 0
        %480 = vmatpush1.bf16.msra.mxu0 0
        %481 = vmatprep.subr.bf16.mxu0 0
        %482 = vmatpush1.bf16.msra.mxu0 0
        %483 = vmatprep.subr.bf16.mxu0 0
        %484 = vmatpush1.bf16.msra.mxu0 0
        %485 = vmatprep.subr.bf16.mxu0 0
        %486 = vmatpush1.bf16.msra.mxu0 0
        %487 = vmatprep.subr.bf16.mxu0 0
        %488 = vmatpush1.bf16.msra.mxu0 0
        %489 = vmatprep.subr.bf16.mxu0 0
        %490 = vmatpush1.bf16.msra.mxu0 0
        %491 = vmatprep.subr.bf16.mxu0 0
        %492 = vmatpush1.bf16.msra.mxu0 0
        %493 = vmatprep.subr.bf16.mxu0 0
        %494 = vmatpush1.bf16.msra.mxu0 0
        %495 = vmatprep.subr.bf16.mxu0 0
        %496 = vmatpush1.bf16.msra.mxu0 0
        %497 = vmatprep.subr.bf16.mxu0 0
        %498 = vmatpush1.bf16.msra.mxu0 0
        %499 = vmatprep.mubr.bf16.mxu0 0
        %500 = vmatmul.mubr.bf16.gmra.mrb[0].mxu0 %v465
        %v501 = vpop.f32.mrb[0].mxu0
        %v502 = vadd.f32 %v450, %v501
        %v503 = vpop.f32.mrb[0].mxu0
        %v504 = vpop.f32.mrb[0].mxu0
        %v505 = vpop.f32.mrb[0].mxu0
        %506 = vdwg.mxu0
        %v507 = vmul.f32 %v502, 0.2
        %v508 = vmax.f32 %v502, %v507
        %v509 = vpack.c.bf16 %v508, %v508
        %v510 = vld [vmem:[%s3] sm:$0xf]
        %v511 = vld [vmem:[%s3 + $0x4] sm:$0xf]
        %v512 = vld [vmem:[%s3 + $0x8] sm:$0xf]
        %v513 = vld [vmem:[%s3 + $0xc] sm:$0xf]
        %v514 = vld [vmem:[%s4] sm:$0x1]
        %v519 = vunpack.c.l.b16 %v510
        %v520 = vunpack.c.l.b16 %v511
        %v521 = vunpack.c.l.b16 %v512
        %v522 = vunpack.c.l.b16 %v513
        %v523 = vpack.c.b16 %v520, %v519
        %v524 = vpack.c.b16 %v522, %v521
        %v528 = vsel %vm463, %v509, 0
        %530 = vmatprep.subr.bf16.mxu0 0
        %531 = vmatpush1.bf16.msra.mxu0 %v523
        %532 = vmatprep.subr.bf16.mxu0 0
        %533 = vmatpush1.bf16.msra.mxu0 %v524
        %534 = vmatprep.subr.bf16.mxu0 0
        %535 = vmatpush1.bf16.msra.mxu0 0
        %536 = vmatprep.subr.bf16.mxu0 0
        %537 = vmatpush1.bf16.msra.mxu0 0
        %538 = vmatprep.subr.bf16.mxu0 0
        %539 = vmatpush1.bf16.msra.mxu0 0
        %540 = vmatprep.subr.bf16.mxu0 0
        %541 = vmatpush1.bf16.msra.mxu0 0
        %542 = vmatprep.subr.bf16.mxu0 0
        %543 = vmatpush1.bf16.msra.mxu0 0
        %544 = vmatprep.subr.bf16.mxu0 0
        %545 = vmatpush1.bf16.msra.mxu0 0
        %546 = vmatprep.subr.bf16.mxu0 0
        %547 = vmatpush1.bf16.msra.mxu0 0
        %548 = vmatprep.subr.bf16.mxu0 0
        %549 = vmatpush1.bf16.msra.mxu0 0
        %550 = vmatprep.subr.bf16.mxu0 0
        %551 = vmatpush1.bf16.msra.mxu0 0
        %552 = vmatprep.subr.bf16.mxu0 0
        %553 = vmatpush1.bf16.msra.mxu0 0
        %554 = vmatprep.subr.bf16.mxu0 0
        %555 = vmatpush1.bf16.msra.mxu0 0
        %556 = vmatprep.subr.bf16.mxu0 0
        %557 = vmatpush1.bf16.msra.mxu0 0
        %558 = vmatprep.subr.bf16.mxu0 0
        %559 = vmatpush1.bf16.msra.mxu0 0
        %560 = vmatprep.subr.bf16.mxu0 0
        %561 = vmatpush1.bf16.msra.mxu0 0
        %562 = vmatprep.mubr.bf16.mxu0 0
        %563 = vmatmul.mubr.bf16.gmra.mrb[0].mxu0 %v528
        %v564 = vpop.f32.mrb[0].mxu0
        %v565 = vadd.f32 %v514, %v564
        %v566 = vpop.f32.mrb[0].mxu0
        %v567 = vpop.f32.mrb[0].mxu0
        %v568 = vpop.f32.mrb[0].mxu0
        %569 = vdwg.mxu0
        %v570 = vmul.f32 %v565, 0.2
        %v571 = vmax.f32 %v565, %v570
        %v572 = vld [vmem:[%s5] sm:$0x1]
        %v573 = vsub.f32 %v571, %v572
        %v574 = vmul.f32 %v573, 0.5
        %v575 = vadd.f32 %v572, %v574
        %v576 = vpack.c.bf16 %v575, %v575
        %v577 = vld [vmem:[%s6] sm:$0xf]
        %v578 = vld [vmem:[%s6 + $0x4] sm:$0xf]
        %v579 = vld [vmem:[%s6 + $0x8] sm:$0xf]
        %v580 = vld [vmem:[%s6 + $0xc] sm:$0xf]
        %v581 = vld [vmem:[%s7] sm:$0x1]
        %v586 = vunpack.c.l.b16 %v577
        %v587 = vunpack.c.l.b16 %v578
        %v588 = vunpack.c.l.b16 %v579
        %v589 = vunpack.c.l.b16 %v580
        %v590 = vpack.c.b16 %v587, %v586
        %v591 = vpack.c.b16 %v589, %v588
        %v595 = vsel %vm463, %v576, 0
        %597 = vmatprep.subr.bf16.mxu0 0
        %598 = vmatpush1.bf16.msra.mxu0 %v590
        %599 = vmatprep.subr.bf16.mxu0 0
        %600 = vmatpush1.bf16.msra.mxu0 %v591
        %601 = vmatprep.subr.bf16.mxu0 0
        %602 = vmatpush1.bf16.msra.mxu0 0
        %603 = vmatprep.subr.bf16.mxu0 0
        %604 = vmatpush1.bf16.msra.mxu0 0
        %605 = vmatprep.subr.bf16.mxu0 0
        %606 = vmatpush1.bf16.msra.mxu0 0
        %607 = vmatprep.subr.bf16.mxu0 0
        %608 = vmatpush1.bf16.msra.mxu0 0
        %609 = vmatprep.subr.bf16.mxu0 0
        %610 = vmatpush1.bf16.msra.mxu0 0
        %611 = vmatprep.subr.bf16.mxu0 0
        %612 = vmatpush1.bf16.msra.mxu0 0
        %613 = vmatprep.subr.bf16.mxu0 0
        %614 = vmatpush1.bf16.msra.mxu0 0
        %615 = vmatprep.subr.bf16.mxu0 0
        %616 = vmatpush1.bf16.msra.mxu0 0
        %617 = vmatprep.subr.bf16.mxu0 0
        %618 = vmatpush1.bf16.msra.mxu0 0
        %619 = vmatprep.subr.bf16.mxu0 0
        %620 = vmatpush1.bf16.msra.mxu0 0
        %621 = vmatprep.subr.bf16.mxu0 0
        %622 = vmatpush1.bf16.msra.mxu0 0
        %623 = vmatprep.subr.bf16.mxu0 0
        %624 = vmatpush1.bf16.msra.mxu0 0
        %625 = vmatprep.subr.bf16.mxu0 0
        %626 = vmatpush1.bf16.msra.mxu0 0
        %627 = vmatprep.subr.bf16.mxu0 0
        %628 = vmatpush1.bf16.msra.mxu0 0
        %629 = vmatprep.mubr.bf16.mxu0 0
        %630 = vmatmul.mubr.bf16.gmra.mrb[0].mxu0 %v595
        %v631 = vpop.f32.mrb[0].mxu0
        %v632 = vadd.f32 %v581, %v631
        %v633 = vpop.f32.mrb[0].mxu0
        %v634 = vpop.f32.mrb[0].mxu0
        %v635 = vpop.f32.mrb[0].mxu0
        %636 = vdwg.mxu0
        %637 = vst.msk [vmem:[#allocation2] sm:$0xff] %vm463, 0.0
        %638 = vst.msk [vmem:[#allocation2 + $0x8] sm:$0xff] %vm463, 0.0
        %vm639 = vcmask 254976
        %640 = vst.msk [vmem:[#allocation2 + $0x10] sm:$0x3] %vm639, 0.0
        %641 = vst.msk [vmem:[#allocation2 + $0x18] sm:$0xff] %vm463, 0.0
        %642 = vst.msk [vmem:[#allocation2 + $0x20] sm:$0xff] %vm463, 0.0
        %643 = vst.msk [vmem:[#allocation2 + $0x28] sm:$0x3] %vm639, 0.0
        %644 = vst.msk [vmem:[#allocation2 + $0x30] sm:$0xff] %vm463, 0.0
        %645 = vst.msk [vmem:[#allocation2 + $0x38] sm:$0xff] %vm463, 0.0
        %646 = vst.msk [vmem:[#allocation2 + $0x40] sm:$0x3] %vm639, 0.0
        %647 = vst.msk [vmem:[#allocation2 + $0x48] sm:$0xff] %vm463, 0.0
        %648 = vst.msk [vmem:[#allocation2 + $0x50] sm:$0xff] %vm463, 0.0
        %649 = vst.msk [vmem:[#allocation2 + $0x58] sm:$0x3] %vm639, 0.0
        %650 = vst.msk [vmem:[#allocation2 + $0x60] sm:$0xff] %vm463, 0.0
        %651 = vst.msk [vmem:[#allocation2 + $0x68] sm:$0xff] %vm463, 0.0
        %652 = vst.msk [vmem:[#allocation2 + $0x70] sm:$0x3] %vm639, 0.0
        %653 = vst.msk [vmem:[#allocation2 + $0x78] sm:$0xff] %vm463, 0.0
        %654 = vst.msk [vmem:[#allocation2 + $0x80] sm:$0xff] %vm463, 0.0
        %655 = vst.msk [vmem:[#allocation2 + $0x88] sm:$0x3] %vm639, 0.0
        %656 = vst.msk [vmem:[#allocation2 + $0x90] sm:$0xff] %vm463, 0.0
        %657 = vst.msk [vmem:[#allocation2 + $0x98] sm:$0xff] %vm463, 0.0
        %658 = vst.msk [vmem:[#allocation2 + $0xa0] sm:$0x3] %vm639, 0.0
        %659 = vst.msk [vmem:[#allocation2 + $0xa8] sm:$0xff] %vm463, 0.0
        %660 = vst.msk [vmem:[#allocation2 + $0xb0] sm:$0xff] %vm463, 0.0
        %661 = vst.msk [vmem:[#allocation2 + $0xb8] sm:$0x3] %vm639, 0.0
        %662 = vst.msk [vmem:[#allocation2 + $0xc0] sm:$0xff] %vm463, 0.0
        %663 = vst.msk [vmem:[#allocation2 + $0xc8] sm:$0xff] %vm463, 0.0
        %664 = vst.msk [vmem:[#allocation2 + $0xd0] sm:$0x3] %vm639, 0.0
        %665 = vst.msk [vmem:[#allocation2 + $0xd8] sm:$0xff] %vm463, 0.0
        %666 = vst.msk [vmem:[#allocation2 + $0xe0] sm:$0xff] %vm463, 0.0
        %667 = vst.msk [vmem:[#allocation2 + $0xe8] sm:$0x3] %vm639, 0.0
        %668 = vst.msk [vmem:[#allocation2 + $0xf0] sm:$0xff] %vm463, 0.0
        %669 = vst.msk [vmem:[#allocation2 + $0xf8] sm:$0xff] %vm463, 0.0
        %670 = vst.msk [vmem:[#allocation2 + $0x100] sm:$0x3] %vm639, 0.0
        %671 = vst.msk [vmem:[#allocation2 + $0x108] sm:$0xff] %vm463, 0.0
        %672 = vst.msk [vmem:[#allocation2 + $0x110] sm:$0xff] %vm463, 0.0
        %673 = vst.msk [vmem:[#allocation2 + $0x118] sm:$0x3] %vm639, 0.0
        %674 = vst.msk [vmem:[#allocation2 + $0x120] sm:$0xff] %vm463, 0.0
        %675 = vst.msk [vmem:[#allocation2 + $0x128] sm:$0xff] %vm463, 0.0
        %676 = vst.msk [vmem:[#allocation2 + $0x130] sm:$0x3] %vm639, 0.0
        %677 = vst.msk [vmem:[#allocation2 + $0x138] sm:$0xff] %vm463, 0.0
        %678 = vst.msk [vmem:[#allocation2 + $0x140] sm:$0xff] %vm463, 0.0
        %679 = vst.msk [vmem:[#allocation2 + $0x148] sm:$0x3] %vm639, 0.0
        %680 = vst.msk [vmem:[#allocation2 + $0x150] sm:$0xff] %vm463, 0.0
        %681 = vst.msk [vmem:[#allocation2 + $0x158] sm:$0xff] %vm463, 0.0
        %682 = vst.msk [vmem:[#allocation2 + $0x160] sm:$0x3] %vm639, 0.0
        %683 = vst.msk [vmem:[#allocation2 + $0x168] sm:$0xff] %vm463, 0.0
        %684 = vst.msk [vmem:[#allocation2 + $0x170] sm:$0xff] %vm463, 0.0
        %685 = vst.msk [vmem:[#allocation2 + $0x178] sm:$0x3] %vm639, 0.0
        %686 = vst.msk [vmem:[#allocation2 + $0x180] sm:$0xff] %vm463, 0.0
        %687 = vst.msk [vmem:[#allocation2 + $0x188] sm:$0xff] %vm463, 0.0
        %688 = vst.msk [vmem:[#allocation2 + $0x190] sm:$0x3] %vm639, 0.0
        %689 = vst.msk [vmem:[#allocation2 + $0x198] sm:$0xff] %vm463, 0.0
        %690 = vst.msk [vmem:[#allocation2 + $0x1a0] sm:$0xff] %vm463, 0.0
        %691 = vst.msk [vmem:[#allocation2 + $0x1a8] sm:$0x3] %vm639, 0.0
        %v692 = vld [vmem:[%s8] sm:$0xf]
        %v693 = vld [vmem:[%s8 + $0x4] sm:$0xf]
        %v694 = vld [vmem:[%s8 + $0x8] sm:$0xf]
        %v695 = vld [vmem:[%s8 + $0xc] sm:$0xf]
        %v696 = vlaneseq
        %v697 = vshrl.u32 %v696, 7
        %v698 = vsub.s32 0, %v697
        %v699 = vrot.slane %v632, %v698
        %v700 = vmul.f32 %v692, %v699
        %v701 = vmul.f32 %v693, %v699
        %v702 = vmul.f32 %v694, %v699
        %v703 = vmul.f32 %v695, %v699
        %s704 = scalar_lea.vmem [#allocation2], 24
        %vm705 = vcmask 257024
        %706 = vst.msk [vmem:[%s704 + $0x1] sm:$0xf] %vm705, %v700
        %707 = vst.msk [vmem:[%s704 + $0x19] sm:$0xf] %vm705, %v701
        %708 = vst.msk [vmem:[%s704 + $0x31] sm:$0xf] %vm705, %v702
        %709 = vst.msk [vmem:[%s704 + $0x49] sm:$0xf] %vm705, %v703
        %v710 = vld [vmem:[#allocation2] sm:$0xf]
        %v711 = vld [vmem:[#allocation2 + $0x18] sm:$0xf]
        %v712 = vld [vmem:[#allocation2 + $0x30] sm:$0xf]
        %v713 = vld [vmem:[#allocation2 + $0x48] sm:$0xf]
        %v714 = vld [vmem:[#allocation2 + $0x1] sm:$0xf]
        %v715 = vld [vmem:[#allocation2 + $0x19] sm:$0xf]
        %v716 = vld [vmem:[#allocation2 + $0x31] sm:$0xf]
        %v717 = vld [vmem:[#allocation2 + $0x49] sm:$0xf]
        %v718 = vld [vmem:[#allocation2 + $0x2] sm:$0xf]
        %v719 = vld [vmem:[#allocation2 + $0x1a] sm:$0xf]
        %v720 = vld [vmem:[#allocation2 + $0x32] sm:$0xf]
        %v721 = vld [vmem:[#allocation2 + $0x4a] sm:$0xf]
        %v722 = vld [vmem:[%s704] sm:$0xf]
        %v723 = vld [vmem:[%s704 + $0x18] sm:$0xf]
        %v724 = vld [vmem:[%s704 + $0x30] sm:$0xf]
        %v725 = vld [vmem:[%s704 + $0x48] sm:$0xf]
        %v726 = vld [vmem:[%s704 + $0x1] sm:$0xf]
        %v727 = vld [vmem:[%s704 + $0x19] sm:$0xf]
        %v728 = vld [vmem:[%s704 + $0x31] sm:$0xf]
        %v729 = vld [vmem:[%s704 + $0x49] sm:$0xf]
        %v730 = vld [vmem:[%s704 + $0x2] sm:$0xf]
        %v731 = vld [vmem:[%s704 + $0x1a] sm:$0xf]
        %v732 = vld [vmem:[%s704 + $0x32] sm:$0xf]
        %v733 = vld [vmem:[%s704 + $0x4a] sm:$0xf]
        %s734 = scalar_lea.vmem [#allocation2], 48
        %v735 = vld [vmem:[%s734] sm:$0xf]
        %v736 = vld [vmem:[%s734 + $0x18] sm:$0xf]
        %v737 = vld [vmem:[%s734 + $0x30] sm:$0xf]
        %v738 = vld [vmem:[%s734 + $0x48] sm:$0xf]
        %v739 = vld [vmem:[%s734 + $0x1] sm:$0xf]
        %v740 = vld [vmem:[%s734 + $0x19] sm:$0xf]
        %v741 = vld [vmem:[%s734 + $0x31] sm:$0xf]
        %v742 = vld [vmem:[%s734 + $0x49] sm:$0xf]
        %v743 = vld [vmem:[%s734 + $0x2] sm:$0xf]
        %v744 = vld [vmem:[%s734 + $0x1a] sm:$0xf]
        %v745 = vld [vmem:[%s734 + $0x32] sm:$0xf]
        %v746 = vld [vmem:[%s734 + $0x4a] sm:$0xf]
        %v751 = vcombine.low %v710, %v711
        %v752 = vcombine.low %v712, %v713
        %v759 = vcombine.low %v714, %v715
        %v760 = vcombine.low %v716, %v717
        %761 = vrot.lane.b32.xlu0 %v759, 32
        %v762 = vpop.permute.xlu0 %761
        %763 = vrot.lane.b32.xlu0 %v760, 32
        %v764 = vpop.permute.xlu0 %763
        %v771 = vcombine.low %v718, %v719
        %v772 = vcombine.low %v720, %v721
        %773 = vrot.lane.b32.xlu0 %v771, 64
        %v774 = vpop.permute.xlu0 %773
        %775 = vrot.lane.b32.xlu0 %v772, 64
        %v776 = vpop.permute.xlu0 %775
        %v783 = vcombine.low %v722, %v723
        %v784 = vcombine.low %v724, %v725
        %785 = vrot.lane.b32.xlu0 %v783, 96
        %v786 = vpop.permute.xlu0 %785
        %787 = vrot.lane.b32.xlu0 %v784, 96
        %v788 = vpop.permute.xlu0 %787
        %v795 = vcombine.low %v726, %v727
        %v796 = vcombine.low %v728, %v729
        %v803 = vcombine.low %v730, %v731
        %v804 = vcombine.low %v732, %v733
        %805 = vrot.lane.b32.xlu0 %v803, 32
        %v806 = vpop.permute.xlu0 %805
        %807 = vrot.lane.b32.xlu0 %v804, 32
        %v808 = vpop.permute.xlu0 %807
        %v815 = vcombine.low %v735, %v736
        %v816 = vcombine.low %v737, %v738
        %817 = vrot.lane.b32.xlu0 %v815, 64
        %v818 = vpop.permute.xlu0 %817
        %819 = vrot.lane.b32.xlu0 %v816, 64
        %v820 = vpop.permute.xlu0 %819
        %v827 = vcombine.low %v739, %v740
        %v828 = vcombine.low %v741, %v742
        %829 = vrot.lane.b32.xlu0 %v827, 96
        %v830 = vpop.permute.xlu0 %829
        %831 = vrot.lane.b32.xlu0 %v828, 96
        %v832 = vpop.permute.xlu0 %831
        %v839 = vcombine.low %v743, %v744
        %v840 = vcombine.low %v745, %v746
        %v843 = vsel %vm463, %v751, %v762
        %v844 = vsel %vm463, %v752, %v764
        %vm845 = vcmask 523264
        %v846 = vsel %vm845, %v843, %v774
        %v847 = vsel %vm845, %v844, %v776
        %vm848 = vcmask 785408
        %v849 = vsel %vm848, %v846, %v786
        %v850 = vsel %vm848, %v847, %v788
        %v851 = vsel %vm463, %v795, %v806
        %v852 = vsel %vm463, %v796, %v808
        %v853 = vsel %vm845, %v851, %v818
        %v854 = vsel %vm845, %v852, %v820
        %v855 = vsel %vm848, %v853, %v830
        %v856 = vsel %vm848, %v854, %v832
        %v857 = vpack.c.bf16 %v850, %v849
        %v858 = vpack.c.bf16 %v856, %v855
        %v859 = vpack.c.bf16 %v840, %v839
        %v860 = vld [vmem:[%s9] sm:$0xf]
        %v861 = vld [vmem:[%s9 + $0x4] sm:$0xf]
        %v862 = vld [vmem:[%s9 + $0x8] sm:$0xf]
        %v863 = vld [vmem:[%s9 + $0xc] sm:$0xf]
        %v864 = vld [vmem:[%s9 + $0x10] sm:$0xf]
        %v865 = vld [vmem:[%s9 + $0x14] sm:$0xf]
        %v866 = vld [vmem:[%s9 + $0x18] sm:$0xf]
        %v867 = vld [vmem:[%s9 + $0x1c] sm:$0xf]
        %v868 = vld [vmem:[%s9 + $0x20] sm:$0xf]
        %v869 = vld [vmem:[%s9 + $0x24] sm:$0xf]
        %v870 = vld [vmem:[%s9 + $0x28] sm:$0xf]
        %v871 = vld [vmem:[%s9 + $0x2c] sm:$0xf]
        %v872 = vld [vmem:[%s9 + $0x30] sm:$0xf]
        %v873 = vld [vmem:[%s9 + $0x34] sm:$0xf]
        %v874 = vld [vmem:[%s9 + $0x38] sm:$0xf]
        %v875 = vld [vmem:[%s9 + $0x3c] sm:$0xf]
        %v876 = vld [vmem:[%s9 + $0x40] sm:$0xf]
        %v877 = vld [vmem:[%s9 + $0x44] sm:$0xf]
        %v878 = vld [vmem:[%s9 + $0x48] sm:$0xf]
        %v879 = vld [vmem:[%s9 + $0x4c] sm:$0xf]
        %v880 = vld [vmem:[%s9 + $0x50] sm:$0xf]
        %v881 = vld [vmem:[%s9 + $0x54] sm:$0xf]
        %v882 = vld [vmem:[%s9 + $0x58] sm:$0xf]
        %v883 = vld [vmem:[%s9 + $0x5c] sm:$0xf]
        %v884 = vld [vmem:[%s9 + $0x60] sm:$0xf]
        %v885 = vld [vmem:[%s9 + $0x64] sm:$0xf]
        %v886 = vld [vmem:[%s9 + $0x68] sm:$0xf]
        %v887 = vld [vmem:[%s9 + $0x6c] sm:$0xf]
        %v888 = vld [vmem:[%s9 + $0x70] sm:$0xf]
        %v889 = vld [vmem:[%s9 + $0x74] sm:$0xf]
        %v890 = vld [vmem:[%s9 + $0x78] sm:$0xf]
        %v891 = vld [vmem:[%s9 + $0x7c] sm:$0xf]
        %v892 = vld [vmem:[%s9 + $0x80] sm:$0xf]
        %v893 = vld [vmem:[%s9 + $0x84] sm:$0xf]
        %v894 = vld [vmem:[%s9 + $0x88] sm:$0xf]
        %v895 = vld [vmem:[%s9 + $0x8c] sm:$0xf]
        %v896 = vld [vmem:[%s10] sm:$0x1]
        %v898 = vlaneseq
        %v899 = vshrl.u32 %v898, 7
        %v900 = vsub.s32 0, %v899
        %v901 = vrot.slane %v896, %v900
        %v939 = vunpack.c.l.b16 %v860
        %v940 = vunpack.c.l.b16 %v861
        %v941 = vunpack.c.l.b16 %v862
        %v942 = vunpack.c.l.b16 %v863
        %v943 = vunpack.c.l.b16 %v864
        %v944 = vunpack.c.l.b16 %v865
        %v945 = vunpack.c.l.b16 %v866
        %v946 = vunpack.c.l.b16 %v867
        %v947 = vunpack.c.l.b16 %v868
        %v948 = vunpack.c.l.b16 %v869
        %v949 = vunpack.c.l.b16 %v870
        %v950 = vunpack.c.l.b16 %v871
        %v951 = vunpack.c.l.b16 %v872
        %v952 = vunpack.c.l.b16 %v873
        %v953 = vunpack.c.l.b16 %v874
        %v954 = vunpack.c.l.b16 %v875
        %v955 = vunpack.c.l.b16 %v876
        %v956 = vunpack.c.l.b16 %v877
        %v957 = vunpack.c.l.b16 %v878
        %v958 = vunpack.c.l.b16 %v879
        %v959 = vunpack.c.l.b16 %v880
        %v960 = vunpack.c.l.b16 %v881
        %v961 = vunpack.c.l.b16 %v882
        %v962 = vunpack.c.l.b16 %v883
        %v963 = vunpack.c.l.b16 %v884
        %v964 = vunpack.c.l.b16 %v885
        %v965 = vunpack.c.l.b16 %v886
        %v966 = vunpack.c.l.b16 %v887
        %v967 = vunpack.c.l.b16 %v888
        %v968 = vunpack.c.l.b16 %v889
        %v969 = vunpack.c.l.b16 %v890
        %v970 = vunpack.c.l.b16 %v891
        %v971 = vunpack.c.l.b16 %v892
        %v972 = vunpack.c.l.b16 %v893
        %v973 = vunpack.c.l.b16 %v894
        %v974 = vunpack.c.l.b16 %v895
        %v975 = vpack.c.b16 %v940, %v939
        %v976 = vpack.c.b16 %v942, %v941
        %v977 = vpack.c.b16 %v944, %v943
        %v978 = vpack.c.b16 %v946, %v945
        %v979 = vpack.c.b16 %v948, %v947
        %v980 = vpack.c.b16 %v950, %v949
        %v981 = vpack.c.b16 %v952, %v951
        %v982 = vpack.c.b16 %v954, %v953
        %v983 = vpack.c.b16 %v956, %v955
        %v984 = vpack.c.b16 %v958, %v957
        %v985 = vpack.c.b16 %v960, %v959
        %v986 = vpack.c.b16 %v962, %v961
        %v987 = vpack.c.b16 %v964, %v963
        %v988 = vpack.c.b16 %v966, %v965
        %v989 = vpack.c.b16 %v968, %v967
        %v990 = vpack.c.b16 %v970, %v969
        %v991 = vpack.c.b16 %v972, %v971
        %v992 = vpack.c.b16 %v974, %v973
        %v1012 = vsel %vm463, %v859, 0
        %1014 = vmatprep.subr.bf16.mxu0 0
        %1015 = vmatpush1.bf16.msra.mxu0 %v975
        %1016 = vmatprep.subr.bf16.mxu0 0
        %1017 = vmatpush1.bf16.msra.mxu0 %v976
        %1018 = vmatprep.subr.bf16.mxu0 0
        %1019 = vmatpush1.bf16.msra.mxu0 %v977
        %1020 = vmatprep.subr.bf16.mxu0 0
        %1021 = vmatpush1.bf16.msra.mxu0 %v978
        %1022 = vmatprep.subr.bf16.mxu0 0
        %1023 = vmatpush1.bf16.msra.mxu0 %v979
        %1024 = vmatprep.subr.bf16.mxu0 0
        %1025 = vmatpush1.bf16.msra.mxu0 %v980
        %1026 = vmatprep.subr.bf16.mxu0 0
        %1027 = vmatpush1.bf16.msra.mxu0 %v981
        %1028 = vmatprep.subr.bf16.mxu0 0
        %1029 = vmatpush1.bf16.msra.mxu0 %v982
        %1030 = vmatprep.subr.bf16.mxu0 0
        %1031 = vmatpush1.bf16.msra.mxu0 %v983
        %1032 = vmatprep.subr.bf16.mxu0 0
        %1033 = vmatpush1.bf16.msra.mxu0 %v984
        %1034 = vmatprep.subr.bf16.mxu0 0
        %1035 = vmatpush1.bf16.msra.mxu0 %v985
        %1036 = vmatprep.subr.bf16.mxu0 0
        %1037 = vmatpush1.bf16.msra.mxu0 %v986
        %1038 = vmatprep.subr.bf16.mxu0 0
        %1039 = vmatpush1.bf16.msra.mxu0 %v987
        %1040 = vmatprep.subr.bf16.mxu0 0
        %1041 = vmatpush1.bf16.msra.mxu0 %v988
        %1042 = vmatprep.subr.bf16.mxu0 0
        %1043 = vmatpush1.bf16.msra.mxu0 %v989
        %1044 = vmatprep.subr.bf16.mxu0 0
        %1045 = vmatpush1.bf16.msra.mxu0 %v990
        %1046 = vmatprep.mubr.bf16.mxu0 %v858
        %1047 = vmatmul.mubr.bf16.gmra.mrb[0].mxu0 %v857
        %v1048 = vpop.f32.mrb[0].mxu0
        %v1049 = vadd.f32 %v901, %v1048
        %v1050 = vpop.f32.mrb[0].mxu0
        %v1051 = vpop.f32.mrb[0].mxu0
        %v1052 = vadd.f32 %v901, %v1051
        %v1053 = vpop.f32.mrb[0].mxu0
        %1054 = vdwg.mxu0
        %1055 = vmatprep.subr.bf16.mxu0 0
        %1056 = vmatpush1.bf16.msra.mxu0 %v991
        %1057 = vmatprep.subr.bf16.mxu0 0
        %1058 = vmatpush1.bf16.msra.mxu0 %v992
        %1059 = vmatprep.subr.bf16.mxu0 0
        %1060 = vmatpush1.bf16.msra.mxu0 0
        %1061 = vmatprep.subr.bf16.mxu0 0
        %1062 = vmatpush1.bf16.msra.mxu0 0
        %1063 = vmatprep.subr.bf16.mxu0 0
        %1064 = vmatpush1.bf16.msra.mxu0 0
        %1065 = vmatprep.subr.bf16.mxu0 0
        %1066 = vmatpush1.bf16.msra.mxu0 0
        %1067 = vmatprep.subr.bf16.mxu0 0
        %1068 = vmatpush1.bf16.msra.mxu0 0
        %1069 = vmatprep.subr.bf16.mxu0 0
        %1070 = vmatpush1.bf16.msra.mxu0 0
        %1071 = vmatprep.subr.bf16.mxu0 0
        %1072 = vmatpush1.bf16.msra.mxu0 0
        %1073 = vmatprep.subr.bf16.mxu0 0
        %1074 = vmatpush1.bf16.msra.mxu0 0
        %1075 = vmatprep.subr.bf16.mxu0 0
        %1076 = vmatpush1.bf16.msra.mxu0 0
        %1077 = vmatprep.subr.bf16.mxu0 0
        %1078 = vmatpush1.bf16.msra.mxu0 0
        %1079 = vmatprep.subr.bf16.mxu0 0
        %1080 = vmatpush1.bf16.msra.mxu0 0
        %1081 = vmatprep.subr.bf16.mxu0 0
        %1082 = vmatpush1.bf16.msra.mxu0 0
        %1083 = vmatprep.subr.bf16.mxu0 0
        %1084 = vmatpush1.bf16.msra.mxu0 0
        %1085 = vmatprep.subr.bf16.mxu0 0
        %1086 = vmatpush1.bf16.msra.mxu0 0
        %1087 = vmatprep.mubr.bf16.mxu0 0
        %1088 = vmatmul.mubr.bf16.gmra.mrb[0].mxu0 %v1012
        %v1089 = vpop.f32.mrb[0].mxu0
        %v1090 = vadd.f32 %v1049, %v1089
        %v1091 = vpop.f32.mrb[0].mxu0
        %v1092 = vpop.f32.mrb[0].mxu0
        %v1093 = vadd.f32 %v1052, %v1092
        %v1094 = vpop.f32.mrb[0].mxu0
        %1095 = vdwg.mxu0
        %v1096 = vmul.f32 %v1090, 0.2
        %v1097 = vmul.f32 %v1093, 0.2
        %v1098 = vmax.f32 %v1090, %v1096
        %v1099 = vmax.f32 %v1093, %v1097
        %v1102 = vcombine.high %v1098, %v1098
        %v1103 = vcombine.high %v1099, %v1099
        %v1105 = vunpack.c.l.s4 1966171168
        %v1106 = vunpack.c.0.s8 %v1105
        %v1107 = vlaneseq
        %v1108 = vshrl.u32 %v1107, 7
        %v1109 = vsub.s32 %v1106, %v1108
        %v1110 = vrot.slane %v1098, %v1109
        %v1111 = vcombine.high %v1110, %v1110
        %v1113 = vunpack.c.l.s4 1966171168
        %v1114 = vunpack.c.0.s8 %v1113
        %v1115 = vlaneseq
        %v1116 = vshrl.u32 %v1115, 7
        %v1117 = vsub.s32 %v1114, %v1116
        %v1118 = vrot.slane %v1110, %v1117
        %v1120 = vunpack.c.l.s4 1966171168
        %v1121 = vunpack.c.0.s8 %v1120
        %v1122 = vlaneseq
        %v1123 = vshrl.u32 %v1122, 7
        %v1124 = vsub.s32 %v1121, %v1123
        %v1125 = vrot.slane %v1111, %v1124
        %v1126 = vcombine.high %v1118, %v1118
        %v1127 = vcombine.high %v1125, %v1125
        %v1129 = vunpack.c.l.s4 1966171168
        %v1130 = vunpack.c.0.s8 %v1129
        %v1131 = vlaneseq
        %v1132 = vshrl.u32 %v1131, 7
        %v1133 = vsub.s32 %v1130, %v1132
        %v1134 = vrot.slane %v1102, %v1133
        %v1135 = vcombine.high %v1134, %v1134
        %v1137 = vunpack.c.l.s4 1966171168
        %v1138 = vunpack.c.0.s8 %v1137
        %v1139 = vlaneseq
        %v1140 = vshrl.u32 %v1139, 7
        %v1141 = vsub.s32 %v1138, %v1140
        %v1142 = vrot.slane %v1134, %v1141
        %v1144 = vunpack.c.l.s4 1966171168
        %v1145 = vunpack.c.0.s8 %v1144
        %v1146 = vlaneseq
        %v1147 = vshrl.u32 %v1146, 7
        %v1148 = vsub.s32 %v1145, %v1147
        %v1149 = vrot.slane %v1135, %v1148
        %v1150 = vcombine.high %v1142, %v1142
        %v1151 = vcombine.high %v1149, %v1149
        %v1153 = vunpack.c.l.s4 1966171168
        %v1154 = vunpack.c.0.s8 %v1153
        %v1155 = vlaneseq
        %v1156 = vshrl.u32 %v1155, 7
        %v1157 = vsub.s32 %v1154, %v1156
        %v1158 = vrot.slane %v1099, %v1157
        %v1159 = vcombine.high %v1158, %v1158
        %v1161 = vunpack.c.l.s4 1966171168
        %v1162 = vunpack.c.0.s8 %v1161
        %v1163 = vlaneseq
        %v1164 = vshrl.u32 %v1163, 7
        %v1165 = vsub.s32 %v1162, %v1164
        %v1166 = vrot.slane %v1158, %v1165
        %v1168 = vunpack.c.l.s4 1966171168
        %v1169 = vunpack.c.0.s8 %v1168
        %v1170 = vlaneseq
        %v1171 = vshrl.u32 %v1170, 7
        %v1172 = vsub.s32 %v1169, %v1171
        %v1173 = vrot.slane %v1159, %v1172
        %v1174 = vcombine.high %v1166, %v1166
        %v1175 = vcombine.high %v1173, %v1173
        %v1177 = vunpack.c.l.s4 1966171168
        %v1178 = vunpack.c.0.s8 %v1177
        %v1179 = vlaneseq
        %v1180 = vshrl.u32 %v1179, 7
        %v1181 = vsub.s32 %v1178, %v1180
        %v1182 = vrot.slane %v1103, %v1181
        %v1183 = vcombine.high %v1182, %v1182
        %v1185 = vunpack.c.l.s4 1966171168
        %v1186 = vunpack.c.0.s8 %v1185
        %v1187 = vlaneseq
        %v1188 = vshrl.u32 %v1187, 7
        %v1189 = vsub.s32 %v1186, %v1188
        %v1190 = vrot.slane %v1182, %v1189
        %v1192 = vunpack.c.l.s4 1966171168
        %v1193 = vunpack.c.0.s8 %v1192
        %v1194 = vlaneseq
        %v1195 = vshrl.u32 %v1194, 7
        %v1196 = vsub.s32 %v1193, %v1195
        %v1197 = vrot.slane %v1183, %v1196
        %v1198 = vcombine.high %v1190, %v1190
        %v1199 = vcombine.high %v1197, %v1197
        %v1200 = vlaneseq
        %v1201 = vshrl.u32 %v1200, 7
        %v1202 = vsub.s32 0, %v1201
        %v1203 = vrot.slane %v1118, %v1202
        %v1204 = vlaneseq
        %v1205 = vshrl.u32 %v1204, 7
        %v1206 = vsub.s32 0, %v1205
        %v1207 = vrot.slane %v1125, %v1206
        %v1208 = vlaneseq
        %v1209 = vshrl.u32 %v1208, 7
        %v1210 = vsub.s32 0, %v1209
        %v1211 = vrot.slane %v1126, %v1210
        %v1212 = vlaneseq
        %v1213 = vshrl.u32 %v1212, 7
        %v1214 = vsub.s32 0, %v1213
        %v1215 = vrot.slane %v1127, %v1214
        %v1216 = vlaneseq
        %v1217 = vshrl.u32 %v1216, 7
        %v1218 = vsub.s32 0, %v1217
        %v1219 = vrot.slane %v1142, %v1218
        %v1220 = vlaneseq
        %v1221 = vshrl.u32 %v1220, 7
        %v1222 = vsub.s32 0, %v1221
        %v1223 = vrot.slane %v1149, %v1222
        %v1224 = vlaneseq
        %v1225 = vshrl.u32 %v1224, 7
        %v1226 = vsub.s32 0, %v1225
        %v1227 = vrot.slane %v1150, %v1226
        %v1228 = vlaneseq
        %v1229 = vshrl.u32 %v1228, 7
        %v1230 = vsub.s32 0, %v1229
        %v1231 = vrot.slane %v1151, %v1230
        %v1232 = vlaneseq
        %v1233 = vshrl.u32 %v1232, 7
        %v1234 = vsub.s32 0, %v1233
        %v1235 = vrot.slane %v1166, %v1234
        %v1236 = vlaneseq
        %v1237 = vshrl.u32 %v1236, 7
        %v1238 = vsub.s32 0, %v1237
        %v1239 = vrot.slane %v1173, %v1238
        %v1240 = vlaneseq
        %v1241 = vshrl.u32 %v1240, 7
        %v1242 = vsub.s32 0, %v1241
        %v1243 = vrot.slane %v1174, %v1242
        %v1244 = vlaneseq
        %v1245 = vshrl.u32 %v1244, 7
        %v1246 = vsub.s32 0, %v1245
        %v1247 = vrot.slane %v1175, %v1246
        %v1248 = vlaneseq
        %v1249 = vshrl.u32 %v1248, 7
        %v1250 = vsub.s32 0, %v1249
        %v1251 = vrot.slane %v1190, %v1250
        %v1252 = vlaneseq
        %v1253 = vshrl.u32 %v1252, 7
        %v1254 = vsub.s32 0, %v1253
        %v1255 = vrot.slane %v1197, %v1254
        %v1256 = vlaneseq
        %v1257 = vshrl.u32 %v1256, 7
        %v1258 = vsub.s32 0, %v1257
        %v1259 = vrot.slane %v1198, %v1258
        %v1260 = vlaneseq
        %v1261 = vshrl.u32 %v1260, 7
        %v1262 = vsub.s32 0, %v1261
        %v1263 = vrot.slane %v1199, %v1262
        %v1281 = vcombine.high %v699, %v699
        %v1283 = vunpack.c.l.s4 1983009808
        %v1284 = vunpack.c.0.s8 %v1283
        %v1285 = vlaneseq
        %v1286 = vshrl.u32 %v1285, 7
        %v1287 = vsub.s32 %v1284, %v1286
        %v1288 = vrot.slane %v699, %v1287
        %v1290 = vunpack.c.l.s4 1983009808
        %v1291 = vunpack.c.0.s8 %v1290
        %v1292 = vlaneseq
        %v1293 = vshrl.u32 %v1292, 7
        %v1294 = vsub.s32 %v1291, %v1293
        %v1295 = vrot.slane %v1281, %v1294
        %v1296 = vcombine.high %v1288, %v1288
        %v1297 = vcombine.high %v1295, %v1295
        %1298 = vrot.lane.b32.xlu0 %v1288, 96
        %v1299 = vpop.permute.xlu0 %1298
        %1300 = vrot.lane.b32.xlu0 %v1296, 96
        %v1301 = vpop.permute.xlu0 %1300
        %1302 = vrot.lane.b32.xlu0 %v1295, 96
        %v1303 = vpop.permute.xlu0 %1302
        %1304 = vrot.lane.b32.xlu0 %v1297, 96
        %v1305 = vpop.permute.xlu0 %1304
        %v1310 = vmul.f32 %v1203, %v1299
        %v1311 = vmul.f32 %v1207, %v1301
        %v1312 = vmul.f32 %v1211, %v1303
        %v1313 = vmul.f32 %v1215, %v1305
        %v1314 = vmul.f32 %v1219, %v1299
        %v1315 = vmul.f32 %v1223, %v1301
        %v1316 = vmul.f32 %v1227, %v1303
        %v1317 = vmul.f32 %v1231, %v1305
        %v1318 = vmul.f32 %v1235, %v1299
        %v1319 = vmul.f32 %v1239, %v1301
        %v1320 = vmul.f32 %v1243, %v1303
        %v1321 = vmul.f32 %v1247, %v1305
        %v1322 = vmul.f32 %v1251, %v1299
        %v1323 = vmul.f32 %v1255, %v1301
        %v1324 = vmul.f32 %v1259, %v1303
        %v1325 = vmul.f32 %v1263, %v1305
        %v1342 = vcombine.low %v1310, %v1311
        %v1343 = vcombine.low %v1312, %v1313
        %v1345 = vunpack.c.l.s4 1983009808
        %v1346 = vunpack.c.0.s8 %v1345
        %v1347 = vlaneseq
        %v1348 = vshrl.u32 %v1347, 7
        %v1349 = vsub.s32 %v1346, %v1348
        %v1350 = vrot.slane %v1342, %v1349
        %v1352 = vunpack.c.l.s4 1983009808
        %v1353 = vunpack.c.0.s8 %v1352
        %v1354 = vlaneseq
        %v1355 = vshrl.u32 %v1354, 7
        %v1356 = vsub.s32 %v1353, %v1355
        %v1357 = vrot.slane %v1343, %v1356
        %v1358 = vcombine.low %v1350, %v1357
        %v1359 = vcombine.low %v1314, %v1315
        %v1360 = vcombine.low %v1316, %v1317
        %v1362 = vunpack.c.l.s4 1983009808
        %v1363 = vunpack.c.0.s8 %v1362
        %v1364 = vlaneseq
        %v1365 = vshrl.u32 %v1364, 7
        %v1366 = vsub.s32 %v1363, %v1365
        %v1367 = vrot.slane %v1359, %v1366
        %v1369 = vunpack.c.l.s4 1983009808
        %v1370 = vunpack.c.0.s8 %v1369
        %v1371 = vlaneseq
        %v1372 = vshrl.u32 %v1371, 7
        %v1373 = vsub.s32 %v1370, %v1372
        %v1374 = vrot.slane %v1360, %v1373
        %v1375 = vcombine.low %v1367, %v1374
        %v1376 = vcombine.low %v1318, %v1319
        %v1377 = vcombine.low %v1320, %v1321
        %v1379 = vunpack.c.l.s4 1983009808
        %v1380 = vunpack.c.0.s8 %v1379
        %v1381 = vlaneseq
        %v1382 = vshrl.u32 %v1381, 7
        %v1383 = vsub.s32 %v1380, %v1382
        %v1384 = vrot.slane %v1376, %v1383
        %v1386 = vunpack.c.l.s4 1983009808
        %v1387 = vunpack.c.0.s8 %v1386
        %v1388 = vlaneseq
        %v1389 = vshrl.u32 %v1388, 7
        %v1390 = vsub.s32 %v1387, %v1389
        %v1391 = vrot.slane %v1377, %v1390
        %v1392 = vcombine.low %v1384, %v1391
        %v1393 = vcombine.low %v1322, %v1323
        %v1394 = vcombine.low %v1324, %v1325
        %v1396 = vunpack.c.l.s4 1983009808
        %v1397 = vunpack.c.0.s8 %v1396
        %v1398 = vlaneseq
        %v1399 = vshrl.u32 %v1398, 7
        %v1400 = vsub.s32 %v1397, %v1399
        %v1401 = vrot.slane %v1393, %v1400
        %v1403 = vunpack.c.l.s4 1983009808
        %v1404 = vunpack.c.0.s8 %v1403
        %v1405 = vlaneseq
        %v1406 = vshrl.u32 %v1405, 7
        %v1407 = vsub.s32 %v1404, %v1406
        %v1408 = vrot.slane %v1394, %v1407
        %v1409 = vcombine.low %v1401, %v1408
        %1414 = vst.msk [vmem:[%s704 + $0x1] sm:$0xff] %vm463, %v1358
        %1415 = vst.msk [vmem:[%s704 + $0x19] sm:$0xff] %vm463, %v1358
        %1416 = vst.msk [vmem:[%s704 + $0x31] sm:$0xff] %vm463, %v1375
        %1417 = vst.msk [vmem:[%s704 + $0x49] sm:$0xff] %vm463, %v1375
        %1418 = vst.msk [vmem:[%s704 + $0x61] sm:$0xff] %vm463, %v1392
        %1419 = vst.msk [vmem:[%s704 + $0x79] sm:$0xff] %vm463, %v1392
        %1420 = vst.msk [vmem:[%s704 + $0x91] sm:$0xff] %vm463, %v1409
        %1421 = vst.msk [vmem:[%s704 + $0xa9] sm:$0xff] %vm463, %v1409
        %v1422 = vld [vmem:[#allocation2] sm:$0xff]
        %v1423 = vld [vmem:[#allocation2 + $0x18] sm:$0xff]
        %v1424 = vld [vmem:[#allocation2 + $0x30] sm:$0xff]
        %v1425 = vld [vmem:[#allocation2 + $0x48] sm:$0xff]
        %v1426 = vld [vmem:[#allocation2 + $0x60] sm:$0xff]
        %v1427 = vld [vmem:[#allocation2 + $0x78] sm:$0xff]
        %v1428 = vld [vmem:[#allocation2 + $0x90] sm:$0xff]
        %v1429 = vld [vmem:[#allocation2 + $0xa8] sm:$0xff]
        %v1430 = vld [vmem:[#allocation2 + $0x1] sm:$0xff]
        %v1431 = vld [vmem:[#allocation2 + $0x19] sm:$0xff]
        %v1432 = vld [vmem:[#allocation2 + $0x31] sm:$0xff]
        %v1433 = vld [vmem:[#allocation2 + $0x49] sm:$0xff]
        %v1434 = vld [vmem:[#allocation2 + $0x61] sm:$0xff]
        %v1435 = vld [vmem:[#allocation2 + $0x79] sm:$0xff]
        %v1436 = vld [vmem:[#allocation2 + $0x91] sm:$0xff]
        %v1437 = vld [vmem:[#allocation2 + $0xa9] sm:$0xff]
        %v1438 = vld [vmem:[#allocation2 + $0x2] sm:$0xff]
        %v1439 = vld [vmem:[#allocation2 + $0x1a] sm:$0xff]
        %v1440 = vld [vmem:[#allocation2 + $0x32] sm:$0xff]
        %v1441 = vld [vmem:[#allocation2 + $0x4a] sm:$0xff]
        %v1442 = vld [vmem:[#allocation2 + $0x62] sm:$0xff]
        %v1443 = vld [vmem:[#allocation2 + $0x7a] sm:$0xff]
        %v1444 = vld [vmem:[#allocation2 + $0x92] sm:$0xff]
        %v1445 = vld [vmem:[#allocation2 + $0xaa] sm:$0xff]
        %v1446 = vld [vmem:[%s704] sm:$0xff]
        %v1447 = vld [vmem:[%s704 + $0x18] sm:$0xff]
        %v1448 = vld [vmem:[%s704 + $0x30] sm:$0xff]
        %v1449 = vld [vmem:[%s704 + $0x48] sm:$0xff]
        %v1450 = vld [vmem:[%s704 + $0x60] sm:$0xff]
        %v1451 = vld [vmem:[%s704 + $0x78] sm:$0xff]
        %v1452 = vld [vmem:[%s704 + $0x90] sm:$0xff]
        %v1453 = vld [vmem:[%s704 + $0xa8] sm:$0xff]
        %v1454 = vld [vmem:[%s704 + $0x1] sm:$0xff]
        %v1455 = vld [vmem:[%s704 + $0x19] sm:$0xff]
        %v1456 = vld [vmem:[%s704 + $0x31] sm:$0xff]
        %v1457 = vld [vmem:[%s704 + $0x49] sm:$0xff]
        %v1458 = vld [vmem:[%s704 + $0x61] sm:$0xff]
        %v1459 = vld [vmem:[%s704 + $0x79] sm:$0xff]
        %v1460 = vld [vmem:[%s704 + $0x91] sm:$0xff]
        %v1461 = vld [vmem:[%s704 + $0xa9] sm:$0xff]
        %v1462 = vld [vmem:[%s704 + $0x2] sm:$0xff]
        %v1463 = vld [vmem:[%s704 + $0x1a] sm:$0xff]
        %v1464 = vld [vmem:[%s704 + $0x32] sm:$0xff]
        %v1465 = vld [vmem:[%s704 + $0x4a] sm:$0xff]
        %v1466 = vld [vmem:[%s704 + $0x62] sm:$0xff]
        %v1467 = vld [vmem:[%s704 + $0x7a] sm:$0xff]
        %v1468 = vld [vmem:[%s704 + $0x92] sm:$0xff]
        %v1469 = vld [vmem:[%s704 + $0xaa] sm:$0xff]
        %v1470 = vld [vmem:[%s734] sm:$0xff]
        %v1471 = vld [vmem:[%s734 + $0x18] sm:$0xff]
        %v1472 = vld [vmem:[%s734 + $0x30] sm:$0xff]
        %v1473 = vld [vmem:[%s734 + $0x48] sm:$0xff]
        %v1474 = vld [vmem:[%s734 + $0x60] sm:$0xff]
        %v1475 = vld [vmem:[%s734 + $0x78] sm:$0xff]
        %v1476 = vld [vmem:[%s734 + $0x90] sm:$0xff]
        %v1477 = vld [vmem:[%s734 + $0xa8] sm:$0xff]
        %v1478 = vld [vmem:[%s734 + $0x1] sm:$0xff]
        %v1479 = vld [vmem:[%s734 + $0x19] sm:$0xff]
        %v1480 = vld [vmem:[%s734 + $0x31] sm:$0xff]
        %v1481 = vld [vmem:[%s734 + $0x49] sm:$0xff]
        %v1482 = vld [vmem:[%s734 + $0x61] sm:$0xff]
        %v1483 = vld [vmem:[%s734 + $0x79] sm:$0xff]
        %v1484 = vld [vmem:[%s734 + $0x91] sm:$0xff]
        %v1485 = vld [vmem:[%s734 + $0xa9] sm:$0xff]
        %v1486 = vld [vmem:[%s734 + $0x2] sm:$0xff]
        %v1487 = vld [vmem:[%s734 + $0x1a] sm:$0xff]
        %v1488 = vld [vmem:[%s734 + $0x32] sm:$0xff]
        %v1489 = vld [vmem:[%s734 + $0x4a] sm:$0xff]
        %v1490 = vld [vmem:[%s734 + $0x62] sm:$0xff]
        %v1491 = vld [vmem:[%s734 + $0x7a] sm:$0xff]
        %v1492 = vld [vmem:[%s734 + $0x92] sm:$0xff]
        %v1493 = vld [vmem:[%s734 + $0xaa] sm:$0xff]
        %1502 = vrot.lane.b32.xlu0 %v1430, 32
        %v1503 = vpop.permute.xlu0 %1502
        %1504 = vrot.lane.b32.xlu0 %v1431, 32
        %v1505 = vpop.permute.xlu0 %1504
        %1506 = vrot.lane.b32.xlu0 %v1432, 32
        %v1507 = vpop.permute.xlu0 %1506
        %1508 = vrot.lane.b32.xlu0 %v1433, 32
        %v1509 = vpop.permute.xlu0 %1508
        %1510 = vrot.lane.b32.xlu0 %v1434, 32
        %v1511 = vpop.permute.xlu0 %1510
        %1512 = vrot.lane.b32.xlu0 %v1435, 32
        %v1513 = vpop.permute.xlu0 %1512
        %1514 = vrot.lane.b32.xlu0 %v1436, 32
        %v1515 = vpop.permute.xlu0 %1514
        %1516 = vrot.lane.b32.xlu0 %v1437, 32
        %v1517 = vpop.permute.xlu0 %1516
        %1534 = vrot.lane.b32.xlu0 %v1438, 64
        %v1535 = vpop.permute.xlu0 %1534
        %1536 = vrot.lane.b32.xlu0 %v1439, 64
        %v1537 = vpop.permute.xlu0 %1536
        %1538 = vrot.lane.b32.xlu0 %v1440, 64
        %v1539 = vpop.permute.xlu0 %1538
        %1540 = vrot.lane.b32.xlu0 %v1441, 64
        %v1541 = vpop.permute.xlu0 %1540
        %1542 = vrot.lane.b32.xlu0 %v1442, 64
        %v1543 = vpop.permute.xlu0 %1542
        %1544 = vrot.lane.b32.xlu0 %v1443, 64
        %v1545 = vpop.permute.xlu0 %1544
        %1546 = vrot.lane.b32.xlu0 %v1444, 64
        %v1547 = vpop.permute.xlu0 %1546
        %1548 = vrot.lane.b32.xlu0 %v1445, 64
        %v1549 = vpop.permute.xlu0 %1548
        %1566 = vrot.lane.b32.xlu0 %v1446, 96
        %v1567 = vpop.permute.xlu0 %1566
        %1568 = vrot.lane.b32.xlu0 %v1447, 96
        %v1569 = vpop.permute.xlu0 %1568
        %1570 = vrot.lane.b32.xlu0 %v1448, 96
        %v1571 = vpop.permute.xlu0 %1570
        %1572 = vrot.lane.b32.xlu0 %v1449, 96
        %v1573 = vpop.permute.xlu0 %1572
        %1574 = vrot.lane.b32.xlu0 %v1450, 96
        %v1575 = vpop.permute.xlu0 %1574
        %1576 = vrot.lane.b32.xlu0 %v1451, 96
        %v1577 = vpop.permute.xlu0 %1576
        %1578 = vrot.lane.b32.xlu0 %v1452, 96
        %v1579 = vpop.permute.xlu0 %1578
        %1580 = vrot.lane.b32.xlu0 %v1453, 96
        %v1581 = vpop.permute.xlu0 %1580
        %1598 = vrot.lane.b32.xlu0 %v1462, 32
        %v1599 = vpop.permute.xlu0 %1598
        %1600 = vrot.lane.b32.xlu0 %v1463, 32
        %v1601 = vpop.permute.xlu0 %1600
        %1602 = vrot.lane.b32.xlu0 %v1464, 32
        %v1603 = vpop.permute.xlu0 %1602
        %1604 = vrot.lane.b32.xlu0 %v1465, 32
        %v1605 = vpop.permute.xlu0 %1604
        %1606 = vrot.lane.b32.xlu0 %v1466, 32
        %v1607 = vpop.permute.xlu0 %1606
        %1608 = vrot.lane.b32.xlu0 %v1467, 32
        %v1609 = vpop.permute.xlu0 %1608
        %1610 = vrot.lane.b32.xlu0 %v1468, 32
        %v1611 = vpop.permute.xlu0 %1610
        %1612 = vrot.lane.b32.xlu0 %v1469, 32
        %v1613 = vpop.permute.xlu0 %1612
        %1630 = vrot.lane.b32.xlu0 %v1470, 64
        %v1631 = vpop.permute.xlu0 %1630
        %1632 = vrot.lane.b32.xlu0 %v1471, 64
        %v1633 = vpop.permute.xlu0 %1632
        %1634 = vrot.lane.b32.xlu0 %v1472, 64
        %v1635 = vpop.permute.xlu0 %1634
        %1636 = vrot.lane.b32.xlu0 %v1473, 64
        %v1637 = vpop.permute.xlu0 %1636
        %1638 = vrot.lane.b32.xlu0 %v1474, 64
        %v1639 = vpop.permute.xlu0 %1638
        %1640 = vrot.lane.b32.xlu0 %v1475, 64
        %v1641 = vpop.permute.xlu0 %1640
        %1642 = vrot.lane.b32.xlu0 %v1476, 64
        %v1643 = vpop.permute.xlu0 %1642
        %1644 = vrot.lane.b32.xlu0 %v1477, 64
        %v1645 = vpop.permute.xlu0 %1644
        %1662 = vrot.lane.b32.xlu0 %v1478, 96
        %v1663 = vpop.permute.xlu0 %1662
        %1664 = vrot.lane.b32.xlu0 %v1479, 96
        %v1665 = vpop.permute.xlu0 %1664
        %1666 = vrot.lane.b32.xlu0 %v1480, 96
        %v1667 = vpop.permute.xlu0 %1666
        %1668 = vrot.lane.b32.xlu0 %v1481, 96
        %v1669 = vpop.permute.xlu0 %1668
        %1670 = vrot.lane.b32.xlu0 %v1482, 96
        %v1671 = vpop.permute.xlu0 %1670
        %1672 = vrot.lane.b32.xlu0 %v1483, 96
        %v1673 = vpop.permute.xlu0 %1672
        %1674 = vrot.lane.b32.xlu0 %v1484, 96
        %v1675 = vpop.permute.xlu0 %1674
        %1676 = vrot.lane.b32.xlu0 %v1485, 96
        %v1677 = vpop.permute.xlu0 %1676
        %v1686 = vsel %vm463, %v1422, %v1503
        %v1687 = vsel %vm463, %v1423, %v1505
        %v1688 = vsel %vm463, %v1424, %v1507
        %v1689 = vsel %vm463, %v1425, %v1509
        %v1690 = vsel %vm463, %v1426, %v1511
        %v1691 = vsel %vm463, %v1427, %v1513
        %v1692 = vsel %vm463, %v1428, %v1515
        %v1693 = vsel %vm463, %v1429, %v1517
        %v1694 = vsel %vm845, %v1686, %v1535
        %v1695 = vsel %vm845, %v1687, %v1537
        %v1696 = vsel %vm845, %v1688, %v1539
        %v1697 = vsel %vm845, %v1689, %v1541
        %v1698 = vsel %vm845, %v1690, %v1543
        %v1699 = vsel %vm845, %v1691, %v1545
        %v1700 = vsel %vm845, %v1692, %v1547
        %v1701 = vsel %vm845, %v1693, %v1549
        %v1702 = vsel %vm848, %v1694, %v1567
        %v1703 = vsel %vm848, %v1695, %v1569
        %v1704 = vsel %vm848, %v1696, %v1571
        %v1705 = vsel %vm848, %v1697, %v1573
        %v1706 = vsel %vm848, %v1698, %v1575
        %v1707 = vsel %vm848, %v1699, %v1577
        %v1708 = vsel %vm848, %v1700, %v1579
        %v1709 = vsel %vm848, %v1701, %v1581
        %v1710 = vsel %vm463, %v1454, %v1599
        %v1711 = vsel %vm463, %v1455, %v1601
        %v1712 = vsel %vm463, %v1456, %v1603
        %v1713 = vsel %vm463, %v1457, %v1605
        %v1714 = vsel %vm463, %v1458, %v1607
        %v1715 = vsel %vm463, %v1459, %v1609
        %v1716 = vsel %vm463, %v1460, %v1611
        %v1717 = vsel %vm463, %v1461, %v1613
        %v1718 = vsel %vm845, %v1710, %v1631
        %v1719 = vsel %vm845, %v1711, %v1633
        %v1720 = vsel %vm845, %v1712, %v1635
        %v1721 = vsel %vm845, %v1713, %v1637
        %v1722 = vsel %vm845, %v1714, %v1639
        %v1723 = vsel %vm845, %v1715, %v1641
        %v1724 = vsel %vm845, %v1716, %v1643
        %v1725 = vsel %vm845, %v1717, %v1645
        %v1726 = vsel %vm848, %v1718, %v1663
        %v1727 = vsel %vm848, %v1719, %v1665
        %v1728 = vsel %vm848, %v1720, %v1667
        %v1729 = vsel %vm848, %v1721, %v1669
        %v1730 = vsel %vm848, %v1722, %v1671
        %v1731 = vsel %vm848, %v1723, %v1673
        %v1732 = vsel %vm848, %v1724, %v1675
        %v1733 = vsel %vm848, %v1725, %v1677
        %v1734 = vpack.c.bf16 %v1703, %v1702
        %v1735 = vpack.c.bf16 %v1727, %v1726
        %v1736 = vpack.c.bf16 %v1487, %v1486
        %v1737 = vpack.c.bf16 %v1705, %v1704
        %v1738 = vpack.c.bf16 %v1729, %v1728
        %v1739 = vpack.c.bf16 %v1489, %v1488
        %v1740 = vpack.c.bf16 %v1707, %v1706
        %v1741 = vpack.c.bf16 %v1731, %v1730
        %v1742 = vpack.c.bf16 %v1491, %v1490
        %v1743 = vpack.c.bf16 %v1709, %v1708
        %v1744 = vpack.c.bf16 %v1733, %v1732
        %v1745 = vpack.c.bf16 %v1493, %v1492
        %s1746 = scalar_lea.vmem %s9, 144
        %v1747 = vld [vmem:[%s1746] sm:$0xf]
        %v1748 = vld [vmem:[%s1746 + $0x4] sm:$0xf]
        %v1749 = vld [vmem:[%s1746 + $0x8] sm:$0xf]
        %v1750 = vld [vmem:[%s1746 + $0xc] sm:$0xf]
        %v1751 = vld [vmem:[%s1746 + $0x10] sm:$0xf]
        %v1752 = vld [vmem:[%s1746 + $0x14] sm:$0xf]
        %v1753 = vld [vmem:[%s1746 + $0x18] sm:$0xf]
        %v1754 = vld [vmem:[%s1746 + $0x1c] sm:$0xf]
        %v1755 = vld [vmem:[%s1746 + $0x20] sm:$0xf]
        %v1756 = vld [vmem:[%s1746 + $0x24] sm:$0xf]
        %v1757 = vld [vmem:[%s1746 + $0x28] sm:$0xf]
        %v1758 = vld [vmem:[%s1746 + $0x2c] sm:$0xf]
        %v1759 = vld [vmem:[%s1746 + $0x30] sm:$0xf]
        %v1760 = vld [vmem:[%s1746 + $0x34] sm:$0xf]
        %v1761 = vld [vmem:[%s1746 + $0x38] sm:$0xf]
        %v1762 = vld [vmem:[%s1746 + $0x3c] sm:$0xf]
        %v1763 = vld [vmem:[%s1746 + $0x40] sm:$0xf]
        %v1764 = vld [vmem:[%s1746 + $0x44] sm:$0xf]
        %v1765 = vld [vmem:[%s1746 + $0x48] sm:$0xf]
        %v1766 = vld [vmem:[%s1746 + $0x4c] sm:$0xf]
        %v1767 = vld [vmem:[%s1746 + $0x50] sm:$0xf]
        %v1768 = vld [vmem:[%s1746 + $0x54] sm:$0xf]
        %v1769 = vld [vmem:[%s1746 + $0x58] sm:$0xf]
        %v1770 = vld [vmem:[%s1746 + $0x5c] sm:$0xf]
        %v1771 = vld [vmem:[%s1746 + $0x60] sm:$0xf]
        %v1772 = vld [vmem:[%s1746 + $0x64] sm:$0xf]
        %v1773 = vld [vmem:[%s1746 + $0x68] sm:$0xf]
        %v1774 = vld [vmem:[%s1746 + $0x6c] sm:$0xf]
        %v1775 = vld [vmem:[%s1746 + $0x70] sm:$0xf]
        %v1776 = vld [vmem:[%s1746 + $0x74] sm:$0xf]
        %v1777 = vld [vmem:[%s1746 + $0x78] sm:$0xf]
        %v1778 = vld [vmem:[%s1746 + $0x7c] sm:$0xf]
        %v1779 = vld [vmem:[%s1746 + $0x80] sm:$0xf]
        %v1780 = vld [vmem:[%s1746 + $0x84] sm:$0xf]
        %v1781 = vld [vmem:[%s1746 + $0x88] sm:$0xf]
        %v1782 = vld [vmem:[%s1746 + $0x8c] sm:$0xf]
        %s1783 = scalar_lea.vmem %s10, 1
        %v1784 = vld [vmem:[%s1783] sm:$0x1]
        %v1786 = vlaneseq
        %v1787 = vshrl.u32 %v1786, 7
        %v1788 = vsub.s32 0, %v1787
        %v1789 = vrot.slane %v1784, %v1788
        %v1827 = vunpack.c.l.b16 %v1747
        %v1828 = vunpack.c.l.b16 %v1748
        %v1829 = vunpack.c.l.b16 %v1749
        %v1830 = vunpack.c.l.b16 %v1750
        %v1831 = vunpack.c.l.b16 %v1751
        %v1832 = vunpack.c.l.b16 %v1752
        %v1833 = vunpack.c.l.b16 %v1753
        %v1834 = vunpack.c.l.b16 %v1754
        %v1835 = vunpack.c.l.b16 %v1755
        %v1836 = vunpack.c.l.b16 %v1756
        %v1837 = vunpack.c.l.b16 %v1757
        %v1838 = vunpack.c.l.b16 %v1758
        %v1839 = vunpack.c.l.b16 %v1759
        %v1840 = vunpack.c.l.b16 %v1760
        %v1841 = vunpack.c.l.b16 %v1761
        %v1842 = vunpack.c.l.b16 %v1762
        %v1843 = vunpack.c.l.b16 %v1763
        %v1844 = vunpack.c.l.b16 %v1764
        %v1845 = vunpack.c.l.b16 %v1765
        %v1846 = vunpack.c.l.b16 %v1766
        %v1847 = vunpack.c.l.b16 %v1767
        %v1848 = vunpack.c.l.b16 %v1768
        %v1849 = vunpack.c.l.b16 %v1769
        %v1850 = vunpack.c.l.b16 %v1770
        %v1851 = vunpack.c.l.b16 %v1771
        %v1852 = vunpack.c.l.b16 %v1772
        %v1853 = vunpack.c.l.b16 %v1773
        %v1854 = vunpack.c.l.b16 %v1774
        %v1855 = vunpack.c.l.b16 %v1775
        %v1856 = vunpack.c.l.b16 %v1776
        %v1857 = vunpack.c.l.b16 %v1777
        %v1858 = vunpack.c.l.b16 %v1778
        %v1859 = vunpack.c.l.b16 %v1779
        %v1860 = vunpack.c.l.b16 %v1780
        %v1861 = vunpack.c.l.b16 %v1781
        %v1862 = vunpack.c.l.b16 %v1782
        %v1863 = vpack.c.b16 %v1828, %v1827
        %v1864 = vpack.c.b16 %v1830, %v1829
        %v1865 = vpack.c.b16 %v1832, %v1831
        %v1866 = vpack.c.b16 %v1834, %v1833
        %v1867 = vpack.c.b16 %v1836, %v1835
        %v1868 = vpack.c.b16 %v1838, %v1837
        %v1869 = vpack.c.b16 %v1840, %v1839
        %v1870 = vpack.c.b16 %v1842, %v1841
        %v1871 = vpack.c.b16 %v1844, %v1843
        %v1872 = vpack.c.b16 %v1846, %v1845
        %v1873 = vpack.c.b16 %v1848, %v1847
        %v1874 = vpack.c.b16 %v1850, %v1849
        %v1875 = vpack.c.b16 %v1852, %v1851
        %v1876 = vpack.c.b16 %v1854, %v1853
        %v1877 = vpack.c.b16 %v1856, %v1855
        %v1878 = vpack.c.b16 %v1858, %v1857
        %v1879 = vpack.c.b16 %v1860, %v1859
        %v1880 = vpack.c.b16 %v1862, %v1861
        %v1900 = vsel %vm463, %v1736, 0
        %v1903 = vsel %vm463, %v1739, 0
        %v1906 = vsel %vm463, %v1742, 0
        %v1909 = vsel %vm463, %v1745, 0
        %1911 = vmatprep.subr.bf16.mxu0 0
        %1912 = vmatpush1.bf16.msra.mxu0 %v1863
        %1913 = vmatprep.subr.bf16.mxu0 0
        %1914 = vmatpush1.bf16.msra.mxu0 %v1864
        %1915 = vmatprep.subr.bf16.mxu0 0
        %1916 = vmatpush1.bf16.msra.mxu0 %v1865
        %1917 = vmatprep.subr.bf16.mxu0 0
        %1918 = vmatpush1.bf16.msra.mxu0 %v1866
        %1919 = vmatprep.subr.bf16.mxu0 0
        %1920 = vmatpush1.bf16.msra.mxu0 %v1867
        %1921 = vmatprep.subr.bf16.mxu0 0
        %1922 = vmatpush1.bf16.msra.mxu0 %v1868
        %1923 = vmatprep.subr.bf16.mxu0 0
        %1924 = vmatpush1.bf16.msra.mxu0 %v1869
        %1925 = vmatprep.subr.bf16.mxu0 0
        %1926 = vmatpush1.bf16.msra.mxu0 %v1870
        %1927 = vmatprep.subr.bf16.mxu0 0
        %1928 = vmatpush1.bf16.msra.mxu0 %v1871
        %1929 = vmatprep.subr.bf16.mxu0 0
        %1930 = vmatpush1.bf16.msra.mxu0 %v1872
        %1931 = vmatprep.subr.bf16.mxu0 0
        %1932 = vmatpush1.bf16.msra.mxu0 %v1873
        %1933 = vmatprep.subr.bf16.mxu0 0
        %1934 = vmatpush1.bf16.msra.mxu0 %v1874
        %1935 = vmatprep.subr.bf16.mxu0 0
        %1936 = vmatpush1.bf16.msra.mxu0 %v1875
        %1937 = vmatprep.subr.bf16.mxu0 0
        %1938 = vmatpush1.bf16.msra.mxu0 %v1876
        %1939 = vmatprep.subr.bf16.mxu0 0
        %1940 = vmatpush1.bf16.msra.mxu0 %v1877
        %1941 = vmatprep.subr.bf16.mxu0 0
        %1942 = vmatpush1.bf16.msra.mxu0 %v1878
        %1943 = vmatprep.mubr.bf16.mxu0 %v1735
        %1944 = vmatmul.mubr.bf16.gmra.mrb[0].mxu0 %v1734
        %v1945 = vpop.f32.mrb[0].mxu0
        %v1946 = vadd.f32 %v1789, %v1945
        %v1947 = vpop.f32.mrb[0].mxu0
        %v1948 = vpop.f32.mrb[0].mxu0
        %v1949 = vadd.f32 %v1789, %v1948
        %v1950 = vpop.f32.mrb[0].mxu0
        %1951 = vmatprep.mubr.bf16.mxu0 %v1738
        %1952 = vmatmul.mubr.bf16.gmra.mrb[0].mxu0 %v1737
        %v1953 = vpop.f32.mrb[0].mxu0
        %v1954 = vadd.f32 %v1789, %v1953
        %v1955 = vpop.f32.mrb[0].mxu0
        %v1956 = vpop.f32.mrb[0].mxu0
        %v1957 = vadd.f32 %v1789, %v1956
        %v1958 = vpop.f32.mrb[0].mxu0
        %1959 = vmatprep.mubr.bf16.mxu0 %v1741
        %1960 = vmatmul.mubr.bf16.gmra.mrb[0].mxu0 %v1740
        %v1961 = vpop.f32.mrb[0].mxu0
        %v1962 = vadd.f32 %v1789, %v1961
        %v1963 = vpop.f32.mrb[0].mxu0
        %v1964 = vpop.f32.mrb[0].mxu0
        %v1965 = vadd.f32 %v1789, %v1964
        %v1966 = vpop.f32.mrb[0].mxu0
        %1967 = vmatprep.mubr.bf16.mxu0 %v1744
        %1968 = vmatmul.mubr.bf16.gmra.mrb[0].mxu0 %v1743
        %v1969 = vpop.f32.mrb[0].mxu0
        %v1970 = vadd.f32 %v1789, %v1969
        %v1971 = vpop.f32.mrb[0].mxu0
        %v1972 = vpop.f32.mrb[0].mxu0
        %v1973 = vadd.f32 %v1789, %v1972
        %v1974 = vpop.f32.mrb[0].mxu0
        %1975 = vdwg.mxu0
        %1976 = vmatprep.subr.bf16.mxu0 0
        %1977 = vmatpush1.bf16.msra.mxu0 %v1879
        %1978 = vmatprep.subr.bf16.mxu0 0
        %1979 = vmatpush1.bf16.msra.mxu0 %v1880
        %1980 = vmatprep.subr.bf16.mxu0 0
        %1981 = vmatpush1.bf16.msra.mxu0 0
        %1982 = vmatprep.subr.bf16.mxu0 0
        %1983 = vmatpush1.bf16.msra.mxu0 0
        %1984 = vmatprep.subr.bf16.mxu0 0
        %1985 = vmatpush1.bf16.msra.mxu0 0
        %1986 = vmatprep.subr.bf16.mxu0 0
        %1987 = vmatpush1.bf16.msra.mxu0 0
        %1988 = vmatprep.subr.bf16.mxu0 0
        %1989 = vmatpush1.bf16.msra.mxu0 0
        %1990 = vmatprep.subr.bf16.mxu0 0
        %1991 = vmatpush1.bf16.msra.mxu0 0
        %1992 = vmatprep.subr.bf16.mxu0 0
        %1993 = vmatpush1.bf16.msra.mxu0 0
        %1994 = vmatprep.subr.bf16.mxu0 0
        %1995 = vmatpush1.bf16.msra.mxu0 0
        %1996 = vmatprep.subr.bf16.mxu0 0
        %1997 = vmatpush1.bf16.msra.mxu0 0
        %1998 = vmatprep.subr.bf16.mxu0 0
        %1999 = vmatpush1.bf16.msra.mxu0 0
        %2000 = vmatprep.subr.bf16.mxu0 0
        %2001 = vmatpush1.bf16.msra.mxu0 0
        %2002 = vmatprep.subr.bf16.mxu0 0
        %2003 = vmatpush1.bf16.msra.mxu0 0
        %2004 = vmatprep.subr.bf16.mxu0 0
        %2005 = vmatpush1.bf16.msra.mxu0 0
        %2006 = vmatprep.subr.bf16.mxu0 0
        %2007 = vmatpush1.bf16.msra.mxu0 0
        %2008 = vmatprep.mubr.bf16.mxu0 0
        %2009 = vmatmul.mubr.bf16.gmra.mrb[0].mxu0 %v1900
        %v2010 = vpop.f32.mrb[0].mxu0
        %v2011 = vadd.f32 %v1946, %v2010
        %v2012 = vpop.f32.mrb[0].mxu0
        %v2013 = vpop.f32.mrb[0].mxu0
        %v2014 = vadd.f32 %v1949, %v2013
        %v2015 = vpop.f32.mrb[0].mxu0
        %2016 = vmatprep.mubr.bf16.mxu0 0
        %2017 = vmatmul.mubr.bf16.gmra.mrb[0].mxu0 %v1903
        %v2018 = vpop.f32.mrb[0].mxu0
        %v2019 = vadd.f32 %v1954, %v2018
        %v2020 = vpop.f32.mrb[0].mxu0
        %v2021 = vpop.f32.mrb[0].mxu0
        %v2022 = vadd.f32 %v1957, %v2021
        %v2023 = vpop.f32.mrb[0].mxu0
        %2024 = vmatprep.mubr.bf16.mxu0 0
        %2025 = vmatmul.mubr.bf16.gmra.mrb[0].mxu0 %v1906
        %v2026 = vpop.f32.mrb[0].mxu0
        %v2027 = vadd.f32 %v1962, %v2026
        %v2028 = vpop.f32.mrb[0].mxu0
        %v2029 = vpop.f32.mrb[0].mxu0
        %v2030 = vadd.f32 %v1965, %v2029
        %v2031 = vpop.f32.mrb[0].mxu0
        %2032 = vmatprep.mubr.bf16.mxu0 0
        %2033 = vmatmul.mubr.bf16.gmra.mrb[0].mxu0 %v1909
        %v2034 = vpop.f32.mrb[0].mxu0
        %v2035 = vadd.f32 %v1970, %v2034
        %v2036 = vpop.f32.mrb[0].mxu0
        %v2037 = vpop.f32.mrb[0].mxu0
        %v2038 = vadd.f32 %v1973, %v2037
        %v2039 = vpop.f32.mrb[0].mxu0
        %2040 = vdwg.mxu0
        %v2041 = vmul.f32 %v2011, 0.2
        %v2042 = vmul.f32 %v2014, 0.2
        %v2043 = vmul.f32 %v2019, 0.2
        %v2044 = vmul.f32 %v2022, 0.2
        %v2045 = vmul.f32 %v2027, 0.2
        %v2046 = vmul.f32 %v2030, 0.2
        %v2047 = vmul.f32 %v2035, 0.2
        %v2048 = vmul.f32 %v2038, 0.2
        %v2049 = vmax.f32 %v2011, %v2041
        %v2050 = vmax.f32 %v2014, %v2042
        %v2051 = vmax.f32 %v2019, %v2043
        %v2052 = vmax.f32 %v2022, %v2044
        %v2053 = vmax.f32 %v2027, %v2045
        %v2054 = vmax.f32 %v2030, %v2046
        %v2055 = vmax.f32 %v2035, %v2047
        %v2056 = vmax.f32 %v2038, %v2048
        %v2065 = vcombine.high %v2049, %v2049
        %v2067 = vunpack.c.l.s4 1966171168
        %v2068 = vunpack.c.0.s8 %v2067
        %v2069 = vlaneseq
        %v2070 = vshrl.u32 %v2069, 7
        %v2071 = vsub.s32 %v2068, %v2070
        %v2072 = vrot.slane %v2049, %v2071
        %v2074 = vunpack.c.l.s4 1966171168
        %v2075 = vunpack.c.0.s8 %v2074
        %v2076 = vlaneseq
        %v2077 = vshrl.u32 %v2076, 7
        %v2078 = vsub.s32 %v2075, %v2077
        %v2079 = vrot.slane %v2065, %v2078
        %v2080 = vcombine.high %v2072, %v2072
        %v2081 = vcombine.high %v2079, %v2079
        %v2083 = vunpack.c.l.s4 1966171168
        %v2084 = vunpack.c.0.s8 %v2083
        %v2085 = vlaneseq
        %v2086 = vshrl.u32 %v2085, 7
        %v2087 = vsub.s32 %v2084, %v2086
        %v2088 = vrot.slane %v2072, %v2087
        %v2090 = vunpack.c.l.s4 1966171168
        %v2091 = vunpack.c.0.s8 %v2090
        %v2092 = vlaneseq
        %v2093 = vshrl.u32 %v2092, 7
        %v2094 = vsub.s32 %v2091, %v2093
        %v2095 = vrot.slane %v2079, %v2094
        %v2097 = vunpack.c.l.s4 1966171168
        %v2098 = vunpack.c.0.s8 %v2097
        %v2099 = vlaneseq
        %v2100 = vshrl.u32 %v2099, 7
        %v2101 = vsub.s32 %v2098, %v2100
        %v2102 = vrot.slane %v2080, %v2101
        %v2104 = vunpack.c.l.s4 1966171168
        %v2105 = vunpack.c.0.s8 %v2104
        %v2106 = vlaneseq
        %v2107 = vshrl.u32 %v2106, 7
        %v2108 = vsub.s32 %v2105, %v2107
        %v2109 = vrot.slane %v2081, %v2108
        %v2110 = vcombine.high %v2088, %v2088
        %v2111 = vcombine.high %v2095, %v2095
        %v2112 = vcombine.high %v2102, %v2102
        %v2113 = vcombine.high %v2109, %v2109
        %v2114 = vcombine.high %v2050, %v2050
        %v2116 = vunpack.c.l.s4 1966171168
        %v2117 = vunpack.c.0.s8 %v2116
        %v2118 = vlaneseq
        %v2119 = vshrl.u32 %v2118, 7
        %v2120 = vsub.s32 %v2117, %v2119
        %v2121 = vrot.slane %v2050, %v2120
        %v2123 = vunpack.c.l.s4 1966171168
        %v2124 = vunpack.c.0.s8 %v2123
        %v2125 = vlaneseq
        %v2126 = vshrl.u32 %v2125, 7
        %v2127 = vsub.s32 %v2124, %v2126
        %v2128 = vrot.slane %v2114, %v2127
        %v2129 = vcombine.high %v2121, %v2121
        %v2130 = vcombine.high %v2128, %v2128
        %v2132 = vunpack.c.l.s4 1966171168
        %v2133 = vunpack.c.0.s8 %v2132
        %v2134 = vlaneseq
        %v2135 = vshrl.u32 %v2134, 7
        %v2136 = vsub.s32 %v2133, %v2135
        %v2137 = vrot.slane %v2121, %v2136
        %v2139 = vunpack.c.l.s4 1966171168
        %v2140 = vunpack.c.0.s8 %v2139
        %v2141 = vlaneseq
        %v2142 = vshrl.u32 %v2141, 7
        %v2143 = vsub.s32 %v2140, %v2142
        %v2144 = vrot.slane %v2128, %v2143
        %v2146 = vunpack.c.l.s4 1966171168
        %v2147 = vunpack.c.0.s8 %v2146
        %v2148 = vlaneseq
        %v2149 = vshrl.u32 %v2148, 7
        %v2150 = vsub.s32 %v2147, %v2149
        %v2151 = vrot.slane %v2129, %v2150
        %v2153 = vunpack.c.l.s4 1966171168
        %v2154 = vunpack.c.0.s8 %v2153
        %v2155 = vlaneseq
        %v2156 = vshrl.u32 %v2155, 7
        %v2157 = vsub.s32 %v2154, %v2156
        %v2158 = vrot.slane %v2130, %v2157
        %v2159 = vcombine.high %v2137, %v2137
        %v2160 = vcombine.high %v2144, %v2144
        %v2161 = vcombine.high %v2151, %v2151
        %v2162 = vcombine.high %v2158, %v2158
        %v2163 = vcombine.high %v2051, %v2051
        %v2165 = vunpack.c.l.s4 1966171168
        %v2166 = vunpack.c.0.s8 %v2165
        %v2167 = vlaneseq
        %v2168 = vshrl.u32 %v2167, 7
        %v2169 = vsub.s32 %v2166, %v2168
        %v2170 = vrot.slane %v2051, %v2169
        %v2172 = vunpack.c.l.s4 1966171168
        %v2173 = vunpack.c.0.s8 %v2172
        %v2174 = vlaneseq
        %v2175 = vshrl.u32 %v2174, 7
        %v2176 = vsub.s32 %v2173, %v2175
        %v2177 = vrot.slane %v2163, %v2176
        %v2178 = vcombine.high %v2170, %v2170
        %v2179 = vcombine.high %v2177, %v2177
        %v2181 = vunpack.c.l.s4 1966171168
        %v2182 = vunpack.c.0.s8 %v2181
        %v2183 = vlaneseq
        %v2184 = vshrl.u32 %v2183, 7
        %v2185 = vsub.s32 %v2182, %v2184
        %v2186 = vrot.slane %v2170, %v2185
        %v2188 = vunpack.c.l.s4 1966171168
        %v2189 = vunpack.c.0.s8 %v2188
        %v2190 = vlaneseq
        %v2191 = vshrl.u32 %v2190, 7
        %v2192 = vsub.s32 %v2189, %v2191
        %v2193 = vrot.slane %v2177, %v2192
        %v2195 = vunpack.c.l.s4 1966171168
        %v2196 = vunpack.c.0.s8 %v2195
        %v2197 = vlaneseq
        %v2198 = vshrl.u32 %v2197, 7
        %v2199 = vsub.s32 %v2196, %v2198
        %v2200 = vrot.slane %v2178, %v2199
        %v2202 = vunpack.c.l.s4 1966171168
        %v2203 = vunpack.c.0.s8 %v2202
        %v2204 = vlaneseq
        %v2205 = vshrl.u32 %v2204, 7
        %v2206 = vsub.s32 %v2203, %v2205
        %v2207 = vrot.slane %v2179, %v2206
        %v2208 = vcombine.high %v2186, %v2186
        %v2209 = vcombine.high %v2193, %v2193
        %v2210 = vcombine.high %v2200, %v2200
        %v2211 = vcombine.high %v2207, %v2207
        %v2212 = vcombine.high %v2052, %v2052
        %v2214 = vunpack.c.l.s4 1966171168
        %v2215 = vunpack.c.0.s8 %v2214
        %v2216 = vlaneseq
        %v2217 = vshrl.u32 %v2216, 7
        %v2218 = vsub.s32 %v2215, %v2217
        %v2219 = vrot.slane %v2052, %v2218
        %v2221 = vunpack.c.l.s4 1966171168
        %v2222 = vunpack.c.0.s8 %v2221
        %v2223 = vlaneseq
        %v2224 = vshrl.u32 %v2223, 7
        %v2225 = vsub.s32 %v2222, %v2224
        %v2226 = vrot.slane %v2212, %v2225
        %v2227 = vcombine.high %v2219, %v2219
        %v2228 = vcombine.high %v2226, %v2226
        %v2230 = vunpack.c.l.s4 1966171168
        %v2231 = vunpack.c.0.s8 %v2230
        %v2232 = vlaneseq
        %v2233 = vshrl.u32 %v2232, 7
        %v2234 = vsub.s32 %v2231, %v2233
        %v2235 = vrot.slane %v2219, %v2234
        %v2237 = vunpack.c.l.s4 1966171168
        %v2238 = vunpack.c.0.s8 %v2237
        %v2239 = vlaneseq
        %v2240 = vshrl.u32 %v2239, 7
        %v2241 = vsub.s32 %v2238, %v2240
        %v2242 = vrot.slane %v2226, %v2241
        %v2244 = vunpack.c.l.s4 1966171168
        %v2245 = vunpack.c.0.s8 %v2244
        %v2246 = vlaneseq
        %v2247 = vshrl.u32 %v2246, 7
        %v2248 = vsub.s32 %v2245, %v2247
        %v2249 = vrot.slane %v2227, %v2248
        %v2251 = vunpack.c.l.s4 1966171168
        %v2252 = vunpack.c.0.s8 %v2251
        %v2253 = vlaneseq
        %v2254 = vshrl.u32 %v2253, 7
        %v2255 = vsub.s32 %v2252, %v2254
        %v2256 = vrot.slane %v2228, %v2255
        %v2257 = vcombine.high %v2235, %v2235
        %v2258 = vcombine.high %v2242, %v2242
        %v2259 = vcombine.high %v2249, %v2249
        %v2260 = vcombine.high %v2256, %v2256
        %v2261 = vcombine.high %v2053, %v2053
        %v2263 = vunpack.c.l.s4 1966171168
        %v2264 = vunpack.c.0.s8 %v2263
        %v2265 = vlaneseq
        %v2266 = vshrl.u32 %v2265, 7
        %v2267 = vsub.s32 %v2264, %v2266
        %v2268 = vrot.slane %v2053, %v2267
        %v2270 = vunpack.c.l.s4 1966171168
        %v2271 = vunpack.c.0.s8 %v2270
        %v2272 = vlaneseq
        %v2273 = vshrl.u32 %v2272, 7
        %v2274 = vsub.s32 %v2271, %v2273
        %v2275 = vrot.slane %v2261, %v2274
        %v2276 = vcombine.high %v2268, %v2268
        %v2277 = vcombine.high %v2275, %v2275
        %v2279 = vunpack.c.l.s4 1966171168
        %v2280 = vunpack.c.0.s8 %v2279
        %v2281 = vlaneseq
        %v2282 = vshrl.u32 %v2281, 7
        %v2283 = vsub.s32 %v2280, %v2282
        %v2284 = vrot.slane %v2268, %v2283
        %v2286 = vunpack.c.l.s4 1966171168
        %v2287 = vunpack.c.0.s8 %v2286
        %v2288 = vlaneseq
        %v2289 = vshrl.u32 %v2288, 7
        %v2290 = vsub.s32 %v2287, %v2289
        %v2291 = vrot.slane %v2275, %v2290
        %v2293 = vunpack.c.l.s4 1966171168
        %v2294 = vunpack.c.0.s8 %v2293
        %v2295 = vlaneseq
        %v2296 = vshrl.u32 %v2295, 7
        %v2297 = vsub.s32 %v2294, %v2296
        %v2298 = vrot.slane %v2276, %v2297
        %v2300 = vunpack.c.l.s4 1966171168
        %v2301 = vunpack.c.0.s8 %v2300
        %v2302 = vlaneseq
        %v2303 = vshrl.u32 %v2302, 7
        %v2304 = vsub.s32 %v2301, %v2303
        %v2305 = vrot.slane %v2277, %v2304
        %v2306 = vcombine.high %v2284, %v2284
        %v2307 = vcombine.high %v2291, %v2291
        %v2308 = vcombine.high %v2298, %v2298
        %v2309 = vcombine.high %v2305, %v2305
        %v2310 = vcombine.high %v2054, %v2054
        %v2312 = vunpack.c.l.s4 1966171168
        %v2313 = vunpack.c.0.s8 %v2312
        %v2314 = vlaneseq
        %v2315 = vshrl.u32 %v2314, 7
        %v2316 = vsub.s32 %v2313, %v2315
        %v2317 = vrot.slane %v2054, %v2316
        %v2319 = vunpack.c.l.s4 1966171168
        %v2320 = vunpack.c.0.s8 %v2319
        %v2321 = vlaneseq
        %v2322 = vshrl.u32 %v2321, 7
        %v2323 = vsub.s32 %v2320, %v2322
        %v2324 = vrot.slane %v2310, %v2323
        %v2325 = vcombine.high %v2317, %v2317
        %v2326 = vcombine.high %v2324, %v2324
        %v2328 = vunpack.c.l.s4 1966171168
        %v2329 = vunpack.c.0.s8 %v2328
        %v2330 = vlaneseq
        %v2331 = vshrl.u32 %v2330, 7
        %v2332 = vsub.s32 %v2329, %v2331
        %v2333 = vrot.slane %v2317, %v2332
        %v2335 = vunpack.c.l.s4 1966171168
        %v2336 = vunpack.c.0.s8 %v2335
        %v2337 = vlaneseq
        %v2338 = vshrl.u32 %v2337, 7
        %v2339 = vsub.s32 %v2336, %v2338
        %v2340 = vrot.slane %v2324, %v2339
        %v2342 = vunpack.c.l.s4 1966171168
        %v2343 = vunpack.c.0.s8 %v2342
        %v2344 = vlaneseq
        %v2345 = vshrl.u32 %v2344, 7
        %v2346 = vsub.s32 %v2343, %v2345
        %v2347 = vrot.slane %v2325, %v2346
        %v2349 = vunpack.c.l.s4 1966171168
        %v2350 = vunpack.c.0.s8 %v2349
        %v2351 = vlaneseq
        %v2352 = vshrl.u32 %v2351, 7
        %v2353 = vsub.s32 %v2350, %v2352
        %v2354 = vrot.slane %v2326, %v2353
        %v2355 = vcombine.high %v2333, %v2333
        %v2356 = vcombine.high %v2340, %v2340
        %v2357 = vcombine.high %v2347, %v2347
        %v2358 = vcombine.high %v2354, %v2354
        %v2359 = vcombine.high %v2055, %v2055
        %v2361 = vunpack.c.l.s4 1966171168
        %v2362 = vunpack.c.0.s8 %v2361
        %v2363 = vlaneseq
        %v2364 = vshrl.u32 %v2363, 7
        %v2365 = vsub.s32 %v2362, %v2364
        %v2366 = vrot.slane %v2055, %v2365
        %v2368 = vunpack.c.l.s4 1966171168
        %v2369 = vunpack.c.0.s8 %v2368
        %v2370 = vlaneseq
        %v2371 = vshrl.u32 %v2370, 7
        %v2372 = vsub.s32 %v2369, %v2371
        %v2373 = vrot.slane %v2359, %v2372
        %v2374 = vcombine.high %v2366, %v2366
        %v2375 = vcombine.high %v2373, %v2373
        %v2377 = vunpack.c.l.s4 1966171168
        %v2378 = vunpack.c.0.s8 %v2377
        %v2379 = vlaneseq
        %v2380 = vshrl.u32 %v2379, 7
        %v2381 = vsub.s32 %v2378, %v2380
        %v2382 = vrot.slane %v2366, %v2381
        %v2384 = vunpack.c.l.s4 1966171168
        %v2385 = vunpack.c.0.s8 %v2384
        %v2386 = vlaneseq
        %v2387 = vshrl.u32 %v2386, 7
        %v2388 = vsub.s32 %v2385, %v2387
        %v2389 = vrot.slane %v2373, %v2388
        %v2391 = vunpack.c.l.s4 1966171168
        %v2392 = vunpack.c.0.s8 %v2391
        %v2393 = vlaneseq
        %v2394 = vshrl.u32 %v2393, 7
        %v2395 = vsub.s32 %v2392, %v2394
        %v2396 = vrot.slane %v2374, %v2395
        %v2398 = vunpack.c.l.s4 1966171168
        %v2399 = vunpack.c.0.s8 %v2398
        %v2400 = vlaneseq
        %v2401 = vshrl.u32 %v2400, 7
        %v2402 = vsub.s32 %v2399, %v2401
        %v2403 = vrot.slane %v2375, %v2402
        %v2404 = vcombine.high %v2382, %v2382
        %v2405 = vcombine.high %v2389, %v2389
        %v2406 = vcombine.high %v2396, %v2396
        %v2407 = vcombine.high %v2403, %v2403
        %v2408 = vcombine.high %v2056, %v2056
        %v2410 = vunpack.c.l.s4 1966171168
        %v2411 = vunpack.c.0.s8 %v2410
        %v2412 = vlaneseq
        %v2413 = vshrl.u32 %v2412, 7
        %v2414 = vsub.s32 %v2411, %v2413
        %v2415 = vrot.slane %v2056, %v2414
        %v2417 = vunpack.c.l.s4 1966171168
        %v2418 = vunpack.c.0.s8 %v2417
        %v2419 = vlaneseq
        %v2420 = vshrl.u32 %v2419, 7
        %v2421 = vsub.s32 %v2418, %v2420
        %v2422 = vrot.slane %v2408, %v2421
        %v2423 = vcombine.high %v2415, %v2415
        %v2424 = vcombine.high %v2422, %v2422
        %v2426 = vunpack.c.l.s4 1966171168
        %v2427 = vunpack.c.0.s8 %v2426
        %v2428 = vlaneseq
        %v2429 = vshrl.u32 %v2428, 7
        %v2430 = vsub.s32 %v2427, %v2429
        %v2431 = vrot.slane %v2415, %v2430
        %v2433 = vunpack.c.l.s4 1966171168
        %v2434 = vunpack.c.0.s8 %v2433
        %v2435 = vlaneseq
        %v2436 = vshrl.u32 %v2435, 7
        %v2437 = vsub.s32 %v2434, %v2436
        %v2438 = vrot.slane %v2422, %v2437
        %v2440 = vunpack.c.l.s4 1966171168
        %v2441 = vunpack.c.0.s8 %v2440
        %v2442 = vlaneseq
        %v2443 = vshrl.u32 %v2442, 7
        %v2444 = vsub.s32 %v2441, %v2443
        %v2445 = vrot.slane %v2423, %v2444
        %v2447 = vunpack.c.l.s4 1966171168
        %v2448 = vunpack.c.0.s8 %v2447
        %v2449 = vlaneseq
        %v2450 = vshrl.u32 %v2449, 7
        %v2451 = vsub.s32 %v2448, %v2450
        %v2452 = vrot.slane %v2424, %v2451
        %v2453 = vcombine.high %v2431, %v2431
        %v2454 = vcombine.high %v2438, %v2438
        %v2455 = vcombine.high %v2445, %v2445
        %v2456 = vcombine.high %v2452, %v2452
        %v2457 = vlaneseq
        %v2458 = vshrl.u32 %v2457, 7
        %v2459 = vsub.s32 0, %v2458
        %v2460 = vrot.slane %v2088, %v2459
        %v2461 = vlaneseq
        %v2462 = vshrl.u32 %v2461, 7
        %v2463 = vsub.s32 0, %v2462
        %v2464 = vrot.slane %v2102, %v2463
        %v2465 = vlaneseq
        %v2466 = vshrl.u32 %v2465, 7
        %v2467 = vsub.s32 0, %v2466
        %v2468 = vrot.slane %v2110, %v2467
        %v2469 = vlaneseq
        %v2470 = vshrl.u32 %v2469, 7
        %v2471 = vsub.s32 0, %v2470
        %v2472 = vrot.slane %v2112, %v2471
        %v2473 = vlaneseq
        %v2474 = vshrl.u32 %v2473, 7
        %v2475 = vsub.s32 0, %v2474
        %v2476 = vrot.slane %v2095, %v2475
        %v2477 = vlaneseq
        %v2478 = vshrl.u32 %v2477, 7
        %v2479 = vsub.s32 0, %v2478
        %v2480 = vrot.slane %v2109, %v2479
        %v2481 = vlaneseq
        %v2482 = vshrl.u32 %v2481, 7
        %v2483 = vsub.s32 0, %v2482
        %v2484 = vrot.slane %v2111, %v2483
        %v2485 = vlaneseq
        %v2486 = vshrl.u32 %v2485, 7
        %v2487 = vsub.s32 0, %v2486
        %v2488 = vrot.slane %v2113, %v2487
        %v2489 = vlaneseq
        %v2490 = vshrl.u32 %v2489, 7
        %v2491 = vsub.s32 0, %v2490
        %v2492 = vrot.slane %v2137, %v2491
        %v2493 = vlaneseq
        %v2494 = vshrl.u32 %v2493, 7
        %v2495 = vsub.s32 0, %v2494
        %v2496 = vrot.slane %v2151, %v2495
        %v2497 = vlaneseq
        %v2498 = vshrl.u32 %v2497, 7
        %v2499 = vsub.s32 0, %v2498
        %v2500 = vrot.slane %v2159, %v2499
        %v2501 = vlaneseq
        %v2502 = vshrl.u32 %v2501, 7
        %v2503 = vsub.s32 0, %v2502
        %v2504 = vrot.slane %v2161, %v2503
        %v2505 = vlaneseq
        %v2506 = vshrl.u32 %v2505, 7
        %v2507 = vsub.s32 0, %v2506
        %v2508 = vrot.slane %v2144, %v2507
        %v2509 = vlaneseq
        %v2510 = vshrl.u32 %v2509, 7
        %v2511 = vsub.s32 0, %v2510
        %v2512 = vrot.slane %v2158, %v2511
        %v2513 = vlaneseq
        %v2514 = vshrl.u32 %v2513, 7
        %v2515 = vsub.s32 0, %v2514
        %v2516 = vrot.slane %v2160, %v2515
        %v2517 = vlaneseq
        %v2518 = vshrl.u32 %v2517, 7
        %v2519 = vsub.s32 0, %v2518
        %v2520 = vrot.slane %v2162, %v2519
        %v2521 = vlaneseq
        %v2522 = vshrl.u32 %v2521, 7
        %v2523 = vsub.s32 0, %v2522
        %v2524 = vrot.slane %v2186, %v2523
        %v2525 = vlaneseq
        %v2526 = vshrl.u32 %v2525, 7
        %v2527 = vsub.s32 0, %v2526
        %v2528 = vrot.slane %v2200, %v2527
        %v2529 = vlaneseq
        %v2530 = vshrl.u32 %v2529, 7
        %v2531 = vsub.s32 0, %v2530
        %v2532 = vrot.slane %v2208, %v2531
        %v2533 = vlaneseq
        %v2534 = vshrl.u32 %v2533, 7
        %v2535 = vsub.s32 0, %v2534
        %v2536 = vrot.slane %v2210, %v2535
        %v2537 = vlaneseq
        %v2538 = vshrl.u32 %v2537, 7
        %v2539 = vsub.s32 0, %v2538
        %v2540 = vrot.slane %v2193, %v2539
        %v2541 = vlaneseq
        %v2542 = vshrl.u32 %v2541, 7
        %v2543 = vsub.s32 0, %v2542
        %v2544 = vrot.slane %v2207, %v2543
        %v2545 = vlaneseq
        %v2546 = vshrl.u32 %v2545, 7
        %v2547 = vsub.s32 0, %v2546
        %v2548 = vrot.slane %v2209, %v2547
        %v2549 = vlaneseq
        %v2550 = vshrl.u32 %v2549, 7
        %v2551 = vsub.s32 0, %v2550
        %v2552 = vrot.slane %v2211, %v2551
        %v2553 = vlaneseq
        %v2554 = vshrl.u32 %v2553, 7
        %v2555 = vsub.s32 0, %v2554
        %v2556 = vrot.slane %v2235, %v2555
        %v2557 = vlaneseq
        %v2558 = vshrl.u32 %v2557, 7
        %v2559 = vsub.s32 0, %v2558
        %v2560 = vrot.slane %v2249, %v2559
        %v2561 = vlaneseq
        %v2562 = vshrl.u32 %v2561, 7
        %v2563 = vsub.s32 0, %v2562
        %v2564 = vrot.slane %v2257, %v2563
        %v2565 = vlaneseq
        %v2566 = vshrl.u32 %v2565, 7
        %v2567 = vsub.s32 0, %v2566
        %v2568 = vrot.slane %v2259, %v2567
        %v2569 = vlaneseq
        %v2570 = vshrl.u32 %v2569, 7
        %v2571 = vsub.s32 0, %v2570
        %v2572 = vrot.slane %v2242, %v2571
        %v2573 = vlaneseq
        %v2574 = vshrl.u32 %v2573, 7
        %v2575 = vsub.s32 0, %v2574
        %v2576 = vrot.slane %v2256, %v2575
        %v2577 = vlaneseq
        %v2578 = vshrl.u32 %v2577, 7
        %v2579 = vsub.s32 0, %v2578
        %v2580 = vrot.slane %v2258, %v2579
        %v2581 = vlaneseq
        %v2582 = vshrl.u32 %v2581, 7
        %v2583 = vsub.s32 0, %v2582
        %v2584 = vrot.slane %v2260, %v2583
        %v2585 = vlaneseq
        %v2586 = vshrl.u32 %v2585, 7
        %v2587 = vsub.s32 0, %v2586
        %v2588 = vrot.slane %v2284, %v2587
        %v2589 = vlaneseq
        %v2590 = vshrl.u32 %v2589, 7
        %v2591 = vsub.s32 0, %v2590
        %v2592 = vrot.slane %v2298, %v2591
        %v2593 = vlaneseq
        %v2594 = vshrl.u32 %v2593, 7
        %v2595 = vsub.s32 0, %v2594
        %v2596 = vrot.slane %v2306, %v2595
        %v2597 = vlaneseq
        %v2598 = vshrl.u32 %v2597, 7
        %v2599 = vsub.s32 0, %v2598
        %v2600 = vrot.slane %v2308, %v2599
        %v2601 = vlaneseq
        %v2602 = vshrl.u32 %v2601, 7
        %v2603 = vsub.s32 0, %v2602
        %v2604 = vrot.slane %v2291, %v2603
        %v2605 = vlaneseq
        %v2606 = vshrl.u32 %v2605, 7
        %v2607 = vsub.s32 0, %v2606
        %v2608 = vrot.slane %v2305, %v2607
        %v2609 = vlaneseq
        %v2610 = vshrl.u32 %v2609, 7
        %v2611 = vsub.s32 0, %v2610
        %v2612 = vrot.slane %v2307, %v2611
        %v2613 = vlaneseq
        %v2614 = vshrl.u32 %v2613, 7
        %v2615 = vsub.s32 0, %v2614
        %v2616 = vrot.slane %v2309, %v2615
        %v2617 = vlaneseq
        %v2618 = vshrl.u32 %v2617, 7
        %v2619 = vsub.s32 0, %v2618
        %v2620 = vrot.slane %v2333, %v2619
        %v2621 = vlaneseq
        %v2622 = vshrl.u32 %v2621, 7
        %v2623 = vsub.s32 0, %v2622
        %v2624 = vrot.slane %v2347, %v2623
        %v2625 = vlaneseq
        %v2626 = vshrl.u32 %v2625, 7
        %v2627 = vsub.s32 0, %v2626
        %v2628 = vrot.slane %v2355, %v2627
        %v2629 = vlaneseq
        %v2630 = vshrl.u32 %v2629, 7
        %v2631 = vsub.s32 0, %v2630
        %v2632 = vrot.slane %v2357, %v2631
        %v2633 = vlaneseq
        %v2634 = vshrl.u32 %v2633, 7
        %v2635 = vsub.s32 0, %v2634
        %v2636 = vrot.slane %v2340, %v2635
        %v2637 = vlaneseq
        %v2638 = vshrl.u32 %v2637, 7
        %v2639 = vsub.s32 0, %v2638
        %v2640 = vrot.slane %v2354, %v2639
        %v2641 = vlaneseq
        %v2642 = vshrl.u32 %v2641, 7
        %v2643 = vsub.s32 0, %v2642
        %v2644 = vrot.slane %v2356, %v2643
        %v2645 = vlaneseq
        %v2646 = vshrl.u32 %v2645, 7
        %v2647 = vsub.s32 0, %v2646
        %v2648 = vrot.slane %v2358, %v2647
        %v2649 = vlaneseq
        %v2650 = vshrl.u32 %v2649, 7
        %v2651 = vsub.s32 0, %v2650
        %v2652 = vrot.slane %v2382, %v2651
        %v2653 = vlaneseq
        %v2654 = vshrl.u32 %v2653, 7
        %v2655 = vsub.s32 0, %v2654
        %v2656 = vrot.slane %v2396, %v2655
        %v2657 = vlaneseq
        %v2658 = vshrl.u32 %v2657, 7
        %v2659 = vsub.s32 0, %v2658
        %v2660 = vrot.slane %v2404, %v2659
        %v2661 = vlaneseq
        %v2662 = vshrl.u32 %v2661, 7
        %v2663 = vsub.s32 0, %v2662
        %v2664 = vrot.slane %v2406, %v2663
        %v2665 = vlaneseq
        %v2666 = vshrl.u32 %v2665, 7
        %v2667 = vsub.s32 0, %v2666
        %v2668 = vrot.slane %v2389, %v2667
        %v2669 = vlaneseq
        %v2670 = vshrl.u32 %v2669, 7
        %v2671 = vsub.s32 0, %v2670
        %v2672 = vrot.slane %v2403, %v2671
        %v2673 = vlaneseq
        %v2674 = vshrl.u32 %v2673, 7
        %v2675 = vsub.s32 0, %v2674
        %v2676 = vrot.slane %v2405, %v2675
        %v2677 = vlaneseq
        %v2678 = vshrl.u32 %v2677, 7
        %v2679 = vsub.s32 0, %v2678
        %v2680 = vrot.slane %v2407, %v2679
        %v2681 = vlaneseq
        %v2682 = vshrl.u32 %v2681, 7
        %v2683 = vsub.s32 0, %v2682
        %v2684 = vrot.slane %v2431, %v2683
        %v2685 = vlaneseq
        %v2686 = vshrl.u32 %v2685, 7
        %v2687 = vsub.s32 0, %v2686
        %v2688 = vrot.slane %v2445, %v2687
        %v2689 = vlaneseq
        %v2690 = vshrl.u32 %v2689, 7
        %v2691 = vsub.s32 0, %v2690
        %v2692 = vrot.slane %v2453, %v2691
        %v2693 = vlaneseq
        %v2694 = vshrl.u32 %v2693, 7
        %v2695 = vsub.s32 0, %v2694
        %v2696 = vrot.slane %v2455, %v2695
        %v2697 = vlaneseq
        %v2698 = vshrl.u32 %v2697, 7
        %v2699 = vsub.s32 0, %v2698
        %v2700 = vrot.slane %v2438, %v2699
        %v2701 = vlaneseq
        %v2702 = vshrl.u32 %v2701, 7
        %v2703 = vsub.s32 0, %v2702
        %v2704 = vrot.slane %v2452, %v2703
        %v2705 = vlaneseq
        %v2706 = vshrl.u32 %v2705, 7
        %v2707 = vsub.s32 0, %v2706
        %v2708 = vrot.slane %v2454, %v2707
        %v2709 = vlaneseq
        %v2710 = vshrl.u32 %v2709, 7
        %v2711 = vsub.s32 0, %v2710
        %v2712 = vrot.slane %v2456, %v2711
        %2777 = vrot.lane.b32.xlu0 %v1288, 64
        %v2778 = vpop.permute.xlu0 %2777
        %2779 = vrot.lane.b32.xlu0 %v1296, 64
        %v2780 = vpop.permute.xlu0 %2779
        %2781 = vrot.lane.b32.xlu0 %v1295, 64
        %v2782 = vpop.permute.xlu0 %2781
        %2783 = vrot.lane.b32.xlu0 %v1297, 64
        %v2784 = vpop.permute.xlu0 %2783
        %v2789 = vmul.f32 %v2460, %v2778
        %v2790 = vmul.f32 %v2464, %v2780
        %v2791 = vmul.f32 %v2468, %v2782
        %v2792 = vmul.f32 %v2472, %v2784
        %v2793 = vmul.f32 %v2476, %v2778
        %v2794 = vmul.f32 %v2480, %v2780
        %v2795 = vmul.f32 %v2484, %v2782
        %v2796 = vmul.f32 %v2488, %v2784
        %v2797 = vmul.f32 %v2492, %v2778
        %v2798 = vmul.f32 %v2496, %v2780
        %v2799 = vmul.f32 %v2500, %v2782
        %v2800 = vmul.f32 %v2504, %v2784
        %v2801 = vmul.f32 %v2508, %v2778
        %v2802 = vmul.f32 %v2512, %v2780
        %v2803 = vmul.f32 %v2516, %v2782
        %v2804 = vmul.f32 %v2520, %v2784
        %v2805 = vmul.f32 %v2524, %v2778
        %v2806 = vmul.f32 %v2528, %v2780
        %v2807 = vmul.f32 %v2532, %v2782
        %v2808 = vmul.f32 %v2536, %v2784
        %v2809 = vmul.f32 %v2540, %v2778
        %v2810 = vmul.f32 %v2544, %v2780
        %v2811 = vmul.f32 %v2548, %v2782
        %v2812 = vmul.f32 %v2552, %v2784
        %v2813 = vmul.f32 %v2556, %v2778
        %v2814 = vmul.f32 %v2560, %v2780
        %v2815 = vmul.f32 %v2564, %v2782
        %v2816 = vmul.f32 %v2568, %v2784
        %v2817 = vmul.f32 %v2572, %v2778
        %v2818 = vmul.f32 %v2576, %v2780
        %v2819 = vmul.f32 %v2580, %v2782
        %v2820 = vmul.f32 %v2584, %v2784
        %v2821 = vmul.f32 %v2588, %v2778
        %v2822 = vmul.f32 %v2592, %v2780
        %v2823 = vmul.f32 %v2596, %v2782
        %v2824 = vmul.f32 %v2600, %v2784
        %v2825 = vmul.f32 %v2604, %v2778
        %v2826 = vmul.f32 %v2608, %v2780
        %v2827 = vmul.f32 %v2612, %v2782
        %v2828 = vmul.f32 %v2616, %v2784
        %v2829 = vmul.f32 %v2620, %v2778
        %v2830 = vmul.f32 %v2624, %v2780
        %v2831 = vmul.f32 %v2628, %v2782
        %v2832 = vmul.f32 %v2632, %v2784
        %v2833 = vmul.f32 %v2636, %v2778
        %v2834 = vmul.f32 %v2640, %v2780
        %v2835 = vmul.f32 %v2644, %v2782
        %v2836 = vmul.f32 %v2648, %v2784
        %v2837 = vmul.f32 %v2652, %v2778
        %v2838 = vmul.f32 %v2656, %v2780
        %v2839 = vmul.f32 %v2660, %v2782
        %v2840 = vmul.f32 %v2664, %v2784
        %v2841 = vmul.f32 %v2668, %v2778
        %v2842 = vmul.f32 %v2672, %v2780
        %v2843 = vmul.f32 %v2676, %v2782
        %v2844 = vmul.f32 %v2680, %v2784
        %v2845 = vmul.f32 %v2684, %v2778
        %v2846 = vmul.f32 %v2688, %v2780
        %v2847 = vmul.f32 %v2692, %v2782
        %v2848 = vmul.f32 %v2696, %v2784
        %v2849 = vmul.f32 %v2700, %v2778
        %v2850 = vmul.f32 %v2704, %v2780
        %v2851 = vmul.f32 %v2708, %v2782
        %v2852 = vmul.f32 %v2712, %v2784
        %v2917 = vcombine.low %v2789, %v2790
        %v2918 = vcombine.low %v2791, %v2792
        %v2920 = vunpack.c.l.s4 1983009808
        %v2921 = vunpack.c.0.s8 %v2920
        %v2922 = vlaneseq
        %v2923 = vshrl.u32 %v2922, 7
        %v2924 = vsub.s32 %v2921, %v2923
        %v2925 = vrot.slane %v2917, %v2924
        %v2927 = vunpack.c.l.s4 1983009808
        %v2928 = vunpack.c.0.s8 %v2927
        %v2929 = vlaneseq
        %v2930 = vshrl.u32 %v2929, 7
        %v2931 = vsub.s32 %v2928, %v2930
        %v2932 = vrot.slane %v2918, %v2931
        %v2933 = vcombine.low %v2925, %v2932
        %v2934 = vcombine.low %v2793, %v2794
        %v2935 = vcombine.low %v2795, %v2796
        %v2937 = vunpack.c.l.s4 1983009808
        %v2938 = vunpack.c.0.s8 %v2937
        %v2939 = vlaneseq
        %v2940 = vshrl.u32 %v2939, 7
        %v2941 = vsub.s32 %v2938, %v2940
        %v2942 = vrot.slane %v2934, %v2941
        %v2944 = vunpack.c.l.s4 1983009808
        %v2945 = vunpack.c.0.s8 %v2944
        %v2946 = vlaneseq
        %v2947 = vshrl.u32 %v2946, 7
        %v2948 = vsub.s32 %v2945, %v2947
        %v2949 = vrot.slane %v2935, %v2948
        %v2950 = vcombine.low %v2942, %v2949
        %v2951 = vcombine.low %v2797, %v2798
        %v2952 = vcombine.low %v2799, %v2800
        %v2954 = vunpack.c.l.s4 1983009808
        %v2955 = vunpack.c.0.s8 %v2954
        %v2956 = vlaneseq
        %v2957 = vshrl.u32 %v2956, 7
        %v2958 = vsub.s32 %v2955, %v2957
        %v2959 = vrot.slane %v2951, %v2958
        %v2961 = vunpack.c.l.s4 1983009808
        %v2962 = vunpack.c.0.s8 %v2961
        %v2963 = vlaneseq
        %v2964 = vshrl.u32 %v2963, 7
        %v2965 = vsub.s32 %v2962, %v2964
        %v2966 = vrot.slane %v2952, %v2965
        %v2967 = vcombine.low %v2959, %v2966
        %v2968 = vcombine.low %v2801, %v2802
        %v2969 = vcombine.low %v2803, %v2804
        %v2971 = vunpack.c.l.s4 1983009808
        %v2972 = vunpack.c.0.s8 %v2971
        %v2973 = vlaneseq
        %v2974 = vshrl.u32 %v2973, 7
        %v2975 = vsub.s32 %v2972, %v2974
        %v2976 = vrot.slane %v2968, %v2975
        %v2978 = vunpack.c.l.s4 1983009808
        %v2979 = vunpack.c.0.s8 %v2978
        %v2980 = vlaneseq
        %v2981 = vshrl.u32 %v2980, 7
        %v2982 = vsub.s32 %v2979, %v2981
        %v2983 = vrot.slane %v2969, %v2982
        %v2984 = vcombine.low %v2976, %v2983
        %v2985 = vcombine.low %v2805, %v2806
        %v2986 = vcombine.low %v2807, %v2808
        %v2988 = vunpack.c.l.s4 1983009808
        %v2989 = vunpack.c.0.s8 %v2988
        %v2990 = vlaneseq
        %v2991 = vshrl.u32 %v2990, 7
        %v2992 = vsub.s32 %v2989, %v2991
        %v2993 = vrot.slane %v2985, %v2992
        %v2995 = vunpack.c.l.s4 1983009808
        %v2996 = vunpack.c.0.s8 %v2995
        %v2997 = vlaneseq
        %v2998 = vshrl.u32 %v2997, 7
        %v2999 = vsub.s32 %v2996, %v2998
        %v3000 = vrot.slane %v2986, %v2999
        %v3001 = vcombine.low %v2993, %v3000
        %v3002 = vcombine.low %v2809, %v2810
        %v3003 = vcombine.low %v2811, %v2812
        %v3005 = vunpack.c.l.s4 1983009808
        %v3006 = vunpack.c.0.s8 %v3005
        %v3007 = vlaneseq
        %v3008 = vshrl.u32 %v3007, 7
        %v3009 = vsub.s32 %v3006, %v3008
        %v3010 = vrot.slane %v3002, %v3009
        %v3012 = vunpack.c.l.s4 1983009808
        %v3013 = vunpack.c.0.s8 %v3012
        %v3014 = vlaneseq
        %v3015 = vshrl.u32 %v3014, 7
        %v3016 = vsub.s32 %v3013, %v3015
        %v3017 = vrot.slane %v3003, %v3016
        %v3018 = vcombine.low %v3010, %v3017
        %v3019 = vcombine.low %v2813, %v2814
        %v3020 = vcombine.low %v2815, %v2816
        %v3022 = vunpack.c.l.s4 1983009808
        %v3023 = vunpack.c.0.s8 %v3022
        %v3024 = vlaneseq
        %v3025 = vshrl.u32 %v3024, 7
        %v3026 = vsub.s32 %v3023, %v3025
        %v3027 = vrot.slane %v3019, %v3026
        %v3029 = vunpack.c.l.s4 1983009808
        %v3030 = vunpack.c.0.s8 %v3029
        %v3031 = vlaneseq
        %v3032 = vshrl.u32 %v3031, 7
        %v3033 = vsub.s32 %v3030, %v3032
        %v3034 = vrot.slane %v3020, %v3033
        %v3035 = vcombine.low %v3027, %v3034
        %v3036 = vcombine.low %v2817, %v2818
        %v3037 = vcombine.low %v2819, %v2820
        %v3039 = vunpack.c.l.s4 1983009808
        %v3040 = vunpack.c.0.s8 %v3039
        %v3041 = vlaneseq
        %v3042 = vshrl.u32 %v3041, 7
        %v3043 = vsub.s32 %v3040, %v3042
        %v3044 = vrot.slane %v3036, %v3043
        %v3046 = vunpack.c.l.s4 1983009808
        %v3047 = vunpack.c.0.s8 %v3046
        %v3048 = vlaneseq
        %v3049 = vshrl.u32 %v3048, 7
        %v3050 = vsub.s32 %v3047, %v3049
        %v3051 = vrot.slane %v3037, %v3050
        %v3052 = vcombine.low %v3044, %v3051
        %v3053 = vcombine.low %v2821, %v2822
        %v3054 = vcombine.low %v2823, %v2824
        %v3056 = vunpack.c.l.s4 1983009808
        %v3057 = vunpack.c.0.s8 %v3056
        %v3058 = vlaneseq
        %v3059 = vshrl.u32 %v3058, 7
        %v3060 = vsub.s32 %v3057, %v3059
        %v3061 = vrot.slane %v3053, %v3060
        %v3063 = vunpack.c.l.s4 1983009808
        %v3064 = vunpack.c.0.s8 %v3063
        %v3065 = vlaneseq
        %v3066 = vshrl.u32 %v3065, 7
        %v3067 = vsub.s32 %v3064, %v3066
        %v3068 = vrot.slane %v3054, %v3067
        %v3069 = vcombine.low %v3061, %v3068
        %v3070 = vcombine.low %v2825, %v2826
        %v3071 = vcombine.low %v2827, %v2828
        %v3073 = vunpack.c.l.s4 1983009808
        %v3074 = vunpack.c.0.s8 %v3073
        %v3075 = vlaneseq
        %v3076 = vshrl.u32 %v3075, 7
        %v3077 = vsub.s32 %v3074, %v3076
        %v3078 = vrot.slane %v3070, %v3077
        %v3080 = vunpack.c.l.s4 1983009808
        %v3081 = vunpack.c.0.s8 %v3080
        %v3082 = vlaneseq
        %v3083 = vshrl.u32 %v3082, 7
        %v3084 = vsub.s32 %v3081, %v3083
        %v3085 = vrot.slane %v3071, %v3084
        %v3086 = vcombine.low %v3078, %v3085
        %v3087 = vcombine.low %v2829, %v2830
        %v3088 = vcombine.low %v2831, %v2832
        %v3090 = vunpack.c.l.s4 1983009808
        %v3091 = vunpack.c.0.s8 %v3090
        %v3092 = vlaneseq
        %v3093 = vshrl.u32 %v3092, 7
        %v3094 = vsub.s32 %v3091, %v3093
        %v3095 = vrot.slane %v3087, %v3094
        %v3097 = vunpack.c.l.s4 1983009808
        %v3098 = vunpack.c.0.s8 %v3097
        %v3099 = vlaneseq
        %v3100 = vshrl.u32 %v3099, 7
        %v3101 = vsub.s32 %v3098, %v3100
        %v3102 = vrot.slane %v3088, %v3101
        %v3103 = vcombine.low %v3095, %v3102
        %v3104 = vcombine.low %v2833, %v2834
        %v3105 = vcombine.low %v2835, %v2836
        %v3107 = vunpack.c.l.s4 1983009808
        %v3108 = vunpack.c.0.s8 %v3107
        %v3109 = vlaneseq
        %v3110 = vshrl.u32 %v3109, 7
        %v3111 = vsub.s32 %v3108, %v3110
        %v3112 = vrot.slane %v3104, %v3111
        %v3114 = vunpack.c.l.s4 1983009808
        %v3115 = vunpack.c.0.s8 %v3114
        %v3116 = vlaneseq
        %v3117 = vshrl.u32 %v3116, 7
        %v3118 = vsub.s32 %v3115, %v3117
        %v3119 = vrot.slane %v3105, %v3118
        %v3120 = vcombine.low %v3112, %v3119
        %v3121 = vcombine.low %v2837, %v2838
        %v3122 = vcombine.low %v2839, %v2840
        %v3124 = vunpack.c.l.s4 1983009808
        %v3125 = vunpack.c.0.s8 %v3124
        %v3126 = vlaneseq
        %v3127 = vshrl.u32 %v3126, 7
        %v3128 = vsub.s32 %v3125, %v3127
        %v3129 = vrot.slane %v3121, %v3128
        %v3131 = vunpack.c.l.s4 1983009808
        %v3132 = vunpack.c.0.s8 %v3131
        %v3133 = vlaneseq
        %v3134 = vshrl.u32 %v3133, 7
        %v3135 = vsub.s32 %v3132, %v3134
        %v3136 = vrot.slane %v3122, %v3135
        %v3137 = vcombine.low %v3129, %v3136
        %v3138 = vcombine.low %v2841, %v2842
        %v3139 = vcombine.low %v2843, %v2844
        %v3141 = vunpack.c.l.s4 1983009808
        %v3142 = vunpack.c.0.s8 %v3141
        %v3143 = vlaneseq
        %v3144 = vshrl.u32 %v3143, 7
        %v3145 = vsub.s32 %v3142, %v3144
        %v3146 = vrot.slane %v3138, %v3145
        %v3148 = vunpack.c.l.s4 1983009808
        %v3149 = vunpack.c.0.s8 %v3148
        %v3150 = vlaneseq
        %v3151 = vshrl.u32 %v3150, 7
        %v3152 = vsub.s32 %v3149, %v3151
        %v3153 = vrot.slane %v3139, %v3152
        %v3154 = vcombine.low %v3146, %v3153
        %v3155 = vcombine.low %v2845, %v2846
        %v3156 = vcombine.low %v2847, %v2848
        %v3158 = vunpack.c.l.s4 1983009808
        %v3159 = vunpack.c.0.s8 %v3158
        %v3160 = vlaneseq
        %v3161 = vshrl.u32 %v3160, 7
        %v3162 = vsub.s32 %v3159, %v3161
        %v3163 = vrot.slane %v3155, %v3162
        %v3165 = vunpack.c.l.s4 1983009808
        %v3166 = vunpack.c.0.s8 %v3165
        %v3167 = vlaneseq
        %v3168 = vshrl.u32 %v3167, 7
        %v3169 = vsub.s32 %v3166, %v3168
        %v3170 = vrot.slane %v3156, %v3169
        %v3171 = vcombine.low %v3163, %v3170
        %v3172 = vcombine.low %v2849, %v2850
        %v3173 = vcombine.low %v2851, %v2852
        %v3175 = vunpack.c.l.s4 1983009808
        %v3176 = vunpack.c.0.s8 %v3175
        %v3177 = vlaneseq
        %v3178 = vshrl.u32 %v3177, 7
        %v3179 = vsub.s32 %v3176, %v3178
        %v3180 = vrot.slane %v3172, %v3179
        %v3182 = vunpack.c.l.s4 1983009808
        %v3183 = vunpack.c.0.s8 %v3182
        %v3184 = vlaneseq
        %v3185 = vshrl.u32 %v3184, 7
        %v3186 = vsub.s32 %v3183, %v3185
        %v3187 = vrot.slane %v3173, %v3186
        %v3188 = vcombine.low %v3180, %v3187
        %3205 = vst.msk [vmem:[%s704 + $0x1] sm:$0xff] %vm463, %v2933
        %3206 = vst.msk [vmem:[%s704 + $0x9] sm:$0xff] %vm463, %v2950
        %3207 = vst.msk [vmem:[%s704 + $0x19] sm:$0xff] %vm463, %v2933
        %3208 = vst.msk [vmem:[%s704 + $0x21] sm:$0xff] %vm463, %v2950
        %3209 = vst.msk [vmem:[%s704 + $0x31] sm:$0xff] %vm463, %v2967
        %3210 = vst.msk [vmem:[%s704 + $0x39] sm:$0xff] %vm463, %v2984
        %3211 = vst.msk [vmem:[%s704 + $0x49] sm:$0xff] %vm463, %v2967
        %3212 = vst.msk [vmem:[%s704 + $0x51] sm:$0xff] %vm463, %v2984
        %3213 = vst.msk [vmem:[%s704 + $0x61] sm:$0xff] %vm463, %v3001
        %3214 = vst.msk [vmem:[%s704 + $0x69] sm:$0xff] %vm463, %v3018
        %3215 = vst.msk [vmem:[%s704 + $0x79] sm:$0xff] %vm463, %v3001
        %3216 = vst.msk [vmem:[%s704 + $0x81] sm:$0xff] %vm463, %v3018
        %3217 = vst.msk [vmem:[%s704 + $0x91] sm:$0xff] %vm463, %v3035
        %3218 = vst.msk [vmem:[%s704 + $0x99] sm:$0xff] %vm463, %v3052
        %3219 = vst.msk [vmem:[%s704 + $0xa9] sm:$0xff] %vm463, %v3035
        %3220 = vst.msk [vmem:[%s704 + $0xb1] sm:$0xff] %vm463, %v3052
        %3221 = vst.msk [vmem:[%s704 + $0xc1] sm:$0xff] %vm463, %v3069
        %3222 = vst.msk [vmem:[%s704 + $0xc9] sm:$0xff] %vm463, %v3086
        %3223 = vst.msk [vmem:[%s704 + $0xd9] sm:$0xff] %vm463, %v3069
        %3224 = vst.msk [vmem:[%s704 + $0xe1] sm:$0xff] %vm463, %v3086
        %3225 = vst.msk [vmem:[%s704 + $0xf1] sm:$0xff] %vm463, %v3103
        %3226 = vst.msk [vmem:[%s704 + $0xf9] sm:$0xff] %vm463, %v3120
        %3227 = vst.msk [vmem:[%s704 + $0x109] sm:$0xff] %vm463, %v3103
        %3228 = vst.msk [vmem:[%s704 + $0x111] sm:$0xff] %vm463, %v3120
        %3229 = vst.msk [vmem:[%s704 + $0x121] sm:$0xff] %vm463, %v3137
        %3230 = vst.msk [vmem:[%s704 + $0x129] sm:$0xff] %vm463, %v3154
        %3231 = vst.msk [vmem:[%s704 + $0x139] sm:$0xff] %vm463, %v3137
        %3232 = vst.msk [vmem:[%s704 + $0x141] sm:$0xff] %vm463, %v3154
        %3233 = vst.msk [vmem:[%s704 + $0x151] sm:$0xff] %vm463, %v3171
        %3234 = vst.msk [vmem:[%s704 + $0x159] sm:$0xff] %vm463, %v3188
        %3235 = vst.msk [vmem:[%s704 + $0x169] sm:$0xff] %vm463, %v3171
        %3236 = vst.msk [vmem:[%s704 + $0x171] sm:$0xff] %vm463, %v3188
        %v3237 = vld [vmem:[#allocation2] sm:$0xff]
        %v3238 = vld [vmem:[#allocation2 + $0x8] sm:$0xff]
        %v3239 = vld [vmem:[#allocation2 + $0x18] sm:$0xff]
        %v3240 = vld [vmem:[#allocation2 + $0x20] sm:$0xff]
        %v3241 = vld [vmem:[#allocation2 + $0x30] sm:$0xff]
        %v3242 = vld [vmem:[#allocation2 + $0x38] sm:$0xff]
        %v3243 = vld [vmem:[#allocation2 + $0x48] sm:$0xff]
        %v3244 = vld [vmem:[#allocation2 + $0x50] sm:$0xff]
        %v3245 = vld [vmem:[#allocation2 + $0x60] sm:$0xff]
        %v3246 = vld [vmem:[#allocation2 + $0x68] sm:$0xff]
        %v3247 = vld [vmem:[#allocation2 + $0x78] sm:$0xff]
        %v3248 = vld [vmem:[#allocation2 + $0x80] sm:$0xff]
        %v3249 = vld [vmem:[#allocation2 + $0x90] sm:$0xff]
        %v3250 = vld [vmem:[#allocation2 + $0x98] sm:$0xff]
        %v3251 = vld [vmem:[#allocation2 + $0xa8] sm:$0xff]
        %v3252 = vld [vmem:[#allocation2 + $0xb0] sm:$0xff]
        %v3253 = vld [vmem:[#allocation2 + $0xc0] sm:$0xff]
        %v3254 = vld [vmem:[#allocation2 + $0xc8] sm:$0xff]
        %v3255 = vld [vmem:[#allocation2 + $0xd8] sm:$0xff]
        %v3256 = vld [vmem:[#allocation2 + $0xe0] sm:$0xff]
        %v3257 = vld [vmem:[#allocation2 + $0xf0] sm:$0xff]
        %v3258 = vld [vmem:[#allocation2 + $0xf8] sm:$0xff]
        %v3259 = vld [vmem:[#allocation2 + $0x108] sm:$0xff]
        %v3260 = vld [vmem:[#allocation2 + $0x110] sm:$0xff]
        %v3261 = vld [vmem:[#allocation2 + $0x120] sm:$0xff]
        %v3262 = vld [vmem:[#allocation2 + $0x128] sm:$0xff]
        %v3263 = vld [vmem:[#allocation2 + $0x138] sm:$0xff]
        %v3264 = vld [vmem:[#allocation2 + $0x140] sm:$0xff]
        %v3265 = vld [vmem:[#allocation2 + $0x150] sm:$0xff]
        %v3266 = vld [vmem:[#allocation2 + $0x158] sm:$0xff]
        %v3267 = vld [vmem:[#allocation2 + $0x168] sm:$0xff]
        %v3268 = vld [vmem:[#allocation2 + $0x170] sm:$0xff]
        %v3269 = vld [vmem:[#allocation2 + $0x1] sm:$0xff]
        %v3270 = vld [vmem:[#allocation2 + $0x9] sm:$0xff]
        %v3271 = vld [vmem:[#allocation2 + $0x19] sm:$0xff]
        %v3272 = vld [vmem:[#allocation2 + $0x21] sm:$0xff]
        %v3273 = vld [vmem:[#allocation2 + $0x31] sm:$0xff]
        %v3274 = vld [vmem:[#allocation2 + $0x39] sm:$0xff]
        %v3275 = vld [vmem:[#allocation2 + $0x49] sm:$0xff]
        %v3276 = vld [vmem:[#allocation2 + $0x51] sm:$0xff]
        %v3277 = vld [vmem:[#allocation2 + $0x61] sm:$0xff]
        %v3278 = vld [vmem:[#allocation2 + $0x69] sm:$0xff]
        %v3279 = vld [vmem:[#allocation2 + $0x79] sm:$0xff]
        %v3280 = vld [vmem:[#allocation2 + $0x81] sm:$0xff]
        %v3281 = vld [vmem:[#allocation2 + $0x91] sm:$0xff]
        %v3282 = vld [vmem:[#allocation2 + $0x99] sm:$0xff]
        %v3283 = vld [vmem:[#allocation2 + $0xa9] sm:$0xff]
        %v3284 = vld [vmem:[#allocation2 + $0xb1] sm:$0xff]
        %v3285 = vld [vmem:[#allocation2 + $0xc1] sm:$0xff]
        %v3286 = vld [vmem:[#allocation2 + $0xc9] sm:$0xff]
        %v3287 = vld [vmem:[#allocation2 + $0xd9] sm:$0xff]
        %v3288 = vld [vmem:[#allocation2 + $0xe1] sm:$0xff]
        %v3289 = vld [vmem:[#allocation2 + $0xf1] sm:$0xff]
        %v3290 = vld [vmem:[#allocation2 + $0xf9] sm:$0xff]
        %v3291 = vld [vmem:[#allocation2 + $0x109] sm:$0xff]
        %v3292 = vld [vmem:[#allocation2 + $0x111] sm:$0xff]
        %v3293 = vld [vmem:[#allocation2 + $0x121] sm:$0xff]
        %v3294 = vld [vmem:[#allocation2 + $0x129] sm:$0xff]
        %v3295 = vld [vmem:[#allocation2 + $0x139] sm:$0xff]
        %v3296 = vld [vmem:[#allocation2 + $0x141] sm:$0xff]
        %v3297 = vld [vmem:[#allocation2 + $0x151] sm:$0xff]
        %v3298 = vld [vmem:[#allocation2 + $0x159] sm:$0xff]
        %v3299 = vld [vmem:[#allocation2 + $0x169] sm:$0xff]
        %v3300 = vld [vmem:[#allocation2 + $0x171] sm:$0xff]
        %v3301 = vld [vmem:[#allocation2 + $0x2] sm:$0xff]
        %v3302 = vld [vmem:[#allocation2 + $0xa] sm:$0xff]
        %v3303 = vld [vmem:[#allocation2 + $0x1a] sm:$0xff]
        %v3304 = vld [vmem:[#allocation2 + $0x22] sm:$0xff]
        %v3305 = vld [vmem:[#allocation2 + $0x32] sm:$0xff]
        %v3306 = vld [vmem:[#allocation2 + $0x3a] sm:$0xff]
        %v3307 = vld [vmem:[#allocation2 + $0x4a] sm:$0xff]
        %v3308 = vld [vmem:[#allocation2 + $0x52] sm:$0xff]
        %v3309 = vld [vmem:[#allocation2 + $0x62] sm:$0xff]
        %v3310 = vld [vmem:[#allocation2 + $0x6a] sm:$0xff]
        %v3311 = vld [vmem:[#allocation2 + $0x7a] sm:$0xff]
        %v3312 = vld [vmem:[#allocation2 + $0x82] sm:$0xff]
        %v3313 = vld [vmem:[#allocation2 + $0x92] sm:$0xff]
        %v3314 = vld [vmem:[#allocation2 + $0x9a] sm:$0xff]
        %v3315 = vld [vmem:[#allocation2 + $0xaa] sm:$0xff]
        %v3316 = vld [vmem:[#allocation2 + $0xb2] sm:$0xff]
        %v3317 = vld [vmem:[#allocation2 + $0xc2] sm:$0xff]
        %v3318 = vld [vmem:[#allocation2 + $0xca] sm:$0xff]
        %v3319 = vld [vmem:[#allocation2 + $0xda] sm:$0xff]
        %v3320 = vld [vmem:[#allocation2 + $0xe2] sm:$0xff]
        %v3321 = vld [vmem:[#allocation2 + $0xf2] sm:$0xff]
        %v3322 = vld [vmem:[#allocation2 + $0xfa] sm:$0xff]
        %v3323 = vld [vmem:[#allocation2 + $0x10a] sm:$0xff]
        %v3324 = vld [vmem:[#allocation2 + $0x112] sm:$0xff]
        %v3325 = vld [vmem:[#allocation2 + $0x122] sm:$0xff]
        %v3326 = vld [vmem:[#allocation2 + $0x12a] sm:$0xff]
        %v3327 = vld [vmem:[#allocation2 + $0x13a] sm:$0xff]
        %v3328 = vld [vmem:[#allocation2 + $0x142] sm:$0xff]
        %v3329 = vld [vmem:[#allocation2 + $0x152] sm:$0xff]
        %v3330 = vld [vmem:[#allocation2 + $0x15a] sm:$0xff]
        %v3331 = vld [vmem:[#allocation2 + $0x16a] sm:$0xff]
        %v3332 = vld [vmem:[#allocation2 + $0x172] sm:$0xff]
        %v3333 = vld [vmem:[%s704] sm:$0xff]
        %v3334 = vld [vmem:[%s704 + $0x8] sm:$0xff]
        %v3335 = vld [vmem:[%s704 + $0x18] sm:$0xff]
        %v3336 = vld [vmem:[%s704 + $0x20] sm:$0xff]
        %v3337 = vld [vmem:[%s704 + $0x30] sm:$0xff]
        %v3338 = vld [vmem:[%s704 + $0x38] sm:$0xff]
        %v3339 = vld [vmem:[%s704 + $0x48] sm:$0xff]
        %v3340 = vld [vmem:[%s704 + $0x50] sm:$0xff]
        %v3341 = vld [vmem:[%s704 + $0x60] sm:$0xff]
        %v3342 = vld [vmem:[%s704 + $0x68] sm:$0xff]
        %v3343 = vld [vmem:[%s704 + $0x78] sm:$0xff]
        %v3344 = vld [vmem:[%s704 + $0x80] sm:$0xff]
        %v3345 = vld [vmem:[%s704 + $0x90] sm:$0xff]
        %v3346 = vld [vmem:[%s704 + $0x98] sm:$0xff]
        %v3347 = vld [vmem:[%s704 + $0xa8] sm:$0xff]
        %v3348 = vld [vmem:[%s704 + $0xb0] sm:$0xff]
        %v3349 = vld [vmem:[%s704 + $0xc0] sm:$0xff]
        %v3350 = vld [vmem:[%s704 + $0xc8] sm:$0xff]
        %v3351 = vld [vmem:[%s704 + $0xd8] sm:$0xff]
        %v3352 = vld [vmem:[%s704 + $0xe0] sm:$0xff]
        %v3353 = vld [vmem:[%s704 + $0xf0] sm:$0xff]
        %v3354 = vld [vmem:[%s704 + $0xf8] sm:$0xff]
        %v3355 = vld [vmem:[%s704 + $0x108] sm:$0xff]
        %v3356 = vld [vmem:[%s704 + $0x110] sm:$0xff]
        %v3357 = vld [vmem:[%s704 + $0x120] sm:$0xff]
        %v3358 = vld [vmem:[%s704 + $0x128] sm:$0xff]
        %v3359 = vld [vmem:[%s704 + $0x138] sm:$0xff]
        %v3360 = vld [vmem:[%s704 + $0x140] sm:$0xff]
        %v3361 = vld [vmem:[%s704 + $0x150] sm:$0xff]
        %v3362 = vld [vmem:[%s704 + $0x158] sm:$0xff]
        %v3363 = vld [vmem:[%s704 + $0x168] sm:$0xff]
        %v3364 = vld [vmem:[%s704 + $0x170] sm:$0xff]
        %v3365 = vld [vmem:[%s704 + $0x1] sm:$0xff]
        %v3366 = vld [vmem:[%s704 + $0x9] sm:$0xff]
        %v3367 = vld [vmem:[%s704 + $0x19] sm:$0xff]
        %v3368 = vld [vmem:[%s704 + $0x21] sm:$0xff]
        %v3369 = vld [vmem:[%s704 + $0x31] sm:$0xff]
        %v3370 = vld [vmem:[%s704 + $0x39] sm:$0xff]
        %v3371 = vld [vmem:[%s704 + $0x49] sm:$0xff]
        %v3372 = vld [vmem:[%s704 + $0x51] sm:$0xff]
        %v3373 = vld [vmem:[%s704 + $0x61] sm:$0xff]
        %v3374 = vld [vmem:[%s704 + $0x69] sm:$0xff]
        %v3375 = vld [vmem:[%s704 + $0x79] sm:$0xff]
        %v3376 = vld [vmem:[%s704 + $0x81] sm:$0xff]
        %v3377 = vld [vmem:[%s704 + $0x91] sm:$0xff]
        %v3378 = vld [vmem:[%s704 + $0x99] sm:$0xff]
        %v3379 = vld [vmem:[%s704 + $0xa9] sm:$0xff]
        %v3380 = vld [vmem:[%s704 + $0xb1] sm:$0xff]
        %v3381 = vld [vmem:[%s704 + $0xc1] sm:$0xff]
        %v3382 = vld [vmem:[%s704 + $0xc9] sm:$0xff]
        %v3383 = vld [vmem:[%s704 + $0xd9] sm:$0xff]
        %v3384 = vld [vmem:[%s704 + $0xe1] sm:$0xff]
        %v3385 = vld [vmem:[%s704 + $0xf1] sm:$0xff]
        %v3386 = vld [vmem:[%s704 + $0xf9] sm:$0xff]
        %v3387 = vld [vmem:[%s704 + $0x109] sm:$0xff]
        %v3388 = vld [vmem:[%s704 + $0x111] sm:$0xff]
        %v3389 = vld [vmem:[%s704 + $0x121] sm:$0xff]
        %v3390 = vld [vmem:[%s704 + $0x129] sm:$0xff]
        %v3391 = vld [vmem:[%s704 + $0x139] sm:$0xff]
        %v3392 = vld [vmem:[%s704 + $0x141] sm:$0xff]
        %v3393 = vld [vmem:[%s704 + $0x151] sm:$0xff]
        %v3394 = vld [vmem:[%s704 + $0x159] sm:$0xff]
        %v3395 = vld [vmem:[%s704 + $0x169] sm:$0xff]
        %v3396 = vld [vmem:[%s704 + $0x171] sm:$0xff]
        %v3397 = vld [vmem:[%s704 + $0x2] sm:$0xff]
        %v3398 = vld [vmem:[%s704 + $0xa] sm:$0xff]
        %v3399 = vld [vmem:[%s704 + $0x1a] sm:$0xff]
        %v3400 = vld [vmem:[%s704 + $0x22] sm:$0xff]
        %v3401 = vld [vmem:[%s704 + $0x32] sm:$0xff]
        %v3402 = vld [vmem:[%s704 + $0x3a] sm:$0xff]
        %v3403 = vld [vmem:[%s704 + $0x4a] sm:$0xff]
        %v3404 = vld [vmem:[%s704 + $0x52] sm:$0xff]
        %v3405 = vld [vmem:[%s704 + $0x62] sm:$0xff]
        %v3406 = vld [vmem:[%s704 + $0x6a] sm:$0xff]
        %v3407 = vld [vmem:[%s704 + $0x7a] sm:$0xff]
        %v3408 = vld [vmem:[%s704 + $0x82] sm:$0xff]
        %v3409 = vld [vmem:[%s704 + $0x92] sm:$0xff]
        %v3410 = vld [vmem:[%s704 + $0x9a] sm:$0xff]
        %v3411 = vld [vmem:[%s704 + $0xaa] sm:$0xff]
        %v3412 = vld [vmem:[%s704 + $0xb2] sm:$0xff]
        %v3413 = vld [vmem:[%s704 + $0xc2] sm:$0xff]
        %v3414 = vld [vmem:[%s704 + $0xca] sm:$0xff]
        %v3415 = vld [vmem:[%s704 + $0xda] sm:$0xff]
        %v3416 = vld [vmem:[%s704 + $0xe2] sm:$0xff]
        %v3417 = vld [vmem:[%s704 + $0xf2] sm:$0xff]
        %v3418 = vld [vmem:[%s704 + $0xfa] sm:$0xff]
        %v3419 = vld [vmem:[%s704 + $0x10a] sm:$0xff]
        %v3420 = vld [vmem:[%s704 + $0x112] sm:$0xff]
        %v3421 = vld [vmem:[%s704 + $0x122] sm:$0xff]
        %v3422 = vld [vmem:[%s704 + $0x12a] sm:$0xff]
        %v3423 = vld [vmem:[%s704 + $0x13a] sm:$0xff]
        %v3424 = vld [vmem:[%s704 + $0x142] sm:$0xff]
        %v3425 = vld [vmem:[%s704 + $0x152] sm:$0xff]
        %v3426 = vld [vmem:[%s704 + $0x15a] sm:$0xff]
        %v3427 = vld [vmem:[%s704 + $0x16a] sm:$0xff]
        %v3428 = vld [vmem:[%s704 + $0x172] sm:$0xff]
        %v3429 = vld [vmem:[%s734] sm:$0xff]
        %v3430 = vld [vmem:[%s734 + $0x8] sm:$0xff]
        %v3431 = vld [vmem:[%s734 + $0x18] sm:$0xff]
        %v3432 = vld [vmem:[%s734 + $0x20] sm:$0xff]
        %v3433 = vld [vmem:[%s734 + $0x30] sm:$0xff]
        %v3434 = vld [vmem:[%s734 + $0x38] sm:$0xff]
        %v3435 = vld [vmem:[%s734 + $0x48] sm:$0xff]
        %v3436 = vld [vmem:[%s734 + $0x50] sm:$0xff]
        %v3437 = vld [vmem:[%s734 + $0x60] sm:$0xff]
        %v3438 = vld [vmem:[%s734 + $0x68] sm:$0xff]
        %v3439 = vld [vmem:[%s734 + $0x78] sm:$0xff]
        %v3440 = vld [vmem:[%s734 + $0x80] sm:$0xff]
        %v3441 = vld [vmem:[%s734 + $0x90] sm:$0xff]
        %v3442 = vld [vmem:[%s734 + $0x98] sm:$0xff]
        %v3443 = vld [vmem:[%s734 + $0xa8] sm:$0xff]
        %v3444 = vld [vmem:[%s734 + $0xb0] sm:$0xff]
        %v3445 = vld [vmem:[%s734 + $0xc0] sm:$0xff]
        %v3446 = vld [vmem:[%s734 + $0xc8] sm:$0xff]
        %v3447 = vld [vmem:[%s734 + $0xd8] sm:$0xff]
        %v3448 = vld [vmem:[%s734 + $0xe0] sm:$0xff]
        %v3449 = vld [vmem:[%s734 + $0xf0] sm:$0xff]
        %v3450 = vld [vmem:[%s734 + $0xf8] sm:$0xff]
        %v3451 = vld [vmem:[%s734 + $0x108] sm:$0xff]
        %v3452 = vld [vmem:[%s734 + $0x110] sm:$0xff]
        %v3453 = vld [vmem:[%s734 + $0x120] sm:$0xff]
        %v3454 = vld [vmem:[%s734 + $0x128] sm:$0xff]
        %v3455 = vld [vmem:[%s734 + $0x138] sm:$0xff]
        %v3456 = vld [vmem:[%s734 + $0x140] sm:$0xff]
        %v3457 = vld [vmem:[%s734 + $0x150] sm:$0xff]
        %v3458 = vld [vmem:[%s734 + $0x158] sm:$0xff]
        %v3459 = vld [vmem:[%s734 + $0x168] sm:$0xff]
        %v3460 = vld [vmem:[%s734 + $0x170] sm:$0xff]
        %v3461 = vld [vmem:[%s734 + $0x1] sm:$0xff]
        %v3462 = vld [vmem:[%s734 + $0x9] sm:$0xff]
        %v3463 = vld [vmem:[%s734 + $0x19] sm:$0xff]
        %v3464 = vld [vmem:[%s734 + $0x21] sm:$0xff]
        %v3465 = vld [vmem:[%s734 + $0x31] sm:$0xff]
        %v3466 = vld [vmem:[%s734 + $0x39] sm:$0xff]
        %v3467 = vld [vmem:[%s734 + $0x49] sm:$0xff]
        %v3468 = vld [vmem:[%s734 + $0x51] sm:$0xff]
        %v3469 = vld [vmem:[%s734 + $0x61] sm:$0xff]
        %v3470 = vld [vmem:[%s734 + $0x69] sm:$0xff]
        %v3471 = vld [vmem:[%s734 + $0x79] sm:$0xff]
        %v3472 = vld [vmem:[%s734 + $0x81] sm:$0xff]
        %v3473 = vld [vmem:[%s734 + $0x91] sm:$0xff]
        %v3474 = vld [vmem:[%s734 + $0x99] sm:$0xff]
        %v3475 = vld [vmem:[%s734 + $0xa9] sm:$0xff]
        %v3476 = vld [vmem:[%s734 + $0xb1] sm:$0xff]
        %v3477 = vld [vmem:[%s734 + $0xc1] sm:$0xff]
        %v3478 = vld [vmem:[%s734 + $0xc9] sm:$0xff]
        %v3479 = vld [vmem:[%s734 + $0xd9] sm:$0xff]
        %v3480 = vld [vmem:[%s734 + $0xe1] sm:$0xff]
        %v3481 = vld [vmem:[%s734 + $0xf1] sm:$0xff]
        %v3482 = vld [vmem:[%s734 + $0xf9] sm:$0xff]
        %v3483 = vld [vmem:[%s734 + $0x109] sm:$0xff]
        %v3484 = vld [vmem:[%s734 + $0x111] sm:$0xff]
        %v3485 = vld [vmem:[%s734 + $0x121] sm:$0xff]
        %v3486 = vld [vmem:[%s734 + $0x129] sm:$0xff]
        %v3487 = vld [vmem:[%s734 + $0x139] sm:$0xff]
        %v3488 = vld [vmem:[%s734 + $0x141] sm:$0xff]
        %v3489 = vld [vmem:[%s734 + $0x151] sm:$0xff]
        %v3490 = vld [vmem:[%s734 + $0x159] sm:$0xff]
        %v3491 = vld [vmem:[%s734 + $0x169] sm:$0xff]
        %v3492 = vld [vmem:[%s734 + $0x171] sm:$0xff]
        %v3493 = vld [vmem:[%s734 + $0x2] sm:$0xff]
        %v3494 = vld [vmem:[%s734 + $0xa] sm:$0xff]
        %v3495 = vld [vmem:[%s734 + $0x1a] sm:$0xff]
        %v3496 = vld [vmem:[%s734 + $0x22] sm:$0xff]
        %v3497 = vld [vmem:[%s734 + $0x32] sm:$0xff]
        %v3498 = vld [vmem:[%s734 + $0x3a] sm:$0xff]
        %v3499 = vld [vmem:[%s734 + $0x4a] sm:$0xff]
        %v3500 = vld [vmem:[%s734 + $0x52] sm:$0xff]
        %v3501 = vld [vmem:[%s734 + $0x62] sm:$0xff]
        %v3502 = vld [vmem:[%s734 + $0x6a] sm:$0xff]
        %v3503 = vld [vmem:[%s734 + $0x7a] sm:$0xff]
        %v3504 = vld [vmem:[%s734 + $0x82] sm:$0xff]
        %v3505 = vld [vmem:[%s734 + $0x92] sm:$0xff]
        %v3506 = vld [vmem:[%s734 + $0x9a] sm:$0xff]
        %v3507 = vld [vmem:[%s734 + $0xaa] sm:$0xff]
        %v3508 = vld [vmem:[%s734 + $0xb2] sm:$0xff]
        %v3509 = vld [vmem:[%s734 + $0xc2] sm:$0xff]
        %v3510 = vld [vmem:[%s734 + $0xca] sm:$0xff]
        %v3511 = vld [vmem:[%s734 + $0xda] sm:$0xff]
        %v3512 = vld [vmem:[%s734 + $0xe2] sm:$0xff]
        %v3513 = vld [vmem:[%s734 + $0xf2] sm:$0xff]
        %v3514 = vld [vmem:[%s734 + $0xfa] sm:$0xff]
        %v3515 = vld [vmem:[%s734 + $0x10a] sm:$0xff]
        %v3516 = vld [vmem:[%s734 + $0x112] sm:$0xff]
        %v3517 = vld [vmem:[%s734 + $0x122] sm:$0xff]
        %v3518 = vld [vmem:[%s734 + $0x12a] sm:$0xff]
        %v3519 = vld [vmem:[%s734 + $0x13a] sm:$0xff]
        %v3520 = vld [vmem:[%s734 + $0x142] sm:$0xff]
        %v3521 = vld [vmem:[%s734 + $0x152] sm:$0xff]
        %v3522 = vld [vmem:[%s734 + $0x15a] sm:$0xff]
        %v3523 = vld [vmem:[%s734 + $0x16a] sm:$0xff]
        %v3524 = vld [vmem:[%s734 + $0x172] sm:$0xff]
        %3557 = vrot.lane.b32.xlu0 %v3269, 32
        %v3558 = vpop.permute.xlu0 %3557
        %3559 = vrot.lane.b32.xlu0 %v3270, 32
        %v3560 = vpop.permute.xlu0 %3559
        %3561 = vrot.lane.b32.xlu0 %v3271, 32
        %v3562 = vpop.permute.xlu0 %3561
        %3563 = vrot.lane.b32.xlu0 %v3272, 32
        %v3564 = vpop.permute.xlu0 %3563
        %3565 = vrot.lane.b32.xlu0 %v3273, 32
        %v3566 = vpop.permute.xlu0 %3565
        %3567 = vrot.lane.b32.xlu0 %v3274, 32
        %v3568 = vpop.permute.xlu0 %3567
        %3569 = vrot.lane.b32.xlu0 %v3275, 32
        %v3570 = vpop.permute.xlu0 %3569
        %3571 = vrot.lane.b32.xlu0 %v3276, 32
        %v3572 = vpop.permute.xlu0 %3571
        %3573 = vrot.lane.b32.xlu0 %v3277, 32
        %v3574 = vpop.permute.xlu0 %3573
        %3575 = vrot.lane.b32.xlu0 %v3278, 32
        %v3576 = vpop.permute.xlu0 %3575
        %3577 = vrot.lane.b32.xlu0 %v3279, 32
        %v3578 = vpop.permute.xlu0 %3577
        %3579 = vrot.lane.b32.xlu0 %v3280, 32
        %v3580 = vpop.permute.xlu0 %3579
        %3581 = vrot.lane.b32.xlu0 %v3281, 32
        %v3582 = vpop.permute.xlu0 %3581
        %3583 = vrot.lane.b32.xlu0 %v3282, 32
        %v3584 = vpop.permute.xlu0 %3583
        %3585 = vrot.lane.b32.xlu0 %v3283, 32
        %v3586 = vpop.permute.xlu0 %3585
        %3587 = vrot.lane.b32.xlu0 %v3284, 32
        %v3588 = vpop.permute.xlu0 %3587
        %3589 = vrot.lane.b32.xlu0 %v3285, 32
        %v3590 = vpop.permute.xlu0 %3589
        %3591 = vrot.lane.b32.xlu0 %v3286, 32
        %v3592 = vpop.permute.xlu0 %3591
        %3593 = vrot.lane.b32.xlu0 %v3287, 32
        %v3594 = vpop.permute.xlu0 %3593
        %3595 = vrot.lane.b32.xlu0 %v3288, 32
        %v3596 = vpop.permute.xlu0 %3595
        %3597 = vrot.lane.b32.xlu0 %v3289, 32
        %v3598 = vpop.permute.xlu0 %3597
        %3599 = vrot.lane.b32.xlu0 %v3290, 32
        %v3600 = vpop.permute.xlu0 %3599
        %3601 = vrot.lane.b32.xlu0 %v3291, 32
        %v3602 = vpop.permute.xlu0 %3601
        %3603 = vrot.lane.b32.xlu0 %v3292, 32
        %v3604 = vpop.permute.xlu0 %3603
        %3605 = vrot.lane.b32.xlu0 %v3293, 32
        %v3606 = vpop.permute.xlu0 %3605
        %3607 = vrot.lane.b32.xlu0 %v3294, 32
        %v3608 = vpop.permute.xlu0 %3607
        %3609 = vrot.lane.b32.xlu0 %v3295, 32
        %v3610 = vpop.permute.xlu0 %3609
        %3611 = vrot.lane.b32.xlu0 %v3296, 32
        %v3612 = vpop.permute.xlu0 %3611
        %3613 = vrot.lane.b32.xlu0 %v3297, 32
        %v3614 = vpop.permute.xlu0 %3613
        %3615 = vrot.lane.b32.xlu0 %v3298, 32
        %v3616 = vpop.permute.xlu0 %3615
        %3617 = vrot.lane.b32.xlu0 %v3299, 32
        %v3618 = vpop.permute.xlu0 %3617
        %3619 = vrot.lane.b32.xlu0 %v3300, 32
        %v3620 = vpop.permute.xlu0 %3619
        %3685 = vrot.lane.b32.xlu0 %v3301, 64
        %v3686 = vpop.permute.xlu0 %3685
        %3687 = vrot.lane.b32.xlu0 %v3302, 64
        %v3688 = vpop.permute.xlu0 %3687
        %3689 = vrot.lane.b32.xlu0 %v3303, 64
        %v3690 = vpop.permute.xlu0 %3689
        %3691 = vrot.lane.b32.xlu0 %v3304, 64
        %v3692 = vpop.permute.xlu0 %3691
        %3693 = vrot.lane.b32.xlu0 %v3305, 64
        %v3694 = vpop.permute.xlu0 %3693
        %3695 = vrot.lane.b32.xlu0 %v3306, 64
        %v3696 = vpop.permute.xlu0 %3695
        %3697 = vrot.lane.b32.xlu0 %v3307, 64
        %v3698 = vpop.permute.xlu0 %3697
        %3699 = vrot.lane.b32.xlu0 %v3308, 64
        %v3700 = vpop.permute.xlu0 %3699
        %3701 = vrot.lane.b32.xlu0 %v3309, 64
        %v3702 = vpop.permute.xlu0 %3701
        %3703 = vrot.lane.b32.xlu0 %v3310, 64
        %v3704 = vpop.permute.xlu0 %3703
        %3705 = vrot.lane.b32.xlu0 %v3311, 64
        %v3706 = vpop.permute.xlu0 %3705
        %3707 = vrot.lane.b32.xlu0 %v3312, 64
        %v3708 = vpop.permute.xlu0 %3707
        %3709 = vrot.lane.b32.xlu0 %v3313, 64
        %v3710 = vpop.permute.xlu0 %3709
        %3711 = vrot.lane.b32.xlu0 %v3314, 64
        %v3712 = vpop.permute.xlu0 %3711
        %3713 = vrot.lane.b32.xlu0 %v3315, 64
        %v3714 = vpop.permute.xlu0 %3713
        %3715 = vrot.lane.b32.xlu0 %v3316, 64
        %v3716 = vpop.permute.xlu0 %3715
        %3717 = vrot.lane.b32.xlu0 %v3317, 64
        %v3718 = vpop.permute.xlu0 %3717
        %3719 = vrot.lane.b32.xlu0 %v3318, 64
        %v3720 = vpop.permute.xlu0 %3719
        %3721 = vrot.lane.b32.xlu0 %v3319, 64
        %v3722 = vpop.permute.xlu0 %3721
        %3723 = vrot.lane.b32.xlu0 %v3320, 64
        %v3724 = vpop.permute.xlu0 %3723
        %3725 = vrot.lane.b32.xlu0 %v3321, 64
        %v3726 = vpop.permute.xlu0 %3725
        %3727 = vrot.lane.b32.xlu0 %v3322, 64
        %v3728 = vpop.permute.xlu0 %3727
        %3729 = vrot.lane.b32.xlu0 %v3323, 64
        %v3730 = vpop.permute.xlu0 %3729
        %3731 = vrot.lane.b32.xlu0 %v3324, 64
        %v3732 = vpop.permute.xlu0 %3731
        %3733 = vrot.lane.b32.xlu0 %v3325, 64
        %v3734 = vpop.permute.xlu0 %3733
        %3735 = vrot.lane.b32.xlu0 %v3326, 64
        %v3736 = vpop.permute.xlu0 %3735
        %3737 = vrot.lane.b32.xlu0 %v3327, 64
        %v3738 = vpop.permute.xlu0 %3737
        %3739 = vrot.lane.b32.xlu0 %v3328, 64
        %v3740 = vpop.permute.xlu0 %3739
        %3741 = vrot.lane.b32.xlu0 %v3329, 64
        %v3742 = vpop.permute.xlu0 %3741
        %3743 = vrot.lane.b32.xlu0 %v3330, 64
        %v3744 = vpop.permute.xlu0 %3743
        %3745 = vrot.lane.b32.xlu0 %v3331, 64
        %v3746 = vpop.permute.xlu0 %3745
        %3747 = vrot.lane.b32.xlu0 %v3332, 64
        %v3748 = vpop.permute.xlu0 %3747
        %3813 = vrot.lane.b32.xlu0 %v3333, 96
        %v3814 = vpop.permute.xlu0 %3813
        %3815 = vrot.lane.b32.xlu0 %v3334, 96
        %v3816 = vpop.permute.xlu0 %3815
        %3817 = vrot.lane.b32.xlu0 %v3335, 96
        %v3818 = vpop.permute.xlu0 %3817
        %3819 = vrot.lane.b32.xlu0 %v3336, 96
        %v3820 = vpop.permute.xlu0 %3819
        %3821 = vrot.lane.b32.xlu0 %v3337, 96
        %v3822 = vpop.permute.xlu0 %3821
        %3823 = vrot.lane.b32.xlu0 %v3338, 96
        %v3824 = vpop.permute.xlu0 %3823
        %3825 = vrot.lane.b32.xlu0 %v3339, 96
        %v3826 = vpop.permute.xlu0 %3825
        %3827 = vrot.lane.b32.xlu0 %v3340, 96
        %v3828 = vpop.permute.xlu0 %3827
        %3829 = vrot.lane.b32.xlu0 %v3341, 96
        %v3830 = vpop.permute.xlu0 %3829
        %3831 = vrot.lane.b32.xlu0 %v3342, 96
        %v3832 = vpop.permute.xlu0 %3831
        %3833 = vrot.lane.b32.xlu0 %v3343, 96
        %v3834 = vpop.permute.xlu0 %3833
        %3835 = vrot.lane.b32.xlu0 %v3344, 96
        %v3836 = vpop.permute.xlu0 %3835
        %3837 = vrot.lane.b32.xlu0 %v3345, 96
        %v3838 = vpop.permute.xlu0 %3837
        %3839 = vrot.lane.b32.xlu0 %v3346, 96
        %v3840 = vpop.permute.xlu0 %3839
        %3841 = vrot.lane.b32.xlu0 %v3347, 96
        %v3842 = vpop.permute.xlu0 %3841
        %3843 = vrot.lane.b32.xlu0 %v3348, 96
        %v3844 = vpop.permute.xlu0 %3843
        %3845 = vrot.lane.b32.xlu0 %v3349, 96
        %v3846 = vpop.permute.xlu0 %3845
        %3847 = vrot.lane.b32.xlu0 %v3350, 96
        %v3848 = vpop.permute.xlu0 %3847
        %3849 = vrot.lane.b32.xlu0 %v3351, 96
        %v3850 = vpop.permute.xlu0 %3849
        %3851 = vrot.lane.b32.xlu0 %v3352, 96
        %v3852 = vpop.permute.xlu0 %3851
        %3853 = vrot.lane.b32.xlu0 %v3353, 96
        %v3854 = vpop.permute.xlu0 %3853
        %3855 = vrot.lane.b32.xlu0 %v3354, 96
        %v3856 = vpop.permute.xlu0 %3855
        %3857 = vrot.lane.b32.xlu0 %v3355, 96
        %v3858 = vpop.permute.xlu0 %3857
        %3859 = vrot.lane.b32.xlu0 %v3356, 96
        %v3860 = vpop.permute.xlu0 %3859
        %3861 = vrot.lane.b32.xlu0 %v3357, 96
        %v3862 = vpop.permute.xlu0 %3861
        %3863 = vrot.lane.b32.xlu0 %v3358, 96
        %v3864 = vpop.permute.xlu0 %3863
        %3865 = vrot.lane.b32.xlu0 %v3359, 96
        %v3866 = vpop.permute.xlu0 %3865
        %3867 = vrot.lane.b32.xlu0 %v3360, 96
        %v3868 = vpop.permute.xlu0 %3867
        %3869 = vrot.lane.b32.xlu0 %v3361, 96
        %v3870 = vpop.permute.xlu0 %3869
        %3871 = vrot.lane.b32.xlu0 %v3362, 96
        %v3872 = vpop.permute.xlu0 %3871
        %3873 = vrot.lane.b32.xlu0 %v3363, 96
        %v3874 = vpop.permute.xlu0 %3873
        %3875 = vrot.lane.b32.xlu0 %v3364, 96
        %v3876 = vpop.permute.xlu0 %3875
        %3941 = vrot.lane.b32.xlu0 %v3397, 32
        %v3942 = vpop.permute.xlu0 %3941
        %3943 = vrot.lane.b32.xlu0 %v3398, 32
        %v3944 = vpop.permute.xlu0 %3943
        %3945 = vrot.lane.b32.xlu0 %v3399, 32
        %v3946 = vpop.permute.xlu0 %3945
        %3947 = vrot.lane.b32.xlu0 %v3400, 32
        %v3948 = vpop.permute.xlu0 %3947
        %3949 = vrot.lane.b32.xlu0 %v3401, 32
        %v3950 = vpop.permute.xlu0 %3949
        %3951 = vrot.lane.b32.xlu0 %v3402, 32
        %v3952 = vpop.permute.xlu0 %3951
        %3953 = vrot.lane.b32.xlu0 %v3403, 32
        %v3954 = vpop.permute.xlu0 %3953
        %3955 = vrot.lane.b32.xlu0 %v3404, 32
        %v3956 = vpop.permute.xlu0 %3955
        %3957 = vrot.lane.b32.xlu0 %v3405, 32
        %v3958 = vpop.permute.xlu0 %3957
        %3959 = vrot.lane.b32.xlu0 %v3406, 32
        %v3960 = vpop.permute.xlu0 %3959
        %3961 = vrot.lane.b32.xlu0 %v3407, 32
        %v3962 = vpop.permute.xlu0 %3961
        %3963 = vrot.lane.b32.xlu0 %v3408, 32
        %v3964 = vpop.permute.xlu0 %3963
        %3965 = vrot.lane.b32.xlu0 %v3409, 32
        %v3966 = vpop.permute.xlu0 %3965
        %3967 = vrot.lane.b32.xlu0 %v3410, 32
        %v3968 = vpop.permute.xlu0 %3967
        %3969 = vrot.lane.b32.xlu0 %v3411, 32
        %v3970 = vpop.permute.xlu0 %3969
        %3971 = vrot.lane.b32.xlu0 %v3412, 32
        %v3972 = vpop.permute.xlu0 %3971
        %3973 = vrot.lane.b32.xlu0 %v3413, 32
        %v3974 = vpop.permute.xlu0 %3973
        %3975 = vrot.lane.b32.xlu0 %v3414, 32
        %v3976 = vpop.permute.xlu0 %3975
        %3977 = vrot.lane.b32.xlu0 %v3415, 32
        %v3978 = vpop.permute.xlu0 %3977
        %3979 = vrot.lane.b32.xlu0 %v3416, 32
        %v3980 = vpop.permute.xlu0 %3979
        %3981 = vrot.lane.b32.xlu0 %v3417, 32
        %v3982 = vpop.permute.xlu0 %3981
        %3983 = vrot.lane.b32.xlu0 %v3418, 32
        %v3984 = vpop.permute.xlu0 %3983
        %3985 = vrot.lane.b32.xlu0 %v3419, 32
        %v3986 = vpop.permute.xlu0 %3985
        %3987 = vrot.lane.b32.xlu0 %v3420, 32
        %v3988 = vpop.permute.xlu0 %3987
        %3989 = vrot.lane.b32.xlu0 %v3421, 32
        %v3990 = vpop.permute.xlu0 %3989
        %3991 = vrot.lane.b32.xlu0 %v3422, 32
        %v3992 = vpop.permute.xlu0 %3991
        %3993 = vrot.lane.b32.xlu0 %v3423, 32
        %v3994 = vpop.permute.xlu0 %3993
        %3995 = vrot.lane.b32.xlu0 %v3424, 32
        %v3996 = vpop.permute.xlu0 %3995
        %3997 = vrot.lane.b32.xlu0 %v3425, 32
        %v3998 = vpop.permute.xlu0 %3997
        %3999 = vrot.lane.b32.xlu0 %v3426, 32
        %v4000 = vpop.permute.xlu0 %3999
        %4001 = vrot.lane.b32.xlu0 %v3427, 32
        %v4002 = vpop.permute.xlu0 %4001
        %4003 = vrot.lane.b32.xlu0 %v3428, 32
        %v4004 = vpop.permute.xlu0 %4003
        %4069 = vrot.lane.b32.xlu0 %v3429, 64
        %v4070 = vpop.permute.xlu0 %4069
        %4071 = vrot.lane.b32.xlu0 %v3430, 64
        %v4072 = vpop.permute.xlu0 %4071
        %4073 = vrot.lane.b32.xlu0 %v3431, 64
        %v4074 = vpop.permute.xlu0 %4073
        %4075 = vrot.lane.b32.xlu0 %v3432, 64
        %v4076 = vpop.permute.xlu0 %4075
        %4077 = vrot.lane.b32.xlu0 %v3433, 64
        %v4078 = vpop.permute.xlu0 %4077
        %4079 = vrot.lane.b32.xlu0 %v3434, 64
        %v4080 = vpop.permute.xlu0 %4079
        %4081 = vrot.lane.b32.xlu0 %v3435, 64
        %v4082 = vpop.permute.xlu0 %4081
        %4083 = vrot.lane.b32.xlu0 %v3436, 64
        %v4084 = vpop.permute.xlu0 %4083
        %4085 = vrot.lane.b32.xlu0 %v3437, 64
        %v4086 = vpop.permute.xlu0 %4085
        %4087 = vrot.lane.b32.xlu0 %v3438, 64
        %v4088 = vpop.permute.xlu0 %4087
        %4089 = vrot.lane.b32.xlu0 %v3439, 64
        %v4090 = vpop.permute.xlu0 %4089
        %4091 = vrot.lane.b32.xlu0 %v3440, 64
        %v4092 = vpop.permute.xlu0 %4091
        %4093 = vrot.lane.b32.xlu0 %v3441, 64
        %v4094 = vpop.permute.xlu0 %4093
        %4095 = vrot.lane.b32.xlu0 %v3442, 64
        %v4096 = vpop.permute.xlu0 %4095
        %4097 = vrot.lane.b32.xlu0 %v3443, 64
        %v4098 = vpop.permute.xlu0 %4097
        %4099 = vrot.lane.b32.xlu0 %v3444, 64
        %v4100 = vpop.permute.xlu0 %4099
        %4101 = vrot.lane.b32.xlu0 %v3445, 64
        %v4102 = vpop.permute.xlu0 %4101
        %4103 = vrot.lane.b32.xlu0 %v3446, 64
        %v4104 = vpop.permute.xlu0 %4103
        %4105 = vrot.lane.b32.xlu0 %v3447, 64
        %v4106 = vpop.permute.xlu0 %4105
        %4107 = vrot.lane.b32.xlu0 %v3448, 64
        %v4108 = vpop.permute.xlu0 %4107
        %4109 = vrot.lane.b32.xlu0 %v3449, 64
        %v4110 = vpop.permute.xlu0 %4109
        %4111 = vrot.lane.b32.xlu0 %v3450, 64
        %v4112 = vpop.permute.xlu0 %4111
        %4113 = vrot.lane.b32.xlu0 %v3451, 64
        %v4114 = vpop.permute.xlu0 %4113
        %4115 = vrot.lane.b32.xlu0 %v3452, 64
        %v4116 = vpop.permute.xlu0 %4115
        %4117 = vrot.lane.b32.xlu0 %v3453, 64
        %v4118 = vpop.permute.xlu0 %4117
        %4119 = vrot.lane.b32.xlu0 %v3454, 64
        %v4120 = vpop.permute.xlu0 %4119
        %4121 = vrot.lane.b32.xlu0 %v3455, 64
        %v4122 = vpop.permute.xlu0 %4121
        %4123 = vrot.lane.b32.xlu0 %v3456, 64
        %v4124 = vpop.permute.xlu0 %4123
        %4125 = vrot.lane.b32.xlu0 %v3457, 64
        %v4126 = vpop.permute.xlu0 %4125
        %4127 = vrot.lane.b32.xlu0 %v3458, 64
        %v4128 = vpop.permute.xlu0 %4127
        %4129 = vrot.lane.b32.xlu0 %v3459, 64
        %v4130 = vpop.permute.xlu0 %4129
        %4131 = vrot.lane.b32.xlu0 %v3460, 64
        %v4132 = vpop.permute.xlu0 %4131
        %4197 = vrot.lane.b32.xlu0 %v3461, 96
        %v4198 = vpop.permute.xlu0 %4197
        %4199 = vrot.lane.b32.xlu0 %v3462, 96
        %v4200 = vpop.permute.xlu0 %4199
        %4201 = vrot.lane.b32.xlu0 %v3463, 96
        %v4202 = vpop.permute.xlu0 %4201
        %4203 = vrot.lane.b32.xlu0 %v3464, 96
        %v4204 = vpop.permute.xlu0 %4203
        %4205 = vrot.lane.b32.xlu0 %v3465, 96
        %v4206 = vpop.permute.xlu0 %4205
        %4207 = vrot.lane.b32.xlu0 %v3466, 96
        %v4208 = vpop.permute.xlu0 %4207
        %4209 = vrot.lane.b32.xlu0 %v3467, 96
        %v4210 = vpop.permute.xlu0 %4209
        %4211 = vrot.lane.b32.xlu0 %v3468, 96
        %v4212 = vpop.permute.xlu0 %4211
        %4213 = vrot.lane.b32.xlu0 %v3469, 96
        %v4214 = vpop.permute.xlu0 %4213
        %4215 = vrot.lane.b32.xlu0 %v3470, 96
        %v4216 = vpop.permute.xlu0 %4215
        %4217 = vrot.lane.b32.xlu0 %v3471, 96
        %v4218 = vpop.permute.xlu0 %4217
        %4219 = vrot.lane.b32.xlu0 %v3472, 96
        %v4220 = vpop.permute.xlu0 %4219
        %4221 = vrot.lane.b32.xlu0 %v3473, 96
        %v4222 = vpop.permute.xlu0 %4221
        %4223 = vrot.lane.b32.xlu0 %v3474, 96
        %v4224 = vpop.permute.xlu0 %4223
        %4225 = vrot.lane.b32.xlu0 %v3475, 96
        %v4226 = vpop.permute.xlu0 %4225
        %4227 = vrot.lane.b32.xlu0 %v3476, 96
        %v4228 = vpop.permute.xlu0 %4227
        %4229 = vrot.lane.b32.xlu0 %v3477, 96
        %v4230 = vpop.permute.xlu0 %4229
        %4231 = vrot.lane.b32.xlu0 %v3478, 96
        %v4232 = vpop.permute.xlu0 %4231
        %4233 = vrot.lane.b32.xlu0 %v3479, 96
        %v4234 = vpop.permute.xlu0 %4233
        %4235 = vrot.lane.b32.xlu0 %v3480, 96
        %v4236 = vpop.permute.xlu0 %4235
        %4237 = vrot.lane.b32.xlu0 %v3481, 96
        %v4238 = vpop.permute.xlu0 %4237
        %4239 = vrot.lane.b32.xlu0 %v3482, 96
        %v4240 = vpop.permute.xlu0 %4239
        %4241 = vrot.lane.b32.xlu0 %v3483, 96
        %v4242 = vpop.permute.xlu0 %4241
        %4243 = vrot.lane.b32.xlu0 %v3484, 96
        %v4244 = vpop.permute.xlu0 %4243
        %4245 = vrot.lane.b32.xlu0 %v3485, 96
        %v4246 = vpop.permute.xlu0 %4245
        %4247 = vrot.lane.b32.xlu0 %v3486, 96
        %v4248 = vpop.permute.xlu0 %4247
        %4249 = vrot.lane.b32.xlu0 %v3487, 96
        %v4250 = vpop.permute.xlu0 %4249
        %4251 = vrot.lane.b32.xlu0 %v3488, 96
        %v4252 = vpop.permute.xlu0 %4251
        %4253 = vrot.lane.b32.xlu0 %v3489, 96
        %v4254 = vpop.permute.xlu0 %4253
        %4255 = vrot.lane.b32.xlu0 %v3490, 96
        %v4256 = vpop.permute.xlu0 %4255
        %4257 = vrot.lane.b32.xlu0 %v3491, 96
        %v4258 = vpop.permute.xlu0 %4257
        %4259 = vrot.lane.b32.xlu0 %v3492, 96
        %v4260 = vpop.permute.xlu0 %4259
        %v4293 = vsel %vm463, %v3237, %v3558
        %v4294 = vsel %vm463, %v3238, %v3560
        %v4295 = vsel %vm463, %v3239, %v3562
        %v4296 = vsel %vm463, %v3240, %v3564
        %v4297 = vsel %vm463, %v3241, %v3566
        %v4298 = vsel %vm463, %v3242, %v3568
        %v4299 = vsel %vm463, %v3243, %v3570
        %v4300 = vsel %vm463, %v3244, %v3572
        %v4301 = vsel %vm463, %v3245, %v3574
        %v4302 = vsel %vm463, %v3246, %v3576
        %v4303 = vsel %vm463, %v3247, %v3578
        %v4304 = vsel %vm463, %v3248, %v3580
        %v4305 = vsel %vm463, %v3249, %v3582
        %v4306 = vsel %vm463, %v3250, %v3584
        %v4307 = vsel %vm463, %v3251, %v3586
        %v4308 = vsel %vm463, %v3252, %v3588
        %v4309 = vsel %vm463, %v3253, %v3590
        %v4310 = vsel %vm463, %v3254, %v3592
        %v4311 = vsel %vm463, %v3255, %v3594
        %v4312 = vsel %vm463, %v3256, %v3596
        %v4313 = vsel %vm463, %v3257, %v3598
        %v4314 = vsel %vm463, %v3258, %v3600
        %v4315 = vsel %vm463, %v3259, %v3602
        %v4316 = vsel %vm463, %v3260, %v3604
        %v4317 = vsel %vm463, %v3261, %v3606
        %v4318 = vsel %vm463, %v3262, %v3608
        %v4319 = vsel %vm463, %v3263, %v3610
        %v4320 = vsel %vm463, %v3264, %v3612
        %v4321 = vsel %vm463, %v3265, %v3614
        %v4322 = vsel %vm463, %v3266, %v3616
        %v4323 = vsel %vm463, %v3267, %v3618
        %v4324 = vsel %vm463, %v3268, %v3620
        %v4325 = vsel %vm845, %v4293, %v3686
        %v4326 = vsel %vm845, %v4294, %v3688
        %v4327 = vsel %vm845, %v4295, %v3690
        %v4328 = vsel %vm845, %v4296, %v3692
        %v4329 = vsel %vm845, %v4297, %v3694
        %v4330 = vsel %vm845, %v4298, %v3696
        %v4331 = vsel %vm845, %v4299, %v3698
        %v4332 = vsel %vm845, %v4300, %v3700
        %v4333 = vsel %vm845, %v4301, %v3702
        %v4334 = vsel %vm845, %v4302, %v3704
        %v4335 = vsel %vm845, %v4303, %v3706
        %v4336 = vsel %vm845, %v4304, %v3708
        %v4337 = vsel %vm845, %v4305, %v3710
        %v4338 = vsel %vm845, %v4306, %v3712
        %v4339 = vsel %vm845, %v4307, %v3714
        %v4340 = vsel %vm845, %v4308, %v3716
        %v4341 = vsel %vm845, %v4309, %v3718
        %v4342 = vsel %vm845, %v4310, %v3720
        %v4343 = vsel %vm845, %v4311, %v3722
        %v4344 = vsel %vm845, %v4312, %v3724
        %v4345 = vsel %vm845, %v4313, %v3726
        %v4346 = vsel %vm845, %v4314, %v3728
        %v4347 = vsel %vm845, %v4315, %v3730
        %v4348 = vsel %vm845, %v4316, %v3732
        %v4349 = vsel %vm845, %v4317, %v3734
        %v4350 = vsel %vm845, %v4318, %v3736
        %v4351 = vsel %vm845, %v4319, %v3738
        %v4352 = vsel %vm845, %v4320, %v3740
        %v4353 = vsel %vm845, %v4321, %v3742
        %v4354 = vsel %vm845, %v4322, %v3744
        %v4355 = vsel %vm845, %v4323, %v3746
        %v4356 = vsel %vm845, %v4324, %v3748
        %v4357 = vsel %vm848, %v4325, %v3814
        %v4358 = vsel %vm848, %v4326, %v3816
        %v4359 = vsel %vm848, %v4327, %v3818
        %v4360 = vsel %vm848, %v4328, %v3820
        %v4361 = vsel %vm848, %v4329, %v3822
        %v4362 = vsel %vm848, %v4330, %v3824
        %v4363 = vsel %vm848, %v4331, %v3826
        %v4364 = vsel %vm848, %v4332, %v3828
        %v4365 = vsel %vm848, %v4333, %v3830
        %v4366 = vsel %vm848, %v4334, %v3832
        %v4367 = vsel %vm848, %v4335, %v3834
        %v4368 = vsel %vm848, %v4336, %v3836
        %v4369 = vsel %vm848, %v4337, %v3838
        %v4370 = vsel %vm848, %v4338, %v3840
        %v4371 = vsel %vm848, %v4339, %v3842
        %v4372 = vsel %vm848, %v4340, %v3844
        %v4373 = vsel %vm848, %v4341, %v3846
        %v4374 = vsel %vm848, %v4342, %v3848
        %v4375 = vsel %vm848, %v4343, %v3850
        %v4376 = vsel %vm848, %v4344, %v3852
        %v4377 = vsel %vm848, %v4345, %v3854
        %v4378 = vsel %vm848, %v4346, %v3856
        %v4379 = vsel %vm848, %v4347, %v3858
        %v4380 = vsel %vm848, %v4348, %v3860
        %v4381 = vsel %vm848, %v4349, %v3862
        %v4382 = vsel %vm848, %v4350, %v3864
        %v4383 = vsel %vm848, %v4351, %v3866
        %v4384 = vsel %vm848, %v4352, %v3868
        %v4385 = vsel %vm848, %v4353, %v3870
        %v4386 = vsel %vm848, %v4354, %v3872
        %v4387 = vsel %vm848, %v4355, %v3874
        %v4388 = vsel %vm848, %v4356, %v3876
        %v4389 = vsel %vm463, %v3365, %v3942
        %v4390 = vsel %vm463, %v3366, %v3944
        %v4391 = vsel %vm463, %v3367, %v3946
        %v4392 = vsel %vm463, %v3368, %v3948
        %v4393 = vsel %vm463, %v3369, %v3950
        %v4394 = vsel %vm463, %v3370, %v3952
        %v4395 = vsel %vm463, %v3371, %v3954
        %v4396 = vsel %vm463, %v3372, %v3956
        %v4397 = vsel %vm463, %v3373, %v3958
        %v4398 = vsel %vm463, %v3374, %v3960
        %v4399 = vsel %vm463, %v3375, %v3962
        %v4400 = vsel %vm463, %v3376, %v3964
        %v4401 = vsel %vm463, %v3377, %v3966
        %v4402 = vsel %vm463, %v3378, %v3968
        %v4403 = vsel %vm463, %v3379, %v3970
        %v4404 = vsel %vm463, %v3380, %v3972
        %v4405 = vsel %vm463, %v3381, %v3974
        %v4406 = vsel %vm463, %v3382, %v3976
        %v4407 = vsel %vm463, %v3383, %v3978
        %v4408 = vsel %vm463, %v3384, %v3980
        %v4409 = vsel %vm463, %v3385, %v3982
        %v4410 = vsel %vm463, %v3386, %v3984
        %v4411 = vsel %vm463, %v3387, %v3986
        %v4412 = vsel %vm463, %v3388, %v3988
        %v4413 = vsel %vm463, %v3389, %v3990
        %v4414 = vsel %vm463, %v3390, %v3992
        %v4415 = vsel %vm463, %v3391, %v3994
        %v4416 = vsel %vm463, %v3392, %v3996
        %v4417 = vsel %vm463, %v3393, %v3998
        %v4418 = vsel %vm463, %v3394, %v4000
        %v4419 = vsel %vm463, %v3395, %v4002
        %v4420 = vsel %vm463, %v3396, %v4004
        %v4421 = vsel %vm845, %v4389, %v4070
        %v4422 = vsel %vm845, %v4390, %v4072
        %v4423 = vsel %vm845, %v4391, %v4074
        %v4424 = vsel %vm845, %v4392, %v4076
        %v4425 = vsel %vm845, %v4393, %v4078
        %v4426 = vsel %vm845, %v4394, %v4080
        %v4427 = vsel %vm845, %v4395, %v4082
        %v4428 = vsel %vm845, %v4396, %v4084
        %v4429 = vsel %vm845, %v4397, %v4086
        %v4430 = vsel %vm845, %v4398, %v4088
        %v4431 = vsel %vm845, %v4399, %v4090
        %v4432 = vsel %vm845, %v4400, %v4092
        %v4433 = vsel %vm845, %v4401, %v4094
        %v4434 = vsel %vm845, %v4402, %v4096
        %v4435 = vsel %vm845, %v4403, %v4098
        %v4436 = vsel %vm845, %v4404, %v4100
        %v4437 = vsel %vm845, %v4405, %v4102
        %v4438 = vsel %vm845, %v4406, %v4104
        %v4439 = vsel %vm845, %v4407, %v4106
        %v4440 = vsel %vm845, %v4408, %v4108
        %v4441 = vsel %vm845, %v4409, %v4110
        %v4442 = vsel %vm845, %v4410, %v4112
        %v4443 = vsel %vm845, %v4411, %v4114
        %v4444 = vsel %vm845, %v4412, %v4116
        %v4445 = vsel %vm845, %v4413, %v4118
        %v4446 = vsel %vm845, %v4414, %v4120
        %v4447 = vsel %vm845, %v4415, %v4122
        %v4448 = vsel %vm845, %v4416, %v4124
        %v4449 = vsel %vm845, %v4417, %v4126
        %v4450 = vsel %vm845, %v4418, %v4128
        %v4451 = vsel %vm845, %v4419, %v4130
        %v4452 = vsel %vm845, %v4420, %v4132
        %v4453 = vsel %vm848, %v4421, %v4198
        %v4454 = vsel %vm848, %v4422, %v4200
        %v4455 = vsel %vm848, %v4423, %v4202
        %v4456 = vsel %vm848, %v4424, %v4204
        %v4457 = vsel %vm848, %v4425, %v4206
        %v4458 = vsel %vm848, %v4426, %v4208
        %v4459 = vsel %vm848, %v4427, %v4210
        %v4460 = vsel %vm848, %v4428, %v4212
        %v4461 = vsel %vm848, %v4429, %v4214
        %v4462 = vsel %vm848, %v4430, %v4216
        %v4463 = vsel %vm848, %v4431, %v4218
        %v4464 = vsel %vm848, %v4432, %v4220
        %v4465 = vsel %vm848, %v4433, %v4222
        %v4466 = vsel %vm848, %v4434, %v4224
        %v4467 = vsel %vm848, %v4435, %v4226
        %v4468 = vsel %vm848, %v4436, %v4228
        %v4469 = vsel %vm848, %v4437, %v4230
        %v4470 = vsel %vm848, %v4438, %v4232
        %v4471 = vsel %vm848, %v4439, %v4234
        %v4472 = vsel %vm848, %v4440, %v4236
        %v4473 = vsel %vm848, %v4441, %v4238
        %v4474 = vsel %vm848, %v4442, %v4240
        %v4475 = vsel %vm848, %v4443, %v4242
        %v4476 = vsel %vm848, %v4444, %v4244
        %v4477 = vsel %vm848, %v4445, %v4246
        %v4478 = vsel %vm848, %v4446, %v4248
        %v4479 = vsel %vm848, %v4447, %v4250
        %v4480 = vsel %vm848, %v4448, %v4252
        %v4481 = vsel %vm848, %v4449, %v4254
        %v4482 = vsel %vm848, %v4450, %v4256
        %v4483 = vsel %vm848, %v4451, %v4258
        %v4484 = vsel %vm848, %v4452, %v4260
        %v4485 = vpack.c.bf16 %v4358, %v4357
        %v4486 = vpack.c.bf16 %v4454, %v4453
        %v4487 = vpack.c.bf16 %v3494, %v3493
        %v4488 = vpack.c.bf16 %v4360, %v4359
        %v4489 = vpack.c.bf16 %v4456, %v4455
        %v4490 = vpack.c.bf16 %v3496, %v3495
        %v4491 = vpack.c.bf16 %v4362, %v4361
        %v4492 = vpack.c.bf16 %v4458, %v4457
        %v4493 = vpack.c.bf16 %v3498, %v3497
        %v4494 = vpack.c.bf16 %v4364, %v4363
        %v4495 = vpack.c.bf16 %v4460, %v4459
        %v4496 = vpack.c.bf16 %v3500, %v3499
        %v4497 = vpack.c.bf16 %v4366, %v4365
        %v4498 = vpack.c.bf16 %v4462, %v4461
        %v4499 = vpack.c.bf16 %v3502, %v3501
        %v4500 = vpack.c.bf16 %v4368, %v4367
        %v4501 = vpack.c.bf16 %v4464, %v4463
        %v4502 = vpack.c.bf16 %v3504, %v3503
        %v4503 = vpack.c.bf16 %v4370, %v4369
        %v4504 = vpack.c.bf16 %v4466, %v4465
        %v4505 = vpack.c.bf16 %v3506, %v3505
        %v4506 = vpack.c.bf16 %v4372, %v4371
        %v4507 = vpack.c.bf16 %v4468, %v4467
        %v4508 = vpack.c.bf16 %v3508, %v3507
        %v4509 = vpack.c.bf16 %v4374, %v4373
        %v4510 = vpack.c.bf16 %v4470, %v4469
        %v4511 = vpack.c.bf16 %v3510, %v3509
        %v4512 = vpack.c.bf16 %v4376, %v4375
        %v4513 = vpack.c.bf16 %v4472, %v4471
        %v4514 = vpack.c.bf16 %v3512, %v3511
        %v4515 = vpack.c.bf16 %v4378, %v4377
        %v4516 = vpack.c.bf16 %v4474, %v4473
        %v4517 = vpack.c.bf16 %v3514, %v3513
        %v4518 = vpack.c.bf16 %v4380, %v4379
        %v4519 = vpack.c.bf16 %v4476, %v4475
        %v4520 = vpack.c.bf16 %v3516, %v3515
        %v4521 = vpack.c.bf16 %v4382, %v4381
        %v4522 = vpack.c.bf16 %v4478, %v4477
        %v4523 = vpack.c.bf16 %v3518, %v3517
        %v4524 = vpack.c.bf16 %v4384, %v4383
        %v4525 = vpack.c.bf16 %v4480, %v4479
        %v4526 = vpack.c.bf16 %v3520, %v3519
        %v4527 = vpack.c.bf16 %v4386, %v4385
        %v4528 = vpack.c.bf16 %v4482, %v4481
        %v4529 = vpack.c.bf16 %v3522, %v3521
        %v4530 = vpack.c.bf16 %v4388, %v4387
        %v4531 = vpack.c.bf16 %v4484, %v4483
        %v4532 = vpack.c.bf16 %v3524, %v3523
        %s4533 = scalar_lea.vmem %s9, 288
        %v4534 = vld [vmem:[%s4533] sm:$0xf]
        %v4535 = vld [vmem:[%s4533 + $0x4] sm:$0xf]
        %v4536 = vld [vmem:[%s4533 + $0x8] sm:$0xf]
        %v4537 = vld [vmem:[%s4533 + $0xc] sm:$0xf]
        %v4538 = vld [vmem:[%s4533 + $0x10] sm:$0xf]
        %v4539 = vld [vmem:[%s4533 + $0x14] sm:$0xf]
        %v4540 = vld [vmem:[%s4533 + $0x18] sm:$0xf]
        %v4541 = vld [vmem:[%s4533 + $0x1c] sm:$0xf]
        %v4542 = vld [vmem:[%s4533 + $0x20] sm:$0xf]
        %v4543 = vld [vmem:[%s4533 + $0x24] sm:$0xf]
        %v4544 = vld [vmem:[%s4533 + $0x28] sm:$0xf]
        %v4545 = vld [vmem:[%s4533 + $0x2c] sm:$0xf]
        %v4546 = vld [vmem:[%s4533 + $0x30] sm:$0xf]
        %v4547 = vld [vmem:[%s4533 + $0x34] sm:$0xf]
        %v4548 = vld [vmem:[%s4533 + $0x38] sm:$0xf]
        %v4549 = vld [vmem:[%s4533 + $0x3c] sm:$0xf]
        %v4550 = vld [vmem:[%s4533 + $0x40] sm:$0xf]
        %v4551 = vld [vmem:[%s4533 + $0x44] sm:$0xf]
        %v4552 = vld [vmem:[%s4533 + $0x48] sm:$0xf]
        %v4553 = vld [vmem:[%s4533 + $0x4c] sm:$0xf]
        %v4554 = vld [vmem:[%s4533 + $0x50] sm:$0xf]
        %v4555 = vld [vmem:[%s4533 + $0x54] sm:$0xf]
        %v4556 = vld [vmem:[%s4533 + $0x58] sm:$0xf]
        %v4557 = vld [vmem:[%s4533 + $0x5c] sm:$0xf]
        %v4558 = vld [vmem:[%s4533 + $0x60] sm:$0xf]
        %v4559 = vld [vmem:[%s4533 + $0x64] sm:$0xf]
        %v4560 = vld [vmem:[%s4533 + $0x68] sm:$0xf]
        %v4561 = vld [vmem:[%s4533 + $0x6c] sm:$0xf]
        %v4562 = vld [vmem:[%s4533 + $0x70] sm:$0xf]
        %v4563 = vld [vmem:[%s4533 + $0x74] sm:$0xf]
        %v4564 = vld [vmem:[%s4533 + $0x78] sm:$0xf]
        %v4565 = vld [vmem:[%s4533 + $0x7c] sm:$0xf]
        %v4566 = vld [vmem:[%s4533 + $0x80] sm:$0xf]
        %v4567 = vld [vmem:[%s4533 + $0x84] sm:$0xf]
        %v4568 = vld [vmem:[%s4533 + $0x88] sm:$0xf]
        %v4569 = vld [vmem:[%s4533 + $0x8c] sm:$0xf]
        %s4570 = scalar_lea.vmem %s10, 2
        %v4571 = vld [vmem:[%s4570] sm:$0x1]
        %v4573 = vlaneseq
        %v4574 = vshrl.u32 %v4573, 7
        %v4575 = vsub.s32 0, %v4574
        %v4576 = vrot.slane %v4571, %v4575
        %v4614 = vunpack.c.l.b16 %v4534
        %v4615 = vunpack.c.l.b16 %v4535
        %v4616 = vunpack.c.l.b16 %v4536
        %v4617 = vunpack.c.l.b16 %v4537
        %v4618 = vunpack.c.l.b16 %v4538
        %v4619 = vunpack.c.l.b16 %v4539
        %v4620 = vunpack.c.l.b16 %v4540
        %v4621 = vunpack.c.l.b16 %v4541
        %v4622 = vunpack.c.l.b16 %v4542
        %v4623 = vunpack.c.l.b16 %v4543
        %v4624 = vunpack.c.l.b16 %v4544
        %v4625 = vunpack.c.l.b16 %v4545
        %v4626 = vunpack.c.l.b16 %v4546
        %v4627 = vunpack.c.l.b16 %v4547
        %v4628 = vunpack.c.l.b16 %v4548
        %v4629 = vunpack.c.l.b16 %v4549
        %v4630 = vunpack.c.l.b16 %v4550
        %v4631 = vunpack.c.l.b16 %v4551
        %v4632 = vunpack.c.l.b16 %v4552
        %v4633 = vunpack.c.l.b16 %v4553
        %v4634 = vunpack.c.l.b16 %v4554
        %v4635 = vunpack.c.l.b16 %v4555
        %v4636 = vunpack.c.l.b16 %v4556
        %v4637 = vunpack.c.l.b16 %v4557
        %v4638 = vunpack.c.l.b16 %v4558
        %v4639 = vunpack.c.l.b16 %v4559
        %v4640 = vunpack.c.l.b16 %v4560
        %v4641 = vunpack.c.l.b16 %v4561
        %v4642 = vunpack.c.l.b16 %v4562
        %v4643 = vunpack.c.l.b16 %v4563
        %v4644 = vunpack.c.l.b16 %v4564
        %v4645 = vunpack.c.l.b16 %v4565
        %v4646 = vunpack.c.l.b16 %v4566
        %v4647 = vunpack.c.l.b16 %v4567
        %v4648 = vunpack.c.l.b16 %v4568
        %v4649 = vunpack.c.l.b16 %v4569
        %v4650 = vpack.c.b16 %v4615, %v4614
        %v4651 = vpack.c.b16 %v4617, %v4616
        %v4652 = vpack.c.b16 %v4619, %v4618
        %v4653 = vpack.c.b16 %v4621, %v4620
        %v4654 = vpack.c.b16 %v4623, %v4622
        %v4655 = vpack.c.b16 %v4625, %v4624
        %v4656 = vpack.c.b16 %v4627, %v4626
        %v4657 = vpack.c.b16 %v4629, %v4628
        %v4658 = vpack.c.b16 %v4631, %v4630
        %v4659 = vpack.c.b16 %v4633, %v4632
        %v4660 = vpack.c.b16 %v4635, %v4634
        %v4661 = vpack.c.b16 %v4637, %v4636
        %v4662 = vpack.c.b16 %v4639, %v4638
        %v4663 = vpack.c.b16 %v4641, %v4640
        %v4664 = vpack.c.b16 %v4643, %v4642
        %v4665 = vpack.c.b16 %v4645, %v4644
        %v4666 = vpack.c.b16 %v4647, %v4646
        %v4667 = vpack.c.b16 %v4649, %v4648
        %v4687 = vsel %vm463, %v4487, 0
        %v4690 = vsel %vm463, %v4490, 0
        %v4693 = vsel %vm463, %v4493, 0
        %v4696 = vsel %vm463, %v4496, 0
        %v4699 = vsel %vm463, %v4499, 0
        %v4702 = vsel %vm463, %v4502, 0
        %v4705 = vsel %vm463, %v4505, 0
        %v4708 = vsel %vm463, %v4508, 0
        %v4711 = vsel %vm463, %v4511, 0
        %v4714 = vsel %vm463, %v4514, 0
        %v4717 = vsel %vm463, %v4517, 0
        %v4720 = vsel %vm463, %v4520, 0
        %v4723 = vsel %vm463, %v4523, 0
        %v4726 = vsel %vm463, %v4526, 0
        %v4729 = vsel %vm463, %v4529, 0
        %v4732 = vsel %vm463, %v4532, 0
        %4734 = vmatprep.subr.bf16.mxu0 0
        %4735 = vmatpush1.bf16.msra.mxu0 %v4650
        %4736 = vmatprep.subr.bf16.mxu0 0
        %4737 = vmatpush1.bf16.msra.mxu0 %v4651
        %4738 = vmatprep.subr.bf16.mxu0 0
        %4739 = vmatpush1.bf16.msra.mxu0 %v4652
        %4740 = vmatprep.subr.bf16.mxu0 0
        %4741 = vmatpush1.bf16.msra.mxu0 %v4653
        %4742 = vmatprep.subr.bf16.mxu0 0
        %4743 = vmatpush1.bf16.msra.mxu0 %v4654
        %4744 = vmatprep.subr.bf16.mxu0 0
        %4745 = vmatpush1.bf16.msra.mxu0 %v4655
        %4746 = vmatprep.subr.bf16.mxu0 0
        %4747 = vmatpush1.bf16.msra.mxu0 %v4656
        %4748 = vmatprep.subr.bf16.mxu0 0
        %4749 = vmatpush1.bf16.msra.mxu0 %v4657
        %4750 = vmatprep.subr.bf16.mxu0 0
        %4751 = vmatpush1.bf16.msra.mxu0 %v4658
        %4752 = vmatprep.subr.bf16.mxu0 0
        %4753 = vmatpush1.bf16.msra.mxu0 %v4659
        %4754 = vmatprep.subr.bf16.mxu0 0
        %4755 = vmatpush1.bf16.msra.mxu0 %v4660
        %4756 = vmatprep.subr.bf16.mxu0 0
        %4757 = vmatpush1.bf16.msra.mxu0 %v4661
        %4758 = vmatprep.subr.bf16.mxu0 0
        %4759 = vmatpush1.bf16.msra.mxu0 %v4662
        %4760 = vmatprep.subr.bf16.mxu0 0
        %4761 = vmatpush1.bf16.msra.mxu0 %v4663
        %4762 = vmatprep.subr.bf16.mxu0 0
        %4763 = vmatpush1.bf16.msra.mxu0 %v4664
        %4764 = vmatprep.subr.bf16.mxu0 0
        %4765 = vmatpush1.bf16.msra.mxu0 %v4665
        %4766 = vmatprep.mubr.bf16.mxu0 %v4486
        %4767 = vmatmul.mubr.bf16.gmra.mrb[0].mxu0 %v4485
        %v4768 = vpop.f32.mrb[0].mxu0
        %v4769 = vadd.f32 %v4576, %v4768
        %v4770 = vpop.f32.mrb[0].mxu0
        %v4771 = vpop.f32.mrb[0].mxu0
        %v4772 = vadd.f32 %v4576, %v4771
        %v4773 = vpop.f32.mrb[0].mxu0
        %4774 = vmatprep.mubr.bf16.mxu0 %v4489
        %4775 = vmatmul.mubr.bf16.gmra.mrb[0].mxu0 %v4488
        %v4776 = vpop.f32.mrb[0].mxu0
        %v4777 = vadd.f32 %v4576, %v4776
        %v4778 = vpop.f32.mrb[0].mxu0
        %v4779 = vpop.f32.mrb[0].mxu0
        %v4780 = vadd.f32 %v4576, %v4779
        %v4781 = vpop.f32.mrb[0].mxu0
        %4782 = vmatprep.mubr.bf16.mxu0 %v4492
        %4783 = vmatmul.mubr.bf16.gmra.mrb[0].mxu0 %v4491
        %v4784 = vpop.f32.mrb[0].mxu0
        %v4785 = vadd.f32 %v4576, %v4784
        %v4786 = vpop.f32.mrb[0].mxu0
        %v4787 = vpop.f32.mrb[0].mxu0
        %v4788 = vadd.f32 %v4576, %v4787
        %v4789 = vpop.f32.mrb[0].mxu0
        %4790 = vmatprep.mubr.bf16.mxu0 %v4495
        %4791 = vmatmul.mubr.bf16.gmra.mrb[0].mxu0 %v4494
        %v4792 = vpop.f32.mrb[0].mxu0
        %v4793 = vadd.f32 %v4576, %v4792
        %v4794 = vpop.f32.mrb[0].mxu0
        %v4795 = vpop.f32.mrb[0].mxu0
        %v4796 = vadd.f32 %v4576, %v4795
        %v4797 = vpop.f32.mrb[0].mxu0
        %4798 = vmatprep.mubr.bf16.mxu0 %v4498
        %4799 = vmatmul.mubr.bf16.gmra.mrb[0].mxu0 %v4497
        %v4800 = vpop.f32.mrb[0].mxu0
        %v4801 = vadd.f32 %v4576, %v4800
        %v4802 = vpop.f32.mrb[0].mxu0
        %v4803 = vpop.f32.mrb[0].mxu0
        %v4804 = vadd.f32 %v4576, %v4803
        %v4805 = vpop.f32.mrb[0].mxu0
        %4806 = vmatprep.mubr.bf16.mxu0 %v4501
        %4807 = vmatmul.mubr.bf16.gmra.mrb[0].mxu0 %v4500
        %v4808 = vpop.f32.mrb[0].mxu0
        %v4809 = vadd.f32 %v4576, %v4808
        %v4810 = vpop.f32.mrb[0].mxu0
        %v4811 = vpop.f32.mrb[0].mxu0
        %v4812 = vadd.f32 %v4576, %v4811
        %v4813 = vpop.f32.mrb[0].mxu0
        %4814 = vmatprep.mubr.bf16.mxu0 %v4504
        %4815 = vmatmul.mubr.bf16.gmra.mrb[0].mxu0 %v4503
        %v4816 = vpop.f32.mrb[0].mxu0
        %v4817 = vadd.f32 %v4576, %v4816
        %v4818 = vpop.f32.mrb[0].mxu0
        %v4819 = vpop.f32.mrb[0].mxu0
        %v4820 = vadd.f32 %v4576, %v4819
        %v4821 = vpop.f32.mrb[0].mxu0
        %4822 = vmatprep.mubr.bf16.mxu0 %v4507
        %4823 = vmatmul.mubr.bf16.gmra.mrb[0].mxu0 %v4506
        %v4824 = vpop.f32.mrb[0].mxu0
        %v4825 = vadd.f32 %v4576, %v4824
        %v4826 = vpop.f32.mrb[0].mxu0
        %v4827 = vpop.f32.mrb[0].mxu0
        %v4828 = vadd.f32 %v4576, %v4827
        %v4829 = vpop.f32.mrb[0].mxu0
        %4830 = vmatprep.mubr.bf16.mxu0 %v4510
        %4831 = vmatmul.mubr.bf16.gmra.mrb[0].mxu0 %v4509
        %v4832 = vpop.f32.mrb[0].mxu0
        %v4833 = vadd.f32 %v4576, %v4832
        %v4834 = vpop.f32.mrb[0].mxu0
        %v4835 = vpop.f32.mrb[0].mxu0
        %v4836 = vadd.f32 %v4576, %v4835
        %v4837 = vpop.f32.mrb[0].mxu0
        %4838 = vmatprep.mubr.bf16.mxu0 %v4513
        %4839 = vmatmul.mubr.bf16.gmra.mrb[0].mxu0 %v4512
        %v4840 = vpop.f32.mrb[0].mxu0
        %v4841 = vadd.f32 %v4576, %v4840
        %v4842 = vpop.f32.mrb[0].mxu0
        %v4843 = vpop.f32.mrb[0].mxu0
        %v4844 = vadd.f32 %v4576, %v4843
        %v4845 = vpop.f32.mrb[0].mxu0
        %4846 = vmatprep.mubr.bf16.mxu0 %v4516
        %4847 = vmatmul.mubr.bf16.gmra.mrb[0].mxu0 %v4515
        %v4848 = vpop.f32.mrb[0].mxu0
        %v4849 = vadd.f32 %v4576, %v4848
        %v4850 = vpop.f32.mrb[0].mxu0
        %v4851 = vpop.f32.mrb[0].mxu0
        %v4852 = vadd.f32 %v4576, %v4851
        %v4853 = vpop.f32.mrb[0].mxu0
        %4854 = vmatprep.mubr.bf16.mxu0 %v4519
        %4855 = vmatmul.mubr.bf16.gmra.mrb[0].mxu0 %v4518
        %v4856 = vpop.f32.mrb[0].mxu0
        %v4857 = vadd.f32 %v4576, %v4856
        %v4858 = vpop.f32.mrb[0].mxu0
        %v4859 = vpop.f32.mrb[0].mxu0
        %v4860 = vadd.f32 %v4576, %v4859
        %v4861 = vpop.f32.mrb[0].mxu0
        %4862 = vmatprep.mubr.bf16.mxu0 %v4522
        %4863 = vmatmul.mubr.bf16.gmra.mrb[0].mxu0 %v4521
        %v4864 = vpop.f32.mrb[0].mxu0
        %v4865 = vadd.f32 %v4576, %v4864
        %v4866 = vpop.f32.mrb[0].mxu0
        %v4867 = vpop.f32.mrb[0].mxu0
        %v4868 = vadd.f32 %v4576, %v4867
        %v4869 = vpop.f32.mrb[0].mxu0
        %4870 = vmatprep.mubr.bf16.mxu0 %v4525
        %4871 = vmatmul.mubr.bf16.gmra.mrb[0].mxu0 %v4524
        %v4872 = vpop.f32.mrb[0].mxu0
        %v4873 = vadd.f32 %v4576, %v4872
        %v4874 = vpop.f32.mrb[0].mxu0
        %v4875 = vpop.f32.mrb[0].mxu0
        %v4876 = vadd.f32 %v4576, %v4875
        %v4877 = vpop.f32.mrb[0].mxu0
        %4878 = vmatprep.mubr.bf16.mxu0 %v4528
        %4879 = vmatmul.mubr.bf16.gmra.mrb[0].mxu0 %v4527
        %v4880 = vpop.f32.mrb[0].mxu0
        %v4881 = vadd.f32 %v4576, %v4880
        %v4882 = vpop.f32.mrb[0].mxu0
        %v4883 = vpop.f32.mrb[0].mxu0
        %v4884 = vadd.f32 %v4576, %v4883
        %v4885 = vpop.f32.mrb[0].mxu0
        %4886 = vmatprep.mubr.bf16.mxu0 %v4531
        %4887 = vmatmul.mubr.bf16.gmra.mrb[0].mxu0 %v4530
        %v4888 = vpop.f32.mrb[0].mxu0
        %v4889 = vadd.f32 %v4576, %v4888
        %v4890 = vpop.f32.mrb[0].mxu0
        %v4891 = vpop.f32.mrb[0].mxu0
        %v4892 = vadd.f32 %v4576, %v4891
        %v4893 = vpop.f32.mrb[0].mxu0
        %4894 = vdwg.mxu0
        %4895 = vmatprep.subr.bf16.mxu0 0
        %4896 = vmatpush1.bf16.msra.mxu0 %v4666
        %4897 = vmatprep.subr.bf16.mxu0 0
        %4898 = vmatpush1.bf16.msra.mxu0 %v4667
        %4899 = vmatprep.subr.bf16.mxu0 0
        %4900 = vmatpush1.bf16.msra.mxu0 0
        %4901 = vmatprep.subr.bf16.mxu0 0
        %4902 = vmatpush1.bf16.msra.mxu0 0
        %4903 = vmatprep.subr.bf16.mxu0 0
        %4904 = vmatpush1.bf16.msra.mxu0 0
        %4905 = vmatprep.subr.bf16.mxu0 0
        %4906 = vmatpush1.bf16.msra.mxu0 0
        %4907 = vmatprep.subr.bf16.mxu0 0
        %4908 = vmatpush1.bf16.msra.mxu0 0
        %4909 = vmatprep.subr.bf16.mxu0 0
        %4910 = vmatpush1.bf16.msra.mxu0 0
        %4911 = vmatprep.subr.bf16.mxu0 0
        %4912 = vmatpush1.bf16.msra.mxu0 0
        %4913 = vmatprep.subr.bf16.mxu0 0
        %4914 = vmatpush1.bf16.msra.mxu0 0
        %4915 = vmatprep.subr.bf16.mxu0 0
        %4916 = vmatpush1.bf16.msra.mxu0 0
        %4917 = vmatprep.subr.bf16.mxu0 0
        %4918 = vmatpush1.bf16.msra.mxu0 0
        %4919 = vmatprep.subr.bf16.mxu0 0
        %4920 = vmatpush1.bf16.msra.mxu0 0
        %4921 = vmatprep.subr.bf16.mxu0 0
        %4922 = vmatpush1.bf16.msra.mxu0 0
        %4923 = vmatprep.subr.bf16.mxu0 0
        %4924 = vmatpush1.bf16.msra.mxu0 0
        %4925 = vmatprep.subr.bf16.mxu0 0
        %4926 = vmatpush1.bf16.msra.mxu0 0
        %4927 = vmatprep.mubr.bf16.mxu0 0
        %4928 = vmatmul.mubr.bf16.gmra.mrb[0].mxu0 %v4687
        %v4929 = vpop.f32.mrb[0].mxu0
        %v4930 = vadd.f32 %v4769, %v4929
        %v4931 = vpop.f32.mrb[0].mxu0
        %v4932 = vpop.f32.mrb[0].mxu0
        %v4933 = vadd.f32 %v4772, %v4932
        %v4934 = vpop.f32.mrb[0].mxu0
        %4935 = vmatprep.mubr.bf16.mxu0 0
        %4936 = vmatmul.mubr.bf16.gmra.mrb[0].mxu0 %v4690
        %v4937 = vpop.f32.mrb[0].mxu0
        %v4938 = vadd.f32 %v4777, %v4937
        %v4939 = vpop.f32.mrb[0].mxu0
        %v4940 = vpop.f32.mrb[0].mxu0
        %v4941 = vadd.f32 %v4780, %v4940
        %v4942 = vpop.f32.mrb[0].mxu0
        %4943 = vmatprep.mubr.bf16.mxu0 0
        %4944 = vmatmul.mubr.bf16.gmra.mrb[0].mxu0 %v4693
        %v4945 = vpop.f32.mrb[0].mxu0
        %v4946 = vadd.f32 %v4785, %v4945
        %v4947 = vpop.f32.mrb[0].mxu0
        %v4948 = vpop.f32.mrb[0].mxu0
        %v4949 = vadd.f32 %v4788, %v4948
        %v4950 = vpop.f32.mrb[0].mxu0
        %4951 = vmatprep.mubr.bf16.mxu0 0
        %4952 = vmatmul.mubr.bf16.gmra.mrb[0].mxu0 %v4696
        %v4953 = vpop.f32.mrb[0].mxu0
        %v4954 = vadd.f32 %v4793, %v4953
        %v4955 = vpop.f32.mrb[0].mxu0
        %v4956 = vpop.f32.mrb[0].mxu0
        %v4957 = vadd.f32 %v4796, %v4956
        %v4958 = vpop.f32.mrb[0].mxu0
        %4959 = vmatprep.mubr.bf16.mxu0 0
        %4960 = vmatmul.mubr.bf16.gmra.mrb[0].mxu0 %v4699
        %v4961 = vpop.f32.mrb[0].mxu0
        %v4962 = vadd.f32 %v4801, %v4961
        %v4963 = vpop.f32.mrb[0].mxu0
        %v4964 = vpop.f32.mrb[0].mxu0
        %v4965 = vadd.f32 %v4804, %v4964
        %v4966 = vpop.f32.mrb[0].mxu0
        %4967 = vmatprep.mubr.bf16.mxu0 0
        %4968 = vmatmul.mubr.bf16.gmra.mrb[0].mxu0 %v4702
        %v4969 = vpop.f32.mrb[0].mxu0
        %v4970 = vadd.f32 %v4809, %v4969
        %v4971 = vpop.f32.mrb[0].mxu0
        %v4972 = vpop.f32.mrb[0].mxu0
        %v4973 = vadd.f32 %v4812, %v4972
        %v4974 = vpop.f32.mrb[0].mxu0
        %4975 = vmatprep.mubr.bf16.mxu0 0
        %4976 = vmatmul.mubr.bf16.gmra.mrb[0].mxu0 %v4705
        %v4977 = vpop.f32.mrb[0].mxu0
        %v4978 = vadd.f32 %v4817, %v4977
        %v4979 = vpop.f32.mrb[0].mxu0
        %v4980 = vpop.f32.mrb[0].mxu0
        %v4981 = vadd.f32 %v4820, %v4980
        %v4982 = vpop.f32.mrb[0].mxu0
        %4983 = vmatprep.mubr.bf16.mxu0 0
        %4984 = vmatmul.mubr.bf16.gmra.mrb[0].mxu0 %v4708
        %v4985 = vpop.f32.mrb[0].mxu0
        %v4986 = vadd.f32 %v4825, %v4985
        %v4987 = vpop.f32.mrb[0].mxu0
        %v4988 = vpop.f32.mrb[0].mxu0
        %v4989 = vadd.f32 %v4828, %v4988
        %v4990 = vpop.f32.mrb[0].mxu0
        %4991 = vmatprep.mubr.bf16.mxu0 0
        %4992 = vmatmul.mubr.bf16.gmra.mrb[0].mxu0 %v4711
        %v4993 = vpop.f32.mrb[0].mxu0
        %v4994 = vadd.f32 %v4833, %v4993
        %v4995 = vpop.f32.mrb[0].mxu0
        %v4996 = vpop.f32.mrb[0].mxu0
        %v4997 = vadd.f32 %v4836, %v4996
        %v4998 = vpop.f32.mrb[0].mxu0
        %4999 = vmatprep.mubr.bf16.mxu0 0
        %5000 = vmatmul.mubr.bf16.gmra.mrb[0].mxu0 %v4714
        %v5001 = vpop.f32.mrb[0].mxu0
        %v5002 = vadd.f32 %v4841, %v5001
        %v5003 = vpop.f32.mrb[0].mxu0
        %v5004 = vpop.f32.mrb[0].mxu0
        %v5005 = vadd.f32 %v4844, %v5004
        %v5006 = vpop.f32.mrb[0].mxu0
        %5007 = vmatprep.mubr.bf16.mxu0 0
        %5008 = vmatmul.mubr.bf16.gmra.mrb[0].mxu0 %v4717
        %v5009 = vpop.f32.mrb[0].mxu0
        %v5010 = vadd.f32 %v4849, %v5009
        %v5011 = vpop.f32.mrb[0].mxu0
        %v5012 = vpop.f32.mrb[0].mxu0
        %v5013 = vadd.f32 %v4852, %v5012
        %v5014 = vpop.f32.mrb[0].mxu0
        %5015 = vmatprep.mubr.bf16.mxu0 0
        %5016 = vmatmul.mubr.bf16.gmra.mrb[0].mxu0 %v4720
        %v5017 = vpop.f32.mrb[0].mxu0
        %v5018 = vadd.f32 %v4857, %v5017
        %v5019 = vpop.f32.mrb[0].mxu0
        %v5020 = vpop.f32.mrb[0].mxu0
        %v5021 = vadd.f32 %v4860, %v5020
        %v5022 = vpop.f32.mrb[0].mxu0
        %5023 = vmatprep.mubr.bf16.mxu0 0
        %5024 = vmatmul.mubr.bf16.gmra.mrb[0].mxu0 %v4723
        %v5025 = vpop.f32.mrb[0].mxu0
        %v5026 = vadd.f32 %v4865, %v5025
        %v5027 = vpop.f32.mrb[0].mxu0
        %v5028 = vpop.f32.mrb[0].mxu0
        %v5029 = vadd.f32 %v4868, %v5028
        %v5030 = vpop.f32.mrb[0].mxu0
        %5031 = vmatprep.mubr.bf16.mxu0 0
        %5032 = vmatmul.mubr.bf16.gmra.mrb[0].mxu0 %v4726
        %v5033 = vpop.f32.mrb[0].mxu0
        %v5034 = vadd.f32 %v4873, %v5033
        %v5035 = vpop.f32.mrb[0].mxu0
        %v5036 = vpop.f32.mrb[0].mxu0
        %v5037 = vadd.f32 %v4876, %v5036
        %v5038 = vpop.f32.mrb[0].mxu0
        %5039 = vmatprep.mubr.bf16.mxu0 0
        %5040 = vmatmul.mubr.bf16.gmra.mrb[0].mxu0 %v4729
        %v5041 = vpop.f32.mrb[0].mxu0
        %v5042 = vadd.f32 %v4881, %v5041
        %v5043 = vpop.f32.mrb[0].mxu0
        %v5044 = vpop.f32.mrb[0].mxu0
        %v5045 = vadd.f32 %v4884, %v5044
        %v5046 = vpop.f32.mrb[0].mxu0
        %5047 = vmatprep.mubr.bf16.mxu0 0
        %5048 = vmatmul.mubr.bf16.gmra.mrb[0].mxu0 %v4732
        %v5049 = vpop.f32.mrb[0].mxu0
        %v5050 = vadd.f32 %v4889, %v5049
        %v5051 = vpop.f32.mrb[0].mxu0
        %v5052 = vpop.f32.mrb[0].mxu0
        %v5053 = vadd.f32 %v4892, %v5052
        %v5054 = vpop.f32.mrb[0].mxu0
        %5055 = vdwg.mxu0
        %v5056 = vmul.f32 %v4930, 0.2
        %v5057 = vmul.f32 %v4933, 0.2
        %v5058 = vmul.f32 %v4938, 0.2
        %v5059 = vmul.f32 %v4941, 0.2
        %v5060 = vmul.f32 %v4946, 0.2
        %v5061 = vmul.f32 %v4949, 0.2
        %v5062 = vmul.f32 %v4954, 0.2
        %v5063 = vmul.f32 %v4957, 0.2
        %v5064 = vmul.f32 %v4962, 0.2
        %v5065 = vmul.f32 %v4965, 0.2
        %v5066 = vmul.f32 %v4970, 0.2
        %v5067 = vmul.f32 %v4973, 0.2
        %v5068 = vmul.f32 %v4978, 0.2
        %v5069 = vmul.f32 %v4981, 0.2
        %v5070 = vmul.f32 %v4986, 0.2
        %v5071 = vmul.f32 %v4989, 0.2
        %v5072 = vmul.f32 %v4994, 0.2
        %v5073 = vmul.f32 %v4997, 0.2
        %v5074 = vmul.f32 %v5002, 0.2
        %v5075 = vmul.f32 %v5005, 0.2
        %v5076 = vmul.f32 %v5010, 0.2
        %v5077 = vmul.f32 %v5013, 0.2
        %v5078 = vmul.f32 %v5018, 0.2
        %v5079 = vmul.f32 %v5021, 0.2
        %v5080 = vmul.f32 %v5026, 0.2
        %v5081 = vmul.f32 %v5029, 0.2
        %v5082 = vmul.f32 %v5034, 0.2
        %v5083 = vmul.f32 %v5037, 0.2
        %v5084 = vmul.f32 %v5042, 0.2
        %v5085 = vmul.f32 %v5045, 0.2
        %v5086 = vmul.f32 %v5050, 0.2
        %v5087 = vmul.f32 %v5053, 0.2
        %v5088 = vmax.f32 %v4930, %v5056
        %v5089 = vmax.f32 %v4933, %v5057
        %v5090 = vmax.f32 %v4938, %v5058
        %v5091 = vmax.f32 %v4941, %v5059
        %v5092 = vmax.f32 %v4946, %v5060
        %v5093 = vmax.f32 %v4949, %v5061
        %v5094 = vmax.f32 %v4954, %v5062
        %v5095 = vmax.f32 %v4957, %v5063
        %v5096 = vmax.f32 %v4962, %v5064
        %v5097 = vmax.f32 %v4965, %v5065
        %v5098 = vmax.f32 %v4970, %v5066
        %v5099 = vmax.f32 %v4973, %v5067
        %v5100 = vmax.f32 %v4978, %v5068
        %v5101 = vmax.f32 %v4981, %v5069
        %v5102 = vmax.f32 %v4986, %v5070
        %v5103 = vmax.f32 %v4989, %v5071
        %v5104 = vmax.f32 %v4994, %v5072
        %v5105 = vmax.f32 %v4997, %v5073
        %v5106 = vmax.f32 %v5002, %v5074
        %v5107 = vmax.f32 %v5005, %v5075
        %v5108 = vmax.f32 %v5010, %v5076
        %v5109 = vmax.f32 %v5013, %v5077
        %v5110 = vmax.f32 %v5018, %v5078
        %v5111 = vmax.f32 %v5021, %v5079
        %v5112 = vmax.f32 %v5026, %v5080
        %v5113 = vmax.f32 %v5029, %v5081
        %v5114 = vmax.f32 %v5034, %v5082
        %v5115 = vmax.f32 %v5037, %v5083
        %v5116 = vmax.f32 %v5042, %v5084
        %v5117 = vmax.f32 %v5045, %v5085
        %v5118 = vmax.f32 %v5050, %v5086
        %v5119 = vmax.f32 %v5053, %v5087
        %v5120 = vpack.c.bf16 %v5089, %v5088
        %v5121 = vpack.c.bf16 %v5091, %v5090
        %v5122 = vpack.c.bf16 %v5093, %v5092
        %v5123 = vpack.c.bf16 %v5095, %v5094
        %v5124 = vpack.c.bf16 %v5097, %v5096
        %v5125 = vpack.c.bf16 %v5099, %v5098
        %v5126 = vpack.c.bf16 %v5101, %v5100
        %v5127 = vpack.c.bf16 %v5103, %v5102
        %v5128 = vpack.c.bf16 %v5105, %v5104
        %v5129 = vpack.c.bf16 %v5107, %v5106
        %v5130 = vpack.c.bf16 %v5109, %v5108
        %v5131 = vpack.c.bf16 %v5111, %v5110
        %v5132 = vpack.c.bf16 %v5113, %v5112
        %v5133 = vpack.c.bf16 %v5115, %v5114
        %v5134 = vpack.c.bf16 %v5117, %v5116
        %v5135 = vpack.c.bf16 %v5119, %v5118
        %v5136 = vld [vmem:[%s11] sm:$0xf]
        %v5137 = vld [vmem:[%s11 + $0x4] sm:$0xf]
        %v5138 = vld [vmem:[%s11 + $0x8] sm:$0xf]
        %v5139 = vld [vmem:[%s11 + $0xc] sm:$0xf]
        %v5140 = vld [vmem:[%s12] sm:$0x1]
        %v5142 = vlaneseq
        %v5143 = vshrl.u32 %v5142, 7
        %v5144 = vsub.s32 0, %v5143
        %v5145 = vrot.slane %v5140, %v5144
        %v5151 = vunpack.c.l.b16 %v5136
        %v5152 = vunpack.c.l.b16 %v5137
        %v5153 = vunpack.c.l.b16 %v5138
        %v5154 = vunpack.c.l.b16 %v5139
        %v5155 = vpack.c.b16 %v5152, %v5151
        %v5156 = vpack.c.b16 %v5154, %v5153
        %v5160 = vsel %vm463, %v5120, 0
        %v5163 = vsel %vm463, %v5121, 0
        %v5166 = vsel %vm463, %v5122, 0
        %v5169 = vsel %vm463, %v5123, 0
        %v5172 = vsel %vm463, %v5124, 0
        %v5175 = vsel %vm463, %v5125, 0
        %v5178 = vsel %vm463, %v5126, 0
        %v5181 = vsel %vm463, %v5127, 0
        %v5184 = vsel %vm463, %v5128, 0
        %v5187 = vsel %vm463, %v5129, 0
        %v5190 = vsel %vm463, %v5130, 0
        %v5193 = vsel %vm463, %v5131, 0
        %v5196 = vsel %vm463, %v5132, 0
        %v5199 = vsel %vm463, %v5133, 0
        %v5202 = vsel %vm463, %v5134, 0
        %v5205 = vsel %vm463, %v5135, 0
        %5207 = vmatprep.subr.bf16.mxu0 0
        %5208 = vmatpush1.bf16.msra.mxu0 %v5155
        %5209 = vmatprep.subr.bf16.mxu0 0
        %5210 = vmatpush1.bf16.msra.mxu0 %v5156
        %5211 = vmatprep.subr.bf16.mxu0 0
        %5212 = vmatpush1.bf16.msra.mxu0 0
        %5213 = vmatprep.subr.bf16.mxu0 0
        %5214 = vmatpush1.bf16.msra.mxu0 0
        %5215 = vmatprep.subr.bf16.mxu0 0
        %5216 = vmatpush1.bf16.msra.mxu0 0
        %5217 = vmatprep.subr.bf16.mxu0 0
        %5218 = vmatpush1.bf16.msra.mxu0 0
        %5219 = vmatprep.subr.bf16.mxu0 0
        %5220 = vmatpush1.bf16.msra.mxu0 0
        %5221 = vmatprep.subr.bf16.mxu0 0
        %5222 = vmatpush1.bf16.msra.mxu0 0
        %5223 = vmatprep.subr.bf16.mxu0 0
        %5224 = vmatpush1.bf16.msra.mxu0 0
        %5225 = vmatprep.subr.bf16.mxu0 0
        %5226 = vmatpush1.bf16.msra.mxu0 0
        %5227 = vmatprep.subr.bf16.mxu0 0
        %5228 = vmatpush1.bf16.msra.mxu0 0
        %5229 = vmatprep.subr.bf16.mxu0 0
        %5230 = vmatpush1.bf16.msra.mxu0 0
        %5231 = vmatprep.subr.bf16.mxu0 0
        %5232 = vmatpush1.bf16.msra.mxu0 0
        %5233 = vmatprep.subr.bf16.mxu0 0
        %5234 = vmatpush1.bf16.msra.mxu0 0
        %5235 = vmatprep.subr.bf16.mxu0 0
        %5236 = vmatpush1.bf16.msra.mxu0 0
        %5237 = vmatprep.subr.bf16.mxu0 0
        %5238 = vmatpush1.bf16.msra.mxu0 0
        %5239 = vmatprep.mubr.bf16.mxu0 0
        %5240 = vmatmul.mubr.bf16.gmra.mrb[0].mxu0 %v5160
        %v5241 = vpop.f32.mrb[0].mxu0
        %v5242 = vadd.f32 %v5145, %v5241
        %v5243 = vpop.f32.mrb[0].mxu0
        %v5244 = vpop.f32.mrb[0].mxu0
        %v5245 = vadd.f32 %v5145, %v5244
        %v5246 = vpop.f32.mrb[0].mxu0
        %5247 = vmatprep.mubr.bf16.mxu0 0
        %5248 = vmatmul.mubr.bf16.gmra.mrb[0].mxu0 %v5163
        %v5249 = vpop.f32.mrb[0].mxu0
        %v5250 = vadd.f32 %v5145, %v5249
        %v5251 = vpop.f32.mrb[0].mxu0
        %v5252 = vpop.f32.mrb[0].mxu0
        %v5253 = vadd.f32 %v5145, %v5252
        %v5254 = vpop.f32.mrb[0].mxu0
        %5255 = vmatprep.mubr.bf16.mxu0 0
        %5256 = vmatmul.mubr.bf16.gmra.mrb[0].mxu0 %v5166
        %v5257 = vpop.f32.mrb[0].mxu0
        %v5258 = vadd.f32 %v5145, %v5257
        %v5259 = vpop.f32.mrb[0].mxu0
        %v5260 = vpop.f32.mrb[0].mxu0
        %v5261 = vadd.f32 %v5145, %v5260
        %v5262 = vpop.f32.mrb[0].mxu0
        %5263 = vmatprep.mubr.bf16.mxu0 0
        %5264 = vmatmul.mubr.bf16.gmra.mrb[0].mxu0 %v5169
        %v5265 = vpop.f32.mrb[0].mxu0
        %v5266 = vadd.f32 %v5145, %v5265
        %v5267 = vpop.f32.mrb[0].mxu0
        %v5268 = vpop.f32.mrb[0].mxu0
        %v5269 = vadd.f32 %v5145, %v5268
        %v5270 = vpop.f32.mrb[0].mxu0
        %5271 = vmatprep.mubr.bf16.mxu0 0
        %5272 = vmatmul.mubr.bf16.gmra.mrb[0].mxu0 %v5172
        %v5273 = vpop.f32.mrb[0].mxu0
        %v5274 = vadd.f32 %v5145, %v5273
        %v5275 = vpop.f32.mrb[0].mxu0
        %v5276 = vpop.f32.mrb[0].mxu0
        %v5277 = vadd.f32 %v5145, %v5276
        %v5278 = vpop.f32.mrb[0].mxu0
        %5279 = vmatprep.mubr.bf16.mxu0 0
        %5280 = vmatmul.mubr.bf16.gmra.mrb[0].mxu0 %v5175
        %v5281 = vpop.f32.mrb[0].mxu0
        %v5282 = vadd.f32 %v5145, %v5281
        %v5283 = vpop.f32.mrb[0].mxu0
        %v5284 = vpop.f32.mrb[0].mxu0
        %v5285 = vadd.f32 %v5145, %v5284
        %v5286 = vpop.f32.mrb[0].mxu0
        %5287 = vmatprep.mubr.bf16.mxu0 0
        %5288 = vmatmul.mubr.bf16.gmra.mrb[0].mxu0 %v5178
        %v5289 = vpop.f32.mrb[0].mxu0
        %v5290 = vadd.f32 %v5145, %v5289
        %v5291 = vpop.f32.mrb[0].mxu0
        %v5292 = vpop.f32.mrb[0].mxu0
        %v5293 = vadd.f32 %v5145, %v5292
        %v5294 = vpop.f32.mrb[0].mxu0
        %5295 = vmatprep.mubr.bf16.mxu0 0
        %5296 = vmatmul.mubr.bf16.gmra.mrb[0].mxu0 %v5181
        %v5297 = vpop.f32.mrb[0].mxu0
        %v5298 = vadd.f32 %v5145, %v5297
        %v5299 = vpop.f32.mrb[0].mxu0
        %v5300 = vpop.f32.mrb[0].mxu0
        %v5301 = vadd.f32 %v5145, %v5300
        %v5302 = vpop.f32.mrb[0].mxu0
        %5303 = vmatprep.mubr.bf16.mxu0 0
        %5304 = vmatmul.mubr.bf16.gmra.mrb[0].mxu0 %v5184
        %v5305 = vpop.f32.mrb[0].mxu0
        %v5306 = vadd.f32 %v5145, %v5305
        %v5307 = vpop.f32.mrb[0].mxu0
        %v5308 = vpop.f32.mrb[0].mxu0
        %v5309 = vadd.f32 %v5145, %v5308
        %v5310 = vpop.f32.mrb[0].mxu0
        %5311 = vmatprep.mubr.bf16.mxu0 0
        %5312 = vmatmul.mubr.bf16.gmra.mrb[0].mxu0 %v5187
        %v5313 = vpop.f32.mrb[0].mxu0
        %v5314 = vadd.f32 %v5145, %v5313
        %v5315 = vpop.f32.mrb[0].mxu0
        %v5316 = vpop.f32.mrb[0].mxu0
        %v5317 = vadd.f32 %v5145, %v5316
        %v5318 = vpop.f32.mrb[0].mxu0
        %5319 = vmatprep.mubr.bf16.mxu0 0
        %5320 = vmatmul.mubr.bf16.gmra.mrb[0].mxu0 %v5190
        %v5321 = vpop.f32.mrb[0].mxu0
        %v5322 = vadd.f32 %v5145, %v5321
        %v5323 = vpop.f32.mrb[0].mxu0
        %v5324 = vpop.f32.mrb[0].mxu0
        %v5325 = vadd.f32 %v5145, %v5324
        %v5326 = vpop.f32.mrb[0].mxu0
        %5327 = vmatprep.mubr.bf16.mxu0 0
        %5328 = vmatmul.mubr.bf16.gmra.mrb[0].mxu0 %v5193
        %v5329 = vpop.f32.mrb[0].mxu0
        %v5330 = vadd.f32 %v5145, %v5329
        %v5331 = vpop.f32.mrb[0].mxu0
        %v5332 = vpop.f32.mrb[0].mxu0
        %v5333 = vadd.f32 %v5145, %v5332
        %v5334 = vpop.f32.mrb[0].mxu0
        %5335 = vmatprep.mubr.bf16.mxu0 0
        %5336 = vmatmul.mubr.bf16.gmra.mrb[0].mxu0 %v5196
        %v5337 = vpop.f32.mrb[0].mxu0
        %v5338 = vadd.f32 %v5145, %v5337
        %v5339 = vpop.f32.mrb[0].mxu0
        %v5340 = vpop.f32.mrb[0].mxu0
        %v5341 = vadd.f32 %v5145, %v5340
        %v5342 = vpop.f32.mrb[0].mxu0
        %5343 = vmatprep.mubr.bf16.mxu0 0
        %5344 = vmatmul.mubr.bf16.gmra.mrb[0].mxu0 %v5199
        %v5345 = vpop.f32.mrb[0].mxu0
        %v5346 = vadd.f32 %v5145, %v5345
        %v5347 = vpop.f32.mrb[0].mxu0
        %v5348 = vpop.f32.mrb[0].mxu0
        %v5349 = vadd.f32 %v5145, %v5348
        %v5350 = vpop.f32.mrb[0].mxu0
        %5351 = vmatprep.mubr.bf16.mxu0 0
        %5352 = vmatmul.mubr.bf16.gmra.mrb[0].mxu0 %v5202
        %v5353 = vpop.f32.mrb[0].mxu0
        %v5354 = vadd.f32 %v5145, %v5353
        %v5355 = vpop.f32.mrb[0].mxu0
        %v5356 = vpop.f32.mrb[0].mxu0
        %v5357 = vadd.f32 %v5145, %v5356
        %v5358 = vpop.f32.mrb[0].mxu0
        %5359 = vmatprep.mubr.bf16.mxu0 0
        %5360 = vmatmul.mubr.bf16.gmra.mrb[0].mxu0 %v5205
        %v5361 = vpop.f32.mrb[0].mxu0
        %v5362 = vadd.f32 %v5145, %v5361
        %v5363 = vpop.f32.mrb[0].mxu0
        %v5364 = vpop.f32.mrb[0].mxu0
        %v5365 = vadd.f32 %v5145, %v5364
        %v5366 = vpop.f32.mrb[0].mxu0
        %5367 = vdwg.mxu0
        %v5368 = vtanh.pop %v5242
        %v5369 = vtanh.pop %v5245
        %v5370 = vtanh.pop %v5250
        %v5371 = vtanh.pop %v5253
        %v5372 = vtanh.pop %v5258
        %v5373 = vtanh.pop %v5261
        %v5374 = vtanh.pop %v5266
        %v5375 = vtanh.pop %v5269
        %v5376 = vtanh.pop %v5274
        %v5377 = vtanh.pop %v5277
        %v5378 = vtanh.pop %v5282
        %v5379 = vtanh.pop %v5285
        %v5380 = vtanh.pop %v5290
        %v5381 = vtanh.pop %v5293
        %v5382 = vtanh.pop %v5298
        %v5383 = vtanh.pop %v5301
        %v5384 = vtanh.pop %v5306
        %v5385 = vtanh.pop %v5309
        %v5386 = vtanh.pop %v5314
        %v5387 = vtanh.pop %v5317
        %v5388 = vtanh.pop %v5322
        %v5389 = vtanh.pop %v5325
        %v5390 = vtanh.pop %v5330
        %v5391 = vtanh.pop %v5333
        %v5392 = vtanh.pop %v5338
        %v5393 = vtanh.pop %v5341
        %v5394 = vtanh.pop %v5346
        %v5395 = vtanh.pop %v5349
        %v5396 = vtanh.pop %v5354
        %v5397 = vtanh.pop %v5357
        %v5398 = vtanh.pop %v5362
        %v5399 = vtanh.pop %v5365
        %v5400 = vadd.f32 %v5368, 0.0
        %v5401 = vadd.f32 %v5369, 0.0
        %v5402 = vadd.f32 %v5370, 0.0
        %v5403 = vadd.f32 %v5371, 0.0
        %v5404 = vadd.f32 %v5372, 0.0
        %v5405 = vadd.f32 %v5373, 0.0
        %v5406 = vadd.f32 %v5374, 0.0
        %v5407 = vadd.f32 %v5375, 0.0
        %v5408 = vadd.f32 %v5376, 0.0
        %v5409 = vadd.f32 %v5377, 0.0
        %v5410 = vadd.f32 %v5378, 0.0
        %v5411 = vadd.f32 %v5379, 0.0
        %v5412 = vadd.f32 %v5380, 0.0
        %v5413 = vadd.f32 %v5381, 0.0
        %v5414 = vadd.f32 %v5382, 0.0
        %v5415 = vadd.f32 %v5383, 0.0
        %v5416 = vadd.f32 %v5384, 0.0
        %v5417 = vadd.f32 %v5385, 0.0
        %v5418 = vadd.f32 %v5386, 0.0
        %v5419 = vadd.f32 %v5387, 0.0
        %v5420 = vadd.f32 %v5388, 0.0
        %v5421 = vadd.f32 %v5389, 0.0
        %v5422 = vadd.f32 %v5390, 0.0
        %v5423 = vadd.f32 %v5391, 0.0
        %v5424 = vadd.f32 %v5392, 0.0
        %v5425 = vadd.f32 %v5393, 0.0
        %v5426 = vadd.f32 %v5394, 0.0
        %v5427 = vadd.f32 %v5395, 0.0
        %v5428 = vadd.f32 %v5396, 0.0
        %v5429 = vadd.f32 %v5397, 0.0
        %v5430 = vadd.f32 %v5398, 0.0
        %v5431 = vadd.f32 %v5399, 0.0
        %5432 = vst [vmem:[%s429] sm:$0xff] %v5400
        %5433 = vst [vmem:[%s429 + $0x8] sm:$0xff] %v5401
        %5434 = vst [vmem:[%s429 + $0x10] sm:$0xff] %v5402
        %5435 = vst [vmem:[%s429 + $0x18] sm:$0xff] %v5403
        %5436 = vst [vmem:[%s429 + $0x20] sm:$0xff] %v5404
        %5437 = vst [vmem:[%s429 + $0x28] sm:$0xff] %v5405
        %5438 = vst [vmem:[%s429 + $0x30] sm:$0xff] %v5406
        %5439 = vst [vmem:[%s429 + $0x38] sm:$0xff] %v5407
        %5440 = vst [vmem:[%s429 + $0x40] sm:$0xff] %v5408
        %5441 = vst [vmem:[%s429 + $0x48] sm:$0xff] %v5409
        %5442 = vst [vmem:[%s429 + $0x50] sm:$0xff] %v5410
        %5443 = vst [vmem:[%s429 + $0x58] sm:$0xff] %v5411
        %5444 = vst [vmem:[%s429 + $0x60] sm:$0xff] %v5412
        %5445 = vst [vmem:[%s429 + $0x68] sm:$0xff] %v5413
        %5446 = vst [vmem:[%s429 + $0x70] sm:$0xff] %v5414
        %5447 = vst [vmem:[%s429 + $0x78] sm:$0xff] %v5415
        %5448 = vst [vmem:[%s429 + $0x80] sm:$0xff] %v5416
        %5449 = vst [vmem:[%s429 + $0x88] sm:$0xff] %v5417
        %5450 = vst [vmem:[%s429 + $0x90] sm:$0xff] %v5418
        %5451 = vst [vmem:[%s429 + $0x98] sm:$0xff] %v5419
        %5452 = vst [vmem:[%s429 + $0xa0] sm:$0xff] %v5420
        %5453 = vst [vmem:[%s429 + $0xa8] sm:$0xff] %v5421
        %5454 = vst [vmem:[%s429 + $0xb0] sm:$0xff] %v5422
        %5455 = vst [vmem:[%s429 + $0xb8] sm:$0xff] %v5423
        %5456 = vst [vmem:[%s429 + $0xc0] sm:$0xff] %v5424
        %5457 = vst [vmem:[%s429 + $0xc8] sm:$0xff] %v5425
        %5458 = vst [vmem:[%s429 + $0xd0] sm:$0xff] %v5426
        %5459 = vst [vmem:[%s429 + $0xd8] sm:$0xff] %v5427
        %5460 = vst [vmem:[%s429 + $0xe0] sm:$0xff] %v5428
        %5461 = vst [vmem:[%s429 + $0xe8] sm:$0xff] %v5429
        %5462 = vst [vmem:[%s429 + $0xf0] sm:$0xff] %v5430
        %5463 = vst [vmem:[%s429 + $0xf8] sm:$0xff] %v5431
        %s5464 = sand.u32 %s313, 1
        %s5465 = scalar_lea.sflag [#allocation4], %s5464
        %s5466 = sand.u32 %s313, 1
        %s5467 = smul.addr %s5466, 256
        %s5468 = scalar_lea.vmem [#allocation3], %s5467
        // Predicated region
        $region73: #{tpu_custom_call.1} parent=71 // pred_check
          %p5469 = pneg %p323
        $region74: #{tpu_custom_call.1} parent=71 // pred_check_branch
          %5471 = sbr.rel (%p5469) target = $region76
        $region75: #{tpu_custom_call.1} parent=71 // pred_region
          %s5473 = ssub.s32 4096, 4096
          %5474 = vsyncadd %s5465, %s5473
          %s5475 = smul.addr %s27, 32
          %s5476 = smul.addr %s5475, 128
          %s5477 = scalar_lea.hbm %s13, %s5476
          %s5478 = sshll.u32 %s5468, 4
          %s5479 = int_to_ptr.vmem [resolvable:$true] %s5478
          %5484 = dma.vmem_to_hbm [thread:$0]  %s5479, 4096, %s5477, %s5465, 128, 128, 8
        $region76: #{tpu_custom_call.1} parent=71 // pred_fallthru
          _
      $region72: #{tpu_custom_call.1} parent=5 // pred_fallthru
        _
      %p5485 = scmp.le.s32.totalorder 2, %s22
      // Predicated region
      $region77: #{tpu_custom_call.1} parent=5 // pred_check
        %p5486 = pneg %p5485
      $region78: #{tpu_custom_call.1} parent=5 // pred_check_branch
        %5488 = sbr.rel (%p5486) target = $region80
      $region79: #{tpu_custom_call.1} parent=5 // pred_region
        %s5489 = ssub.s32 %s22, 2
        // Predicated region
        $region81: #{tpu_custom_call.1} parent=79 // pred_check
          %p5490 = pneg %p329
        $region82: #{tpu_custom_call.1} parent=79 // pred_check_branch
          %5492 = sbr.rel (%p5490) target = $region84
        $region83: #{tpu_custom_call.1} parent=79 // pred_region
          %s5493 = sand.u32 %s314, 1
          %s5494 = scalar_lea.sflag [#allocation4], %s5493
          %s5495 = sand.u32 %s314, 1
          %s5496 = smul.addr %s5495, 256
          %s5497 = scalar_lea.vmem [#allocation3], %s5496
          %5498 = dma.done %s5494, 4096
        $region84: #{tpu_custom_call.1} parent=79 // pred_fallthru
          _
      $region80: #{tpu_custom_call.1} parent=5 // pred_fallthru
        _
    $region6: #{tpu_custom_call.1} parent=1 // loop_footer
      %s26 = sadd.s32 1, %s22
    $region7: #{tpu_custom_call.1} parent=1 // loop_footer_branch
      %21 = sbr.rel target = $region3
    $region8: #{tpu_custom_call.1} parent=1 // loop_exit
      _
    %5499 = vsyncpa [#allocation4], 1
    %s5500 = scalar_lea.sflag [#allocation4], 1
    %5501 = vsyncpa %s5500, 1

</llo_original>
